<compile_context>
chip_gen: v5e
topology: v5e:2x2
jax: 0.10.0
libtpu: 0.0.40
codegen_flags: <defaults>
</compile_context>

<pallas_src>
import functools
import math

import jax
import jax.numpy as jnp
from jax.experimental import pallas as pl
from jax.experimental.pallas import tpu as pltpu


_HAS_EINSHAPE = hasattr(pltpu, "einshape")
_HAS_BUFFERED = hasattr(pl, "Buffered")


def _layernorm_f32(x, gamma, beta, eps=1e-5):
    # x: (M, D) f32; gamma/beta: (1, D) f32.  Biased variance (PyTorch LN).
    mean = jnp.mean(x, axis=-1, keepdims=True)
    xc = x - mean
    var = jnp.mean(xc * xc, axis=-1, keepdims=True)
    inv = jax.lax.rsqrt(var + eps)
    return xc * inv * gamma + beta


def _split_heads(x2d, n_head, hd, fast):
    """(L, n_head*hd) -> (n_head, L, hd)."""
    if fast:
        x3 = x2d.reshape(x2d.shape[0], n_head, hd)
        if _HAS_EINSHAPE:
            return pltpu.einshape("mhd->hmd", x3)
        return jnp.transpose(x3, (1, 0, 2))
    # Safe fallback: per-head lane slices stacked on a new leading axis.
    return jnp.stack([x2d[:, h * hd:(h + 1) * hd] for h in range(n_head)], axis=0)


def _merge_heads(x3d, fast):
    """(n_head, L, hd) -> (L, n_head*hd)."""
    n_head, seq, hd = x3d.shape
    if fast:
        if _HAS_EINSHAPE:
            y = pltpu.einshape("hmd->mhd", x3d)
        else:
            y = jnp.transpose(x3d, (1, 0, 2))
        return y.reshape(seq, n_head * hd)
    return jnp.concatenate([x3d[h] for h in range(n_head)], axis=-1)


def _residual_block_kernel(
    x_ref,                      # (Bt, Lp, D) activations
    ln1_g_ref, ln1_b_ref,       # (1, D) f32
    wqkv_ref, bqkv_ref,         # (D, 3D) [K,N] (q-scale folded), (1, 3D) f32
    wo_ref, bo_ref,             # (D, D)  [K,N], (1, D) f32
    ln2_g_ref, ln2_b_ref,       # (1, D) f32
    wfc_ref, bfc_ref,           # (D, 4D) [K,N], (1, 4D) f32
    wpr_ref, bpr_ref,           # (4D, D) [K,N], (1, D) f32
    o_ref,                      # (Bt, Lp, D)
    *, n_head: int, seq_len: int, fast_layout: bool,
):
    f32 = jnp.float32
    Bt, Lp, D = x_ref.shape
    hd = D // n_head
    cdt = wqkv_ref.dtype                      # matmul operand dtype (bf16 / f32)

    x = x_ref[...].astype(f32).reshape(Bt * Lp, D)      # (M, D) f32

    # ---------------- attention branch ----------------
    h1 = _layernorm_f32(x, ln1_g_ref[...], ln1_b_ref[...]).astype(cdt)

    # Fused QKV projection: one tall (M, D) x (D, 3D) MXU stream, f32
    # accumulation, single bias add, single compute-dtype cast.
    qkv = jnp.dot(h1, wqkv_ref[...], preferred_element_type=f32) + bqkv_ref[...]
    qkv_c = qkv.astype(cdt)

    # TODO(synk): additive attn_mask (used by the CLIP text tower) is not
    # implemented; this kernel covers the module's attn_mask=None path.
    attn_rows = []
    for b in range(Bt):                        # static loop over sequences
        blk = qkv_c[b * Lp:(b + 1) * Lp, :]    # sublane-aligned row slice
        qh = _split_heads(blk[:, 0 * D:1 * D], n_head, hd, fast_layout)
        kh = _split_heads(blk[:, 1 * D:2 * D], n_head, hd, fast_layout)
        vh = _split_heads(blk[:, 2 * D:3 * D], n_head, hd, fast_layout)

        s = jnp.einsum("hqd,hkd->hqk", qh, kh,
                       preferred_element_type=f32)        # (H, Lp, Lp), pre-scaled
        if seq_len < Lp:                       # static: only when L was padded
            key_idx = jax.lax.broadcasted_iota(jnp.int32, (1, 1, Lp), 2)
            s = jnp.where(key_idx < seq_len, s, -1e30)

        s = s - jnp.max(s, axis=-1, keepdims=True)
        p = jnp.exp(s)
        p = p * pl.reciprocal(jnp.sum(p, axis=-1, keepdims=True), approx=True)

        ctx = jnp.einsum("hqk,hkd->hqd", p.astype(cdt), vh,
                         preferred_element_type=f32)       # (H, Lp, hd)
        attn_rows.append(_merge_heads(ctx, fast_layout))   # (Lp, D) f32

    attn_cat = (attn_rows[0] if Bt == 1
                else jnp.concatenate(attn_rows, axis=0)).astype(cdt)

    attn = jnp.dot(attn_cat, wo_ref[...], preferred_element_type=f32) + bo_ref[...]
    x1 = x + attn                               # residual 1, f32

    # ---------------- MLP branch ----------------
    h2 = _layernorm_f32(x1, ln2_g_ref[...], ln2_b_ref[...]).astype(cdt)
    hid = jnp.dot(h2, wfc_ref[...], preferred_element_type=f32) + bfc_ref[...]
    hid = hid * jax.nn.sigmoid(1.702 * hid)     # QuickGELU in f32
    mlp = jnp.dot(hid.astype(cdt), wpr_ref[...],
                  preferred_element_type=f32) + bpr_ref[...]

    o_ref[...] = (x1 + mlp).reshape(Bt, Lp, D).astype(o_ref.dtype)


def prepare_weights(params, n_head, weight_dtype=jnp.bfloat16):
    """Torch-layout params -> kernel-ready weights (host-side, once).

    Fuses the packed in_proj into one (D, 3D) [K,N] weight with the
    1/sqrt(head_dim) scale folded into its Q columns (and Q bias), pre-
    transposes every matmul weight to MXU-native (K, N), and casts matmul
    weights to `weight_dtype`.  LN params and biases stay f32.
    """
    # TODO(synk): optional fp8 quantization of w_fc / w_proj for v7x.
    f32 = jnp.float32
    D = params["w_out"].shape[0]
    hd = D // n_head
    scale = 1.0 / math.sqrt(hd)

    w_in = params["w_in"].astype(f32)                  # (3D, D) [out, in]
    b_in = params["b_in"].astype(f32).reshape(1, 3 * D)

    col_scale = jnp.concatenate([jnp.full((1, D), scale, f32),
                                 jnp.ones((1, 2 * D), f32)], axis=1)
    w_qkv = (w_in.T * col_scale).astype(weight_dtype)  # (D, 3D) [K, N]
    b_qkv = b_in * col_scale

    def t(w):                                          # torch [out,in] -> (K, N)
        return w.astype(f32).T.astype(weight_dtype)

    return (
        params["ln1_g"].astype(f32).reshape(1, D),
        params["ln1_b"].astype(f32).reshape(1, D),
        w_qkv, b_qkv,
        t(params["w_out"]), params["b_out"].astype(f32).reshape(1, D),
        params["ln2_g"].astype(f32).reshape(1, D),
        params["ln2_b"].astype(f32).reshape(1, D),
        t(params["w_fc"]), params["b_fc"].astype(f32).reshape(1, 4 * D),
        t(params["w_proj"]), params["b_proj"].astype(f32).reshape(1, D),
    )


def _vmem_capacity_bytes():
    try:
        cap = getattr(pltpu.get_tpu_info(), "vmem_capacity_bytes", None)
        if cap:
            return int(cap)
    except Exception:
        pass
    return 128 * 1024 * 1024


def residual_attention_block_nld(x_nld, prepared, n_head, *,
                                 block_batch=None, single_buffer_weights=True):
    """Batch-first entry point (preferred): x_nld is (N, L, D) -> (N, L, D)."""
    N, L, D = x_nld.shape
    Lp = ((L + 15) // 16) * 16            # 16-row pad: bf16 sublane packing
    per_seq_f32 = 4 * (8 * Lp * D + 3 * Lp * 4 * D + 3 * n_head * Lp * Lp)

    if block_batch is not None:
        Bt = max(1, min(int(block_batch), N))
    else:
        Bt = max(1, min(N, 256 // max(Lp, 1)))        # fill the MXU M dimension
        if N >= 2:
            Bt = min(Bt, -(-N // 2))                  # keep >=2 grid steps (v7x 2 TCs)
        Bt = max(1, min(Bt, (24 << 20) // max(per_seq_f32, 1)))
    Np = -(-N // Bt) * Bt

    x_pad = x_nld
    if Np != N or Lp != L:
        x_pad = jnp.pad(x_nld, ((0, Np - N), (0, Lp - L), (0, 0)))

    wbytes = sum(int(a.size) * a.dtype.itemsize for a in prepared)
    hard_cap = int(0.9 * _vmem_capacity_bytes())

    def _call(fast):
        single = fast and single_buffer_weights and _HAS_BUFFERED

        def wspec(a):
            if single:
                try:
                    # Constant index map across the grid -> one resident copy.
                    return pl.BlockSpec(a.shape, lambda n: (0, 0),
                                        pipeline_mode=pl.Buffered(1))
                except TypeError:
                    pass
            return pl.BlockSpec(a.shape, lambda n: (0, 0))

        act = 2 * 2 * Bt * Lp * D * x_pad.dtype.itemsize   # in+out, double-buffered
        need = (1 if single else 2) * wbytes + act + Bt * per_seq_f32 + (4 << 20)
        vmem_limit = max(min(64 << 20, hard_cap), min(hard_cap, need))

        kern = functools.partial(_residual_block_kernel, n_head=n_head,
                                 seq_len=L, fast_layout=fast)
        return pl.pallas_call(
            kern,
            out_shape=jax.ShapeDtypeStruct((Np, Lp, D), x_nld.dtype),
            grid=(Np // Bt,),
            in_specs=[pl.BlockSpec((Bt, Lp, D), lambda n: (n, 0, 0))]
                     + [wspec(a) for a in prepared],
            out_specs=pl.BlockSpec((Bt, Lp, D), lambda n: (n, 0, 0)),
            compiler_params=pltpu.CompilerParams(
                dimension_semantics=("parallel",),
                vmem_limit_bytes=int(vmem_limit)),
        )(x_pad, *prepared)

    try:
        out = _call(True)
    except Exception:
        # Conservative fallback: default double-buffered weights and the
        # stack/concat head packing (no einshape / lane-splitting reshapes).
        out = _call(False)

    if Np != N or Lp != L:
        out = out[:N, :L, :]
    return out


def residual_attention_block(x_lnd, prepared, n_head):
    """Torch layout: x is (L, N, D) as in nn.MultiheadAttention.

    The two transposes below are pure HBM traffic — prefer
    residual_attention_block_nld when the caller can supply (N, L, D).
    """
    out = residual_attention_block_nld(jnp.transpose(x_lnd, (1, 0, 2)),
                                       prepared, n_head)
    return jnp.transpose(out, (1, 0, 2))


def make_params(key, d_model):
    ks = jax.random.split(key, 8)
    s = 0.02
    return {
        "ln1_g": jnp.ones((1, d_model), jnp.float32),
        "ln1_b": jnp.zeros((1, d_model), jnp.float32),
        "w_in": s * jax.random.normal(ks[0], (3 * d_model, d_model), jnp.float32),
        "b_in": s * jax.random.normal(ks[1], (1, 3 * d_model), jnp.float32),
        "w_out": s * jax.random.normal(ks[2], (d_model, d_model), jnp.float32),
        "b_out": s * jax.random.normal(ks[3], (1, d_model), jnp.float32),
        "ln2_g": jnp.ones((1, d_model), jnp.float32),
        "ln2_b": jnp.zeros((1, d_model), jnp.float32),
        "w_fc": s * jax.random.normal(ks[4], (4 * d_model, d_model), jnp.float32),
        "b_fc": s * jax.random.normal(ks[5], (1, 4 * d_model), jnp.float32),
        "w_proj": s * jax.random.normal(ks[6], (d_model, 4 * d_model), jnp.float32),
        "b_proj": s * jax.random.normal(ks[7], (1, d_model), jnp.float32),
    }


def reference_block(x_lnd, params, n_head):
    """Pure-JAX reference mirroring the PyTorch module (f32)."""
    L, N, D = x_lnd.shape
    hd = D // n_head

    def ln(x, g, b):
        m = jnp.mean(x, -1, keepdims=True)
        v = jnp.mean((x - m) ** 2, -1, keepdims=True)
        return (x - m) / jnp.sqrt(v + 1e-5) * g + b

    x = jnp.transpose(x_lnd, (1, 0, 2))               # (N, L, D)
    h1 = ln(x, params["ln1_g"], params["ln1_b"])
    qkv = h1 @ params["w_in"].T + params["b_in"]
    q, k, v = jnp.split(qkv, 3, axis=-1)
    q = q.reshape(N, L, n_head, hd).transpose(0, 2, 1, 3)
    k = k.reshape(N, L, n_head, hd).transpose(0, 2, 1, 3)
    v = v.reshape(N, L, n_head, hd).transpose(0, 2, 1, 3)
    s = jnp.einsum("nhqd,nhkd->nhqk", q, k) / math.sqrt(hd)
    p = jax.nn.softmax(s, axis=-1)
    o = jnp.einsum("nhqk,nhkd->nhqd", p, v).transpose(0, 2, 1, 3).reshape(N, L, D)
    attn = o @ params["w_out"].T + params["b_out"]
    x1 = x + attn
    h2 = ln(x1, params["ln2_g"], params["ln2_b"])
    hid = h2 @ params["w_fc"].T + params["b_fc"]
    hid = hid * jax.nn.sigmoid(1.702 * hid)
    y = x1 + hid @ params["w_proj"].T + params["b_proj"]
    return jnp.transpose(y, (1, 0, 2))


if __name__ == "__main__":
    L, N, D, H = 8, 2, 128, 4
    key = jax.random.PRNGKey(0)
    kx, kp = jax.random.split(key)
    x = jax.random.normal(kx, (L, N, D), jnp.float32)
    params = make_params(kp, D)
    ref = reference_block(x, params, H)

    # f32-weight path: tight check against the pure-JAX reference.
    prep_f32 = prepare_weights(params, H, weight_dtype=jnp.float32)
    out_f32 = jax.block_until_ready(residual_attention_block(x, prep_f32, H))
    assert out_f32.shape == (L, N, D)
    err = float(jnp.max(jnp.abs(out_f32 - ref)))
    assert err < 2e-3, err

    # bf16-weight production path.
    prep_bf16 = prepare_weights(params, H, weight_dtype=jnp.bfloat16)
    out_bf16 = jax.block_until_ready(residual_attention_block(x, prep_bf16, H))
    err = float(jnp.max(jnp.abs(out_bf16 - ref)))
    assert err < 6e-2, err

    # Unaligned L (pad + key mask) + multi-sequence block + batch padding.
    L2, N2 = 7, 3
    x2 = jax.random.normal(jax.random.PRNGKey(1), (N2, L2, D), jnp.float32)
    out2 = jax.block_until_ready(
        residual_attention_block_nld(x2, prep_f32, H, block_batch=2))
    ref2 = jnp.transpose(
        reference_block(jnp.transpose(x2, (1, 0, 2)), params, H), (1, 0, 2))
    err = float(jnp.max(jnp.abs(out2 - ref2)))
    assert err < 2e-3, err

    # bf16 activations (halves per-step activation DMA) — looser tolerance.
    out3 = jax.block_until_ready(
        residual_attention_block(x.astype(jnp.bfloat16), prep_bf16, H))
    assert out3.dtype == jnp.bfloat16
    err = float(jnp.max(jnp.abs(out3.astype(jnp.float32) - ref)))
    assert err < 1.5e-1, err

    print("KERNEL_OK")
</pallas_src>

<mosaic_0001>
module attributes {stable_mosaic.version = 11 : i64} {
  func.func @_residual_block_kernel(%arg0: i32, %arg1: memref<1x16x128xf32, #tpu.memory_space<vmem>>, %arg2: memref<1x128xf32, #tpu.memory_space<vmem>>, %arg3: memref<1x128xf32, #tpu.memory_space<vmem>>, %arg4: memref<128x384xf32, #tpu.memory_space<vmem>>, %arg5: memref<1x384xf32, #tpu.memory_space<vmem>>, %arg6: memref<128x128xf32, #tpu.memory_space<vmem>>, %arg7: memref<1x128xf32, #tpu.memory_space<vmem>>, %arg8: memref<1x128xf32, #tpu.memory_space<vmem>>, %arg9: memref<1x128xf32, #tpu.memory_space<vmem>>, %arg10: memref<128x512xf32, #tpu.memory_space<vmem>>, %arg11: memref<1x512xf32, #tpu.memory_space<vmem>>, %arg12: memref<512x128xf32, #tpu.memory_space<vmem>>, %arg13: memref<1x128xf32, #tpu.memory_space<vmem>>, %arg14: memref<1x16x128xf32, #tpu.memory_space<vmem>>) attributes {dimension_semantics = [#tpu.dimension_semantics<parallel>], iteration_bounds = array<i64: 2>, scalar_prefetch = 0 : i64, scratch_operands = 0 : i64, tpu.core_type = #tpu.core_type<tc>, window_params = [{transform_indices = @transform_0, window_bounds = array<i64: 1, 16, 128>}, {pipeline_mode = #tpu.pipeline_mode<synchronous>, transform_indices = @transform_1, window_bounds = array<i64: 1, 128>}, {pipeline_mode = #tpu.pipeline_mode<synchronous>, transform_indices = @transform_2, window_bounds = array<i64: 1, 128>}, {pipeline_mode = #tpu.pipeline_mode<synchronous>, transform_indices = @transform_3, window_bounds = array<i64: 128, 384>}, {pipeline_mode = #tpu.pipeline_mode<synchronous>, transform_indices = @transform_4, window_bounds = array<i64: 1, 384>}, {pipeline_mode = #tpu.pipeline_mode<synchronous>, transform_indices = @transform_5, window_bounds = array<i64: 128, 128>}, {pipeline_mode = #tpu.pipeline_mode<synchronous>, transform_indices = @transform_6, window_bounds = array<i64: 1, 128>}, {pipeline_mode = #tpu.pipeline_mode<synchronous>, transform_indices = @transform_7, window_bounds = array<i64: 1, 128>}, {pipeline_mode = #tpu.pipeline_mode<synchronous>, transform_indices = @transform_8, window_bounds = array<i64: 1, 128>}, {pipeline_mode = #tpu.pipeline_mode<synchronous>, transform_indices = @transform_9, window_bounds = array<i64: 128, 512>}, {pipeline_mode = #tpu.pipeline_mode<synchronous>, transform_indices = @transform_10, window_bounds = array<i64: 1, 512>}, {pipeline_mode = #tpu.pipeline_mode<synchronous>, transform_indices = @transform_11, window_bounds = array<i64: 512, 128>}, {pipeline_mode = #tpu.pipeline_mode<synchronous>, transform_indices = @transform_12, window_bounds = array<i64: 1, 128>}, {transform_indices = @transform_13, window_bounds = array<i64: 1, 16, 128>}]} {
    %c0 = arith.constant 0 : index
    %c0_0 = arith.constant 0 : index
    %c0_1 = arith.constant 0 : index
    %0 = vector.load %arg1[%c0, %c0_0, %c0_1] : memref<1x16x128xf32, #tpu.memory_space<vmem>>, vector<1x16x128xf32>
    %1 = vector.shape_cast %0 : vector<1x16x128xf32> to vector<16x128xf32>
    %c0_2 = arith.constant 0 : index
    %c0_3 = arith.constant 0 : index
    %2 = vector.load %arg2[%c0_2, %c0_3] : memref<1x128xf32, #tpu.memory_space<vmem>>, vector<1x128xf32>
    %c0_4 = arith.constant 0 : index
    %c0_5 = arith.constant 0 : index
    %3 = vector.load %arg3[%c0_4, %c0_5] : memref<1x128xf32, #tpu.memory_space<vmem>>, vector<1x128xf32>
    %cst = arith.constant dense<0.000000e+00> : vector<16xf32>
    %4 = vector.multi_reduction <add>, %1, %cst [1] : vector<16x128xf32> to vector<16xf32>
    %5 = vector.shape_cast %4 : vector<16xf32> to vector<16x1xf32>
    %cst_6 = arith.constant 1.280000e+02 : f32
    %6 = vector.broadcast %cst_6 : f32 to vector<16x1xf32>
    %7 = arith.divf %5, %6 : vector<16x1xf32>
    %8 = vector.broadcast %7 : vector<16x1xf32> to vector<16x128xf32>
    %9 = arith.subf %1, %8 : vector<16x128xf32>
    %10 = arith.mulf %9, %9 : vector<16x128xf32>
    %cst_7 = arith.constant dense<0.000000e+00> : vector<16xf32>
    %11 = vector.multi_reduction <add>, %10, %cst_7 [1] : vector<16x128xf32> to vector<16xf32>
    %12 = vector.shape_cast %11 : vector<16xf32> to vector<16x1xf32>
    %cst_8 = arith.constant 1.280000e+02 : f32
    %13 = vector.broadcast %cst_8 : f32 to vector<16x1xf32>
    %14 = arith.divf %12, %13 : vector<16x1xf32>
    %cst_9 = arith.constant 9.99999974E-6 : f32
    %15 = vector.broadcast %cst_9 : f32 to vector<16x1xf32>
    %16 = arith.addf %14, %15 : vector<16x1xf32>
    %17 = math.rsqrt %16 : vector<16x1xf32>
    %18 = vector.broadcast %17 : vector<16x1xf32> to vector<16x128xf32>
    %19 = arith.mulf %9, %18 : vector<16x128xf32>
    %20 = vector.broadcast %2 : vector<1x128xf32> to vector<16x128xf32>
    %21 = arith.mulf %19, %20 : vector<16x128xf32>
    %22 = vector.broadcast %3 : vector<1x128xf32> to vector<16x128xf32>
    %23 = arith.addf %21, %22 : vector<16x128xf32>
    %c0_10 = arith.constant 0 : index
    %c0_11 = arith.constant 0 : index
    %24 = vector.load %arg4[%c0_10, %c0_11] : memref<128x384xf32, #tpu.memory_space<vmem>>, vector<128x384xf32>
    %cst_12 = arith.constant dense<0.000000e+00> : vector<16x384xf32>
    %25 = tpu.matmul %23, %24, %cst_12 {dimension_numbers = #tpu.dot_dimension_numbers<[1], [0], [0], [1], [0, 0, 1, 1], [], []>} : vector<16x128xf32>, vector<128x384xf32>, vector<16x384xf32> -> vector<16x384xf32>
    %c0_13 = arith.constant 0 : index
    %c0_14 = arith.constant 0 : index
    %26 = vector.load %arg5[%c0_13, %c0_14] : memref<1x384xf32, #tpu.memory_space<vmem>>, vector<1x384xf32>
    %27 = vector.broadcast %26 : vector<1x384xf32> to vector<16x384xf32>
    %28 = arith.addf %25, %27 : vector<16x384xf32>
    %29 = vector.extract_strided_slice %28 {offsets = [0, 0], sizes = [16, 128], strides = [1, 1]} : vector<16x384xf32> to vector<16x128xf32>
    %30 = vector.shape_cast %29 : vector<16x128xf32> to vector<16x4x32xf32>
    %31 = tpu.transpose %30, [1, 0, 2] : vector<16x4x32xf32> -> vector<4x16x32xf32>
    %32 = vector.extract_strided_slice %28 {offsets = [0, 128], sizes = [16, 128], strides = [1, 1]} : vector<16x384xf32> to vector<16x128xf32>
    %33 = vector.shape_cast %32 : vector<16x128xf32> to vector<16x4x32xf32>
    %34 = tpu.transpose %33, [1, 0, 2] : vector<16x4x32xf32> -> vector<4x16x32xf32>
    %35 = vector.extract_strided_slice %28 {offsets = [0, 256], sizes = [16, 128], strides = [1, 1]} : vector<16x384xf32> to vector<16x128xf32>
    %36 = vector.shape_cast %35 : vector<16x128xf32> to vector<16x4x32xf32>
    %37 = tpu.transpose %36, [1, 0, 2] : vector<16x4x32xf32> -> vector<4x16x32xf32>
    "tpu.trace_start"() <{level = 10 : i32, message = "hqd,hkd->hqk"}> : () -> ()
    %cst_15 = arith.constant dense<0.000000e+00> : vector<4x16x16xf32>
    %38 = tpu.matmul %31, %34, %cst_15 {dimension_numbers = #tpu.dot_dimension_numbers<[2], [2], [1], [1], [0, 0, 0, 1, 1, 1], [0], [0]>} : vector<4x16x32xf32>, vector<4x16x32xf32>, vector<4x16x16xf32> -> vector<4x16x16xf32>
    "tpu.trace_stop"() : () -> ()
    %39 = tpu.iota {dimensions = array<i32: 2>} : vector<1x1x16xi32>
    %c8_i32 = arith.constant 8 : i32
    %40 = vector.broadcast %c8_i32 : i32 to vector<1x1x16xi32>
    %41 = arith.cmpi slt, %39, %40 : vector<1x1x16xi32>
    %cst_16 = arith.constant -1.000000e+30 : f32
    %42 = vector.shape_cast %41 : vector<1x1x16xi1> to vector<1x1x16xi1>
    %43 = vector.broadcast %42 : vector<1x1x16xi1> to vector<4x16x16xi1>
    %44 = vector.broadcast %cst_16 : f32 to vector<4x16x16xf32>
    %45 = arith.select %43, %38, %44 : vector<4x16x16xi1>, vector<4x16x16xf32>
    %cst_17 = arith.constant dense<0xFF800000> : vector<4x16xf32>
    %46 = vector.multi_reduction <maximumf>, %45, %cst_17 [2] : vector<4x16x16xf32> to vector<4x16xf32>
    %47 = vector.shape_cast %46 : vector<4x16xf32> to vector<4x16x1xf32>
    %48 = vector.broadcast %47 : vector<4x16x1xf32> to vector<4x16x16xf32>
    %49 = arith.subf %45, %48 : vector<4x16x16xf32>
    %50 = math.exp %49 : vector<4x16x16xf32>
    %cst_18 = arith.constant dense<0.000000e+00> : vector<4x16xf32>
    %51 = vector.multi_reduction <add>, %50, %cst_18 [2] : vector<4x16x16xf32> to vector<4x16xf32>
    %52 = vector.shape_cast %51 : vector<4x16xf32> to vector<4x16x1xf32>
    %53 = tpu.reciprocal %52 {approx = true} : vector<4x16x1xf32> -> vector<4x16x1xf32>
    %54 = vector.broadcast %53 : vector<4x16x1xf32> to vector<4x16x16xf32>
    %55 = arith.mulf %50, %54 : vector<4x16x16xf32>
    "tpu.trace_start"() <{level = 10 : i32, message = "hqk,hkd->hqd"}> : () -> ()
    %cst_19 = arith.constant dense<0.000000e+00> : vector<4x16x32xf32>
    %56 = tpu.matmul %55, %37, %cst_19 {dimension_numbers = #tpu.dot_dimension_numbers<[2], [1], [1], [2], [0, 0, 0, 1, 1, 2], [0], [0]>} : vector<4x16x16xf32>, vector<4x16x32xf32>, vector<4x16x32xf32> -> vector<4x16x32xf32>
    "tpu.trace_stop"() : () -> ()
    %57 = tpu.transpose %56, [1, 0, 2] : vector<4x16x32xf32> -> vector<16x4x32xf32>
    %58 = vector.shape_cast %57 : vector<16x4x32xf32> to vector<16x128xf32>
    %c0_20 = arith.constant 0 : index
    %c0_21 = arith.constant 0 : index
    %59 = vector.load %arg6[%c0_20, %c0_21] : memref<128x128xf32, #tpu.memory_space<vmem>>, vector<128x128xf32>
    %cst_22 = arith.constant dense<0.000000e+00> : vector<16x128xf32>
    %60 = tpu.matmul %58, %59, %cst_22 {dimension_numbers = #tpu.dot_dimension_numbers<[1], [0], [0], [1], [0, 0, 1, 1], [], []>} : vector<16x128xf32>, vector<128x128xf32>, vector<16x128xf32> -> vector<16x128xf32>
    %c0_23 = arith.constant 0 : index
    %c0_24 = arith.constant 0 : index
    %61 = vector.load %arg7[%c0_23, %c0_24] : memref<1x128xf32, #tpu.memory_space<vmem>>, vector<1x128xf32>
    %62 = vector.broadcast %61 : vector<1x128xf32> to vector<16x128xf32>
    %63 = arith.addf %60, %62 : vector<16x128xf32>
    %64 = arith.addf %1, %63 : vector<16x128xf32>
    %c0_25 = arith.constant 0 : index
    %c0_26 = arith.constant 0 : index
    %65 = vector.load %arg8[%c0_25, %c0_26] : memref<1x128xf32, #tpu.memory_space<vmem>>, vector<1x128xf32>
    %c0_27 = arith.constant 0 : index
    %c0_28 = arith.constant 0 : index
    %66 = vector.load %arg9[%c0_27, %c0_28] : memref<1x128xf32, #tpu.memory_space<vmem>>, vector<1x128xf32>
    %cst_29 = arith.constant dense<0.000000e+00> : vector<16xf32>
    %67 = vector.multi_reduction <add>, %64, %cst_29 [1] : vector<16x128xf32> to vector<16xf32>
    %68 = vector.shape_cast %67 : vector<16xf32> to vector<16x1xf32>
    %cst_30 = arith.constant 1.280000e+02 : f32
    %69 = vector.broadcast %cst_30 : f32 to vector<16x1xf32>
    %70 = arith.divf %68, %69 : vector<16x1xf32>
    %71 = vector.broadcast %70 : vector<16x1xf32> to vector<16x128xf32>
    %72 = arith.subf %64, %71 : vector<16x128xf32>
    %73 = arith.mulf %72, %72 : vector<16x128xf32>
    %cst_31 = arith.constant dense<0.000000e+00> : vector<16xf32>
    %74 = vector.multi_reduction <add>, %73, %cst_31 [1] : vector<16x128xf32> to vector<16xf32>
    %75 = vector.shape_cast %74 : vector<16xf32> to vector<16x1xf32>
    %cst_32 = arith.constant 1.280000e+02 : f32
    %76 = vector.broadcast %cst_32 : f32 to vector<16x1xf32>
    %77 = arith.divf %75, %76 : vector<16x1xf32>
    %cst_33 = arith.constant 9.99999974E-6 : f32
    %78 = vector.broadcast %cst_33 : f32 to vector<16x1xf32>
    %79 = arith.addf %77, %78 : vector<16x1xf32>
    %80 = math.rsqrt %79 : vector<16x1xf32>
    %81 = vector.broadcast %80 : vector<16x1xf32> to vector<16x128xf32>
    %82 = arith.mulf %72, %81 : vector<16x128xf32>
    %83 = vector.broadcast %65 : vector<1x128xf32> to vector<16x128xf32>
    %84 = arith.mulf %82, %83 : vector<16x128xf32>
    %85 = vector.broadcast %66 : vector<1x128xf32> to vector<16x128xf32>
    %86 = arith.addf %84, %85 : vector<16x128xf32>
    %c0_34 = arith.constant 0 : index
    %c0_35 = arith.constant 0 : index
    %87 = vector.load %arg10[%c0_34, %c0_35] : memref<128x512xf32, #tpu.memory_space<vmem>>, vector<128x512xf32>
    %cst_36 = arith.constant dense<0.000000e+00> : vector<16x512xf32>
    %88 = tpu.matmul %86, %87, %cst_36 {dimension_numbers = #tpu.dot_dimension_numbers<[1], [0], [0], [1], [0, 0, 1, 1], [], []>} : vector<16x128xf32>, vector<128x512xf32>, vector<16x512xf32> -> vector<16x512xf32>
    %c0_37 = arith.constant 0 : index
    %c0_38 = arith.constant 0 : index
    %89 = vector.load %arg11[%c0_37, %c0_38] : memref<1x512xf32, #tpu.memory_space<vmem>>, vector<1x512xf32>
    %90 = vector.broadcast %89 : vector<1x512xf32> to vector<16x512xf32>
    %91 = arith.addf %88, %90 : vector<16x512xf32>
    %cst_39 = arith.constant 1.702000e+00 : f32
    %92 = vector.broadcast %cst_39 : f32 to vector<16x512xf32>
    %93 = arith.mulf %92, %91 : vector<16x512xf32>
    %94 = arith.negf %93 : vector<16x512xf32>
    %95 = math.exp %94 : vector<16x512xf32>
    %cst_40 = arith.constant 1.000000e+00 : f32
    %96 = vector.broadcast %cst_40 : f32 to vector<16x512xf32>
    %97 = arith.addf %96, %95 : vector<16x512xf32>
    %98 = arith.divf %96, %97 : vector<16x512xf32>
    %99 = arith.mulf %91, %98 : vector<16x512xf32>
    %c0_41 = arith.constant 0 : index
    %c0_42 = arith.constant 0 : index
    %100 = vector.load %arg12[%c0_41, %c0_42] : memref<512x128xf32, #tpu.memory_space<vmem>>, vector<512x128xf32>
    %cst_43 = arith.constant dense<0.000000e+00> : vector<16x128xf32>
    %101 = tpu.matmul %99, %100, %cst_43 {dimension_numbers = #tpu.dot_dimension_numbers<[1], [0], [0], [1], [0, 0, 1, 1], [], []>} : vector<16x512xf32>, vector<512x128xf32>, vector<16x128xf32> -> vector<16x128xf32>
    %c0_44 = arith.constant 0 : index
    %c0_45 = arith.constant 0 : index
    %102 = vector.load %arg13[%c0_44, %c0_45] : memref<1x128xf32, #tpu.memory_space<vmem>>, vector<1x128xf32>
    %103 = vector.broadcast %102 : vector<1x128xf32> to vector<16x128xf32>
    %104 = arith.addf %101, %103 : vector<16x128xf32>
    %105 = arith.addf %64, %104 : vector<16x128xf32>
    %106 = vector.shape_cast %105 : vector<16x128xf32> to vector<1x16x128xf32>
    %c0_46 = arith.constant 0 : index
    %c0_47 = arith.constant 0 : index
    %c0_48 = arith.constant 0 : index
    %107 = vector.load %arg14[%c0_46, %c0_47, %c0_48] : memref<1x16x128xf32, #tpu.memory_space<vmem>>, vector<1x16x128xf32>
    tpu.vector_store %arg14[%c0_46, %c0_47, %c0_48], %106 {strides = array<i32>} : memref<1x16x128xf32, #tpu.memory_space<vmem>>, vector<1x16x128xf32>,
    return
  }
  func.func @transform_0(%arg0: i32) -> (i32, i32, i32) {
    %c0_i32 = arith.constant 0 : i32
    %c0_i32_0 = arith.constant 0 : i32
    %c0_i32_1 = arith.constant 0 : i32
    return %arg0, %c0_i32, %c0_i32_0 : i32, i32, i32
  }
  func.func @transform_1(%arg0: i32) -> (i32, i32) {
    %c0_i32 = arith.constant 0 : i32
    %c0_i32_0 = arith.constant 0 : i32
    %c0_i32_1 = arith.constant 0 : i32
    return %c0_i32, %c0_i32_0 : i32, i32
  }
  func.func @transform_2(%arg0: i32) -> (i32, i32) {
    %c0_i32 = arith.constant 0 : i32
    %c0_i32_0 = arith.constant 0 : i32
    %c0_i32_1 = arith.constant 0 : i32
    return %c0_i32, %c0_i32_0 : i32, i32
  }
  func.func @transform_3(%arg0: i32) -> (i32, i32) {
    %c0_i32 = arith.constant 0 : i32
    %c0_i32_0 = arith.constant 0 : i32
    %c0_i32_1 = arith.constant 0 : i32
    return %c0_i32, %c0_i32_0 : i32, i32
  }
  func.func @transform_4(%arg0: i32) -> (i32, i32) {
    %c0_i32 = arith.constant 0 : i32
    %c0_i32_0 = arith.constant 0 : i32
    %c0_i32_1 = arith.constant 0 : i32
    return %c0_i32, %c0_i32_0 : i32, i32
  }
  func.func @transform_5(%arg0: i32) -> (i32, i32) {
    %c0_i32 = arith.constant 0 : i32
    %c0_i32_0 = arith.constant 0 : i32
    %c0_i32_1 = arith.constant 0 : i32
    return %c0_i32, %c0_i32_0 : i32, i32
  }
  func.func @transform_6(%arg0: i32) -> (i32, i32) {
    %c0_i32 = arith.constant 0 : i32
    %c0_i32_0 = arith.constant 0 : i32
    %c0_i32_1 = arith.constant 0 : i32
    return %c0_i32, %c0_i32_0 : i32, i32
  }
  func.func @transform_7(%arg0: i32) -> (i32, i32) {
    %c0_i32 = arith.constant 0 : i32
    %c0_i32_0 = arith.constant 0 : i32
    %c0_i32_1 = arith.constant 0 : i32
    return %c0_i32, %c0_i32_0 : i32, i32
  }
  func.func @transform_8(%arg0: i32) -> (i32, i32) {
    %c0_i32 = arith.constant 0 : i32
    %c0_i32_0 = arith.constant 0 : i32
    %c0_i32_1 = arith.constant 0 : i32
    return %c0_i32, %c0_i32_0 : i32, i32
  }
  func.func @transform_9(%arg0: i32) -> (i32, i32) {
    %c0_i32 = arith.constant 0 : i32
    %c0_i32_0 = arith.constant 0 : i32
    %c0_i32_1 = arith.constant 0 : i32
    return %c0_i32, %c0_i32_0 : i32, i32
  }
  func.func @transform_10(%arg0: i32) -> (i32, i32) {
    %c0_i32 = arith.constant 0 : i32
    %c0_i32_0 = arith.constant 0 : i32
    %c0_i32_1 = arith.constant 0 : i32
    return %c0_i32, %c0_i32_0 : i32, i32
  }
  func.func @transform_11(%arg0: i32) -> (i32, i32) {
    %c0_i32 = arith.constant 0 : i32
    %c0_i32_0 = arith.constant 0 : i32
    %c0_i32_1 = arith.constant 0 : i32
    return %c0_i32, %c0_i32_0 : i32, i32
  }
  func.func @transform_12(%arg0: i32) -> (i32, i32) {
    %c0_i32 = arith.constant 0 : i32
    %c0_i32_0 = arith.constant 0 : i32
    %c0_i32_1 = arith.constant 0 : i32
    return %c0_i32, %c0_i32_0 : i32, i32
  }
  func.func @transform_13(%arg0: i32) -> (i32, i32, i32) {
    %c0_i32 = arith.constant 0 : i32
    %c0_i32_0 = arith.constant 0 : i32
    %c0_i32_1 = arith.constant 0 : i32
    return %arg0, %c0_i32, %c0_i32_0 : i32, i32, i32
  }
}

module attributes {stable_mosaic.version = 11 : i64} {
  func.func @_residual_block_kernel(%arg0: i32, %arg1: memref<1x16x128xf32, #tpu.memory_space<vmem>>, %arg2: memref<1x128xf32, #tpu.memory_space<vmem>>, %arg3: memref<1x128xf32, #tpu.memory_space<vmem>>, %arg4: memref<128x384xf32, #tpu.memory_space<vmem>>, %arg5: memref<1x384xf32, #tpu.memory_space<vmem>>, %arg6: memref<128x128xf32, #tpu.memory_space<vmem>>, %arg7: memref<1x128xf32, #tpu.memory_space<vmem>>, %arg8: memref<1x128xf32, #tpu.memory_space<vmem>>, %arg9: memref<1x128xf32, #tpu.memory_space<vmem>>, %arg10: memref<128x512xf32, #tpu.memory_space<vmem>>, %arg11: memref<1x512xf32, #tpu.memory_space<vmem>>, %arg12: memref<512x128xf32, #tpu.memory_space<vmem>>, %arg13: memref<1x128xf32, #tpu.memory_space<vmem>>, %arg14: memref<1x16x128xf32, #tpu.memory_space<vmem>>) attributes {dimension_semantics = [#tpu.dimension_semantics<parallel>], iteration_bounds = array<i64: 2>, scalar_prefetch = 0 : i64, scratch_operands = 0 : i64, tpu.core_type = #tpu.core_type<tc>, window_params = [{transform_indices = @transform_0, window_bounds = array<i64: 1, 16, 128>}, {pipeline_mode = #tpu.pipeline_mode<synchronous>, transform_indices = @transform_1, window_bounds = array<i64: 1, 128>}, {pipeline_mode = #tpu.pipeline_mode<synchronous>, transform_indices = @transform_2, window_bounds = array<i64: 1, 128>}, {pipeline_mode = #tpu.pipeline_mode<synchronous>, transform_indices = @transform_3, window_bounds = array<i64: 128, 384>}, {pipeline_mode = #tpu.pipeline_mode<synchronous>, transform_indices = @transform_4, window_bounds = array<i64: 1, 384>}, {pipeline_mode = #tpu.pipeline_mode<synchronous>, transform_indices = @transform_5, window_bounds = array<i64: 128, 128>}, {pipeline_mode = #tpu.pipeline_mode<synchronous>, transform_indices = @transform_6, window_bounds = array<i64: 1, 128>}, {pipeline_mode = #tpu.pipeline_mode<synchronous>, transform_indices = @transform_7, window_bounds = array<i64: 1, 128>}, {pipeline_mode = #tpu.pipeline_mode<synchronous>, transform_indices = @transform_8, window_bounds = array<i64: 1, 128>}, {pipeline_mode = #tpu.pipeline_mode<synchronous>, transform_indices = @transform_9, window_bounds = array<i64: 128, 512>}, {pipeline_mode = #tpu.pipeline_mode<synchronous>, transform_indices = @transform_10, window_bounds = array<i64: 1, 512>}, {pipeline_mode = #tpu.pipeline_mode<synchronous>, transform_indices = @transform_11, window_bounds = array<i64: 512, 128>}, {pipeline_mode = #tpu.pipeline_mode<synchronous>, transform_indices = @transform_12, window_bounds = array<i64: 1, 128>}, {transform_indices = @transform_13, window_bounds = array<i64: 1, 16, 128>}]} {
    %c0 = arith.constant 0 : index
    %c0_0 = arith.constant 0 : index
    %c0_1 = arith.constant 0 : index
    %0 = vector.load %arg1[%c0, %c0_0, %c0_1] : memref<1x16x128xf32, #tpu.memory_space<vmem>>, vector<1x16x128xf32>
    %1 = vector.shape_cast %0 : vector<1x16x128xf32> to vector<16x128xf32>
    %c0_2 = arith.constant 0 : index
    %c0_3 = arith.constant 0 : index
    %2 = vector.load %arg2[%c0_2, %c0_3] : memref<1x128xf32, #tpu.memory_space<vmem>>, vector<1x128xf32>
    %c0_4 = arith.constant 0 : index
    %c0_5 = arith.constant 0 : index
    %3 = vector.load %arg3[%c0_4, %c0_5] : memref<1x128xf32, #tpu.memory_space<vmem>>, vector<1x128xf32>
    %cst = arith.constant dense<0.000000e+00> : vector<16xf32>
    %4 = vector.multi_reduction <add>, %1, %cst [1] : vector<16x128xf32> to vector<16xf32>
    %5 = vector.shape_cast %4 : vector<16xf32> to vector<16x1xf32>
    %cst_6 = arith.constant 1.280000e+02 : f32
    %6 = vector.broadcast %cst_6 : f32 to vector<16x1xf32>
    %7 = arith.divf %5, %6 : vector<16x1xf32>
    %8 = vector.broadcast %7 : vector<16x1xf32> to vector<16x128xf32>
    %9 = arith.subf %1, %8 : vector<16x128xf32>
    %10 = arith.mulf %9, %9 : vector<16x128xf32>
    %cst_7 = arith.constant dense<0.000000e+00> : vector<16xf32>
    %11 = vector.multi_reduction <add>, %10, %cst_7 [1] : vector<16x128xf32> to vector<16xf32>
    %12 = vector.shape_cast %11 : vector<16xf32> to vector<16x1xf32>
    %cst_8 = arith.constant 1.280000e+02 : f32
    %13 = vector.broadcast %cst_8 : f32 to vector<16x1xf32>
    %14 = arith.divf %12, %13 : vector<16x1xf32>
    %cst_9 = arith.constant 9.99999974E-6 : f32
    %15 = vector.broadcast %cst_9 : f32 to vector<16x1xf32>
    %16 = arith.addf %14, %15 : vector<16x1xf32>
    %17 = math.rsqrt %16 : vector<16x1xf32>
    %18 = vector.broadcast %17 : vector<16x1xf32> to vector<16x128xf32>
    %19 = arith.mulf %9, %18 : vector<16x128xf32>
    %20 = vector.broadcast %2 : vector<1x128xf32> to vector<16x128xf32>
    %21 = arith.mulf %19, %20 : vector<16x128xf32>
    %22 = vector.broadcast %3 : vector<1x128xf32> to vector<16x128xf32>
    %23 = arith.addf %21, %22 : vector<16x128xf32>
    %c0_10 = arith.constant 0 : index
    %c0_11 = arith.constant 0 : index
    %24 = vector.load %arg4[%c0_10, %c0_11] : memref<128x384xf32, #tpu.memory_space<vmem>>, vector<128x384xf32>
    %cst_12 = arith.constant dense<0.000000e+00> : vector<16x384xf32>
    %25 = tpu.matmul %23, %24, %cst_12 {dimension_numbers = #tpu.dot_dimension_numbers<[1], [0], [0], [1], [0, 0, 1, 1], [], []>} : vector<16x128xf32>, vector<128x384xf32>, vector<16x384xf32> -> vector<16x384xf32>
    %c0_13 = arith.constant 0 : index
    %c0_14 = arith.constant 0 : index
    %26 = vector.load %arg5[%c0_13, %c0_14] : memref<1x384xf32, #tpu.memory_space<vmem>>, vector<1x384xf32>
    %27 = vector.broadcast %26 : vector<1x384xf32> to vector<16x384xf32>
    %28 = arith.addf %25, %27 : vector<16x384xf32>
    %29 = vector.extract_strided_slice %28 {offsets = [0, 0], sizes = [16, 128], strides = [1, 1]} : vector<16x384xf32> to vector<16x128xf32>
    %30 = vector.extract_strided_slice %29 {offsets = [0, 0], sizes = [16, 32], strides = [1, 1]} : vector<16x128xf32> to vector<16x32xf32>
    %31 = vector.extract_strided_slice %29 {offsets = [0, 32], sizes = [16, 32], strides = [1, 1]} : vector<16x128xf32> to vector<16x32xf32>
    %32 = vector.extract_strided_slice %29 {offsets = [0, 64], sizes = [16, 32], strides = [1, 1]} : vector<16x128xf32> to vector<16x32xf32>
    %33 = vector.extract_strided_slice %29 {offsets = [0, 96], sizes = [16, 32], strides = [1, 1]} : vector<16x128xf32> to vector<16x32xf32>
    %34 = vector.shape_cast %30 : vector<16x32xf32> to vector<1x16x32xf32>
    %35 = vector.shape_cast %31 : vector<16x32xf32> to vector<1x16x32xf32>
    %36 = vector.shape_cast %32 : vector<16x32xf32> to vector<1x16x32xf32>
    %37 = vector.shape_cast %33 : vector<16x32xf32> to vector<1x16x32xf32>
    %38 = tpu.concatenate %34, %35, %36, %37 in 0 : vector<1x16x32xf32>, vector<1x16x32xf32>, vector<1x16x32xf32>, vector<1x16x32xf32> -> vector<4x16x32xf32>
    %39 = vector.extract_strided_slice %28 {offsets = [0, 128], sizes = [16, 128], strides = [1, 1]} : vector<16x384xf32> to vector<16x128xf32>
    %40 = vector.extract_strided_slice %39 {offsets = [0, 0], sizes = [16, 32], strides = [1, 1]} : vector<16x128xf32> to vector<16x32xf32>
    %41 = vector.extract_strided_slice %39 {offsets = [0, 32], sizes = [16, 32], strides = [1, 1]} : vector<16x128xf32> to vector<16x32xf32>
    %42 = vector.extract_strided_slice %39 {offsets = [0, 64], sizes = [16, 32], strides = [1, 1]} : vector<16x128xf32> to vector<16x32xf32>
    %43 = vector.extract_strided_slice %39 {offsets = [0, 96], sizes = [16, 32], strides = [1, 1]} : vector<16x128xf32> to vector<16x32xf32>
    %44 = vector.shape_cast %40 : vector<16x32xf32> to vector<1x16x32xf32>
    %45 = vector.shape_cast %41 : vector<16x32xf32> to vector<1x16x32xf32>
    %46 = vector.shape_cast %42 : vector<16x32xf32> to vector<1x16x32xf32>
    %47 = vector.shape_cast %43 : vector<16x32xf32> to vector<1x16x32xf32>
    %48 = tpu.concatenate %44, %45, %46, %47 in 0 : vector<1x16x32xf32>, vector<1x16x32xf32>, vector<1x16x32xf32>, vector<1x16x32xf32> -> vector<4x16x32xf32>
    %49 = vector.extract_strided_slice %28 {offsets = [0, 256], sizes = [16, 128], strides = [1, 1]} : vector<16x384xf32> to vector<16x128xf32>
    %50 = vector.extract_strided_slice %49 {offsets = [0, 0], sizes = [16, 32], strides = [1, 1]} : vector<16x128xf32> to vector<16x32xf32>
    %51 = vector.extract_strided_slice %49 {offsets = [0, 32], sizes = [16, 32], strides = [1, 1]} : vector<16x128xf32> to vector<16x32xf32>
    %52 = vector.extract_strided_slice %49 {offsets = [0, 64], sizes = [16, 32], strides = [1, 1]} : vector<16x128xf32> to vector<16x32xf32>
    %53 = vector.extract_strided_slice %49 {offsets = [0, 96], sizes = [16, 32], strides = [1, 1]} : vector<16x128xf32> to vector<16x32xf32>
    %54 = vector.shape_cast %50 : vector<16x32xf32> to vector<1x16x32xf32>
    %55 = vector.shape_cast %51 : vector<16x32xf32> to vector<1x16x32xf32>
    %56 = vector.shape_cast %52 : vector<16x32xf32> to vector<1x16x32xf32>
    %57 = vector.shape_cast %53 : vector<16x32xf32> to vector<1x16x32xf32>
    %58 = tpu.concatenate %54, %55, %56, %57 in 0 : vector<1x16x32xf32>, vector<1x16x32xf32>, vector<1x16x32xf32>, vector<1x16x32xf32> -> vector<4x16x32xf32>
    "tpu.trace_start"() <{level = 10 : i32, message = "hqd,hkd->hqk"}> : () -> ()
    %cst_15 = arith.constant dense<0.000000e+00> : vector<4x16x16xf32>
    %59 = tpu.matmul %38, %48, %cst_15 {dimension_numbers = #tpu.dot_dimension_numbers<[2], [2], [1], [1], [0, 0, 0, 1, 1, 1], [0], [0]>} : vector<4x16x32xf32>, vector<4x16x32xf32>, vector<4x16x16xf32> -> vector<4x16x16xf32>
    "tpu.trace_stop"() : () -> ()
    %60 = tpu.iota {dimensions = array<i32: 2>} : vector<1x1x16xi32>
    %c8_i32 = arith.constant 8 : i32
    %61 = vector.broadcast %c8_i32 : i32 to vector<1x1x16xi32>
    %62 = arith.cmpi slt, %60, %61 : vector<1x1x16xi32>
    %cst_16 = arith.constant -1.000000e+30 : f32
    %63 = vector.shape_cast %62 : vector<1x1x16xi1> to vector<1x1x16xi1>
    %64 = vector.broadcast %63 : vector<1x1x16xi1> to vector<4x16x16xi1>
    %65 = vector.broadcast %cst_16 : f32 to vector<4x16x16xf32>
    %66 = arith.select %64, %59, %65 : vector<4x16x16xi1>, vector<4x16x16xf32>
    %cst_17 = arith.constant dense<0xFF800000> : vector<4x16xf32>
    %67 = vector.multi_reduction <maximumf>, %66, %cst_17 [2] : vector<4x16x16xf32> to vector<4x16xf32>
    %68 = vector.shape_cast %67 : vector<4x16xf32> to vector<4x16x1xf32>
    %69 = vector.broadcast %68 : vector<4x16x1xf32> to vector<4x16x16xf32>
    %70 = arith.subf %66, %69 : vector<4x16x16xf32>
    %71 = math.exp %70 : vector<4x16x16xf32>
    %cst_18 = arith.constant dense<0.000000e+00> : vector<4x16xf32>
    %72 = vector.multi_reduction <add>, %71, %cst_18 [2] : vector<4x16x16xf32> to vector<4x16xf32>
    %73 = vector.shape_cast %72 : vector<4x16xf32> to vector<4x16x1xf32>
    %74 = tpu.reciprocal %73 {approx = true} : vector<4x16x1xf32> -> vector<4x16x1xf32>
    %75 = vector.broadcast %74 : vector<4x16x1xf32> to vector<4x16x16xf32>
    %76 = arith.mulf %71, %75 : vector<4x16x16xf32>
    "tpu.trace_start"() <{level = 10 : i32, message = "hqk,hkd->hqd"}> : () -> ()
    %cst_19 = arith.constant dense<0.000000e+00> : vector<4x16x32xf32>
    %77 = tpu.matmul %76, %58, %cst_19 {dimension_numbers = #tpu.dot_dimension_numbers<[2], [1], [1], [2], [0, 0, 0, 1, 1, 2], [0], [0]>} : vector<4x16x16xf32>, vector<4x16x32xf32>, vector<4x16x32xf32> -> vector<4x16x32xf32>
    "tpu.trace_stop"() : () -> ()
    %78 = vector.extract_strided_slice %77 {offsets = [0, 0, 0], sizes = [1, 16, 32], strides = [1, 1, 1]} : vector<4x16x32xf32> to vector<1x16x32xf32>
    %79 = vector.shape_cast %78 : vector<1x16x32xf32> to vector<16x32xf32>
    %80 = vector.extract_strided_slice %77 {offsets = [1, 0, 0], sizes = [1, 16, 32], strides = [1, 1, 1]} : vector<4x16x32xf32> to vector<1x16x32xf32>
    %81 = vector.shape_cast %80 : vector<1x16x32xf32> to vector<16x32xf32>
    %82 = vector.extract_strided_slice %77 {offsets = [2, 0, 0], sizes = [1, 16, 32], strides = [1, 1, 1]} : vector<4x16x32xf32> to vector<1x16x32xf32>
    %83 = vector.shape_cast %82 : vector<1x16x32xf32> to vector<16x32xf32>
    %84 = vector.extract_strided_slice %77 {offsets = [3, 0, 0], sizes = [1, 16, 32], strides = [1, 1, 1]} : vector<4x16x32xf32> to vector<1x16x32xf32>
    %85 = vector.shape_cast %84 : vector<1x16x32xf32> to vector<16x32xf32>
    %86 = tpu.concatenate %79, %81, %83, %85 in 1 : vector<16x32xf32>, vector<16x32xf32>, vector<16x32xf32>, vector<16x32xf32> -> vector<16x128xf32>
    %c0_20 = arith.constant 0 : index
    %c0_21 = arith.constant 0 : index
    %87 = vector.load %arg6[%c0_20, %c0_21] : memref<128x128xf32, #tpu.memory_space<vmem>>, vector<128x128xf32>
    %cst_22 = arith.constant dense<0.000000e+00> : vector<16x128xf32>
    %88 = tpu.matmul %86, %87, %cst_22 {dimension_numbers = #tpu.dot_dimension_numbers<[1], [0], [0], [1], [0, 0, 1, 1], [], []>} : vector<16x128xf32>, vector<128x128xf32>, vector<16x128xf32> -> vector<16x128xf32>
    %c0_23 = arith.constant 0 : index
    %c0_24 = arith.constant 0 : index
    %89 = vector.load %arg7[%c0_23, %c0_24] : memref<1x128xf32, #tpu.memory_space<vmem>>, vector<1x128xf32>
    %90 = vector.broadcast %89 : vector<1x128xf32> to vector<16x128xf32>
    %91 = arith.addf %88, %90 : vector<16x128xf32>
    %92 = arith.addf %1, %91 : vector<16x128xf32>
    %c0_25 = arith.constant 0 : index
    %c0_26 = arith.constant 0 : index
    %93 = vector.load %arg8[%c0_25, %c0_26] : memref<1x128xf32, #tpu.memory_space<vmem>>, vector<1x128xf32>
    %c0_27 = arith.constant 0 : index
    %c0_28 = arith.constant 0 : index
    %94 = vector.load %arg9[%c0_27, %c0_28] : memref<1x128xf32, #tpu.memory_space<vmem>>, vector<1x128xf32>
    %cst_29 = arith.constant dense<0.000000e+00> : vector<16xf32>
    %95 = vector.multi_reduction <add>, %92, %cst_29 [1] : vector<16x128xf32> to vector<16xf32>
    %96 = vector.shape_cast %95 : vector<16xf32> to vector<16x1xf32>
    %cst_30 = arith.constant 1.280000e+02 : f32
    %97 = vector.broadcast %cst_30 : f32 to vector<16x1xf32>
    %98 = arith.divf %96, %97 : vector<16x1xf32>
    %99 = vector.broadcast %98 : vector<16x1xf32> to vector<16x128xf32>
    %100 = arith.subf %92, %99 : vector<16x128xf32>
    %101 = arith.mulf %100, %100 : vector<16x128xf32>
    %cst_31 = arith.constant dense<0.000000e+00> : vector<16xf32>
    %102 = vector.multi_reduction <add>, %101, %cst_31 [1] : vector<16x128xf32> to vector<16xf32>
    %103 = vector.shape_cast %102 : vector<16xf32> to vector<16x1xf32>
    %cst_32 = arith.constant 1.280000e+02 : f32
    %104 = vector.broadcast %cst_32 : f32 to vector<16x1xf32>
    %105 = arith.divf %103, %104 : vector<16x1xf32>
    %cst_33 = arith.constant 9.99999974E-6 : f32
    %106 = vector.broadcast %cst_33 : f32 to vector<16x1xf32>
    %107 = arith.addf %105, %106 : vector<16x1xf32>
    %108 = math.rsqrt %107 : vector<16x1xf32>
    %109 = vector.broadcast %108 : vector<16x1xf32> to vector<16x128xf32>
    %110 = arith.mulf %100, %109 : vector<16x128xf32>
    %111 = vector.broadcast %93 : vector<1x128xf32> to vector<16x128xf32>
    %112 = arith.mulf %110, %111 : vector<16x128xf32>
    %113 = vector.broadcast %94 : vector<1x128xf32> to vector<16x128xf32>
    %114 = arith.addf %112, %113 : vector<16x128xf32>
    %c0_34 = arith.constant 0 : index
    %c0_35 = arith.constant 0 : index
    %115 = vector.load %arg10[%c0_34, %c0_35] : memref<128x512xf32, #tpu.memory_space<vmem>>, vector<128x512xf32>
    %cst_36 = arith.constant dense<0.000000e+00> : vector<16x512xf32>
    %116 = tpu.matmul %114, %115, %cst_36 {dimension_numbers = #tpu.dot_dimension_numbers<[1], [0], [0], [1], [0, 0, 1, 1], [], []>} : vector<16x128xf32>, vector<128x512xf32>, vector<16x512xf32> -> vector<16x512xf32>
    %c0_37 = arith.constant 0 : index
    %c0_38 = arith.constant 0 : index
    %117 = vector.load %arg11[%c0_37, %c0_38] : memref<1x512xf32, #tpu.memory_space<vmem>>, vector<1x512xf32>
    %118 = vector.broadcast %117 : vector<1x512xf32> to vector<16x512xf32>
    %119 = arith.addf %116, %118 : vector<16x512xf32>
    %cst_39 = arith.constant 1.702000e+00 : f32
    %120 = vector.broadcast %cst_39 : f32 to vector<16x512xf32>
    %121 = arith.mulf %120, %119 : vector<16x512xf32>
    %122 = arith.negf %121 : vector<16x512xf32>
    %123 = math.exp %122 : vector<16x512xf32>
    %cst_40 = arith.constant 1.000000e+00 : f32
    %124 = vector.broadcast %cst_40 : f32 to vector<16x512xf32>
    %125 = arith.addf %124, %123 : vector<16x512xf32>
    %126 = arith.divf %124, %125 : vector<16x512xf32>
    %127 = arith.mulf %119, %126 : vector<16x512xf32>
    %c0_41 = arith.constant 0 : index
    %c0_42 = arith.constant 0 : index
    %128 = vector.load %arg12[%c0_41, %c0_42] : memref<512x128xf32, #tpu.memory_space<vmem>>, vector<512x128xf32>
    %cst_43 = arith.constant dense<0.000000e+00> : vector<16x128xf32>
    %129 = tpu.matmul %127, %128, %cst_43 {dimension_numbers = #tpu.dot_dimension_numbers<[1], [0], [0], [1], [0, 0, 1, 1], [], []>} : vector<16x512xf32>, vector<512x128xf32>, vector<16x128xf32> -> vector<16x128xf32>
    %c0_44 = arith.constant 0 : index
    %c0_45 = arith.constant 0 : index
    %130 = vector.load %arg13[%c0_44, %c0_45] : memref<1x128xf32, #tpu.memory_space<vmem>>, vector<1x128xf32>
    %131 = vector.broadcast %130 : vector<1x128xf32> to vector<16x128xf32>
    %132 = arith.addf %129, %131 : vector<16x128xf32>
    %133 = arith.addf %92, %132 : vector<16x128xf32>
    %134 = vector.shape_cast %133 : vector<16x128xf32> to vector<1x16x128xf32>
    %c0_46 = arith.constant 0 : index
    %c0_47 = arith.constant 0 : index
    %c0_48 = arith.constant 0 : index
    %135 = vector.load %arg14[%c0_46, %c0_47, %c0_48] : memref<1x16x128xf32, #tpu.memory_space<vmem>>, vector<1x16x128xf32>
    tpu.vector_store %arg14[%c0_46, %c0_47, %c0_48], %134 {strides = array<i32>} : memref<1x16x128xf32, #tpu.memory_space<vmem>>, vector<1x16x128xf32>,
    return
  }
  func.func @transform_0(%arg0: i32) -> (i32, i32, i32) {
    %c0_i32 = arith.constant 0 : i32
    %c0_i32_0 = arith.constant 0 : i32
    %c0_i32_1 = arith.constant 0 : i32
    return %arg0, %c0_i32, %c0_i32_0 : i32, i32, i32
  }
  func.func @transform_1(%arg0: i32) -> (i32, i32) {
    %c0_i32 = arith.constant 0 : i32
    %c0_i32_0 = arith.constant 0 : i32
    %c0_i32_1 = arith.constant 0 : i32
    return %c0_i32, %c0_i32_0 : i32, i32
  }
  func.func @transform_2(%arg0: i32) -> (i32, i32) {
    %c0_i32 = arith.constant 0 : i32
    %c0_i32_0 = arith.constant 0 : i32
    %c0_i32_1 = arith.constant 0 : i32
    return %c0_i32, %c0_i32_0 : i32, i32
  }
  func.func @transform_3(%arg0: i32) -> (i32, i32) {
    %c0_i32 = arith.constant 0 : i32
    %c0_i32_0 = arith.constant 0 : i32
    %c0_i32_1 = arith.constant 0 : i32
    return %c0_i32, %c0_i32_0 : i32, i32
  }
  func.func @transform_4(%arg0: i32) -> (i32, i32) {
    %c0_i32 = arith.constant 0 : i32
    %c0_i32_0 = arith.constant 0 : i32
    %c0_i32_1 = arith.constant 0 : i32
    return %c0_i32, %c0_i32_0 : i32, i32
  }
  func.func @transform_5(%arg0: i32) -> (i32, i32) {
    %c0_i32 = arith.constant 0 : i32
    %c0_i32_0 = arith.constant 0 : i32
    %c0_i32_1 = arith.constant 0 : i32
    return %c0_i32, %c0_i32_0 : i32, i32
  }
  func.func @transform_6(%arg0: i32) -> (i32, i32) {
    %c0_i32 = arith.constant 0 : i32
    %c0_i32_0 = arith.constant 0 : i32
    %c0_i32_1 = arith.constant 0 : i32
    return %c0_i32, %c0_i32_0 : i32, i32
  }
  func.func @transform_7(%arg0: i32) -> (i32, i32) {
    %c0_i32 = arith.constant 0 : i32
    %c0_i32_0 = arith.constant 0 : i32
    %c0_i32_1 = arith.constant 0 : i32
    return %c0_i32, %c0_i32_0 : i32, i32
  }
  func.func @transform_8(%arg0: i32) -> (i32, i32) {
    %c0_i32 = arith.constant 0 : i32
    %c0_i32_0 = arith.constant 0 : i32
    %c0_i32_1 = arith.constant 0 : i32
    return %c0_i32, %c0_i32_0 : i32, i32
  }
  func.func @transform_9(%arg0: i32) -> (i32, i32) {
    %c0_i32 = arith.constant 0 : i32
    %c0_i32_0 = arith.constant 0 : i32
    %c0_i32_1 = arith.constant 0 : i32
    return %c0_i32, %c0_i32_0 : i32, i32
  }
  func.func @transform_10(%arg0: i32) -> (i32, i32) {
    %c0_i32 = arith.constant 0 : i32
    %c0_i32_0 = arith.constant 0 : i32
    %c0_i32_1 = arith.constant 0 : i32
    return %c0_i32, %c0_i32_0 : i32, i32
  }
  func.func @transform_11(%arg0: i32) -> (i32, i32) {
    %c0_i32 = arith.constant 0 : i32
    %c0_i32_0 = arith.constant 0 : i32
    %c0_i32_1 = arith.constant 0 : i32
    return %c0_i32, %c0_i32_0 : i32, i32
  }
  func.func @transform_12(%arg0: i32) -> (i32, i32) {
    %c0_i32 = arith.constant 0 : i32
    %c0_i32_0 = arith.constant 0 : i32
    %c0_i32_1 = arith.constant 0 : i32
    return %c0_i32, %c0_i32_0 : i32, i32
  }
  func.func @transform_13(%arg0: i32) -> (i32, i32, i32) {
    %c0_i32 = arith.constant 0 : i32
    %c0_i32_0 = arith.constant 0 : i32
    %c0_i32_1 = arith.constant 0 : i32
    return %arg0, %c0_i32, %c0_i32_0 : i32, i32, i32
  }
}

</mosaic_0001>

<llo_original>
// kernel: tpu_custom_call.1
$region0: #{tpu_custom_call.1}
  #allocation0 [shape = 'u32[]', space=smem, size = 0x4, offset = 0x4, fixed_abs, tag = 'smem constant byte address 0x4 - core index']
  #allocation1 [shape = 'u32[72,128]{1,0:T(1,128)}', space=vmem, size = 0x9000, scoped, tag = 'internal scratch']
  %s0 = inlined_call_operand.hbm [shape: f32[2,16,128], index: 0, kind: input, shape index: {}]
  %s1 = inlined_call_operand.hbm [shape: f32[1,128], index: 1, kind: input, shape index: {}]
  %s2 = inlined_call_operand.hbm [shape: f32[1,128], index: 2, kind: input, shape index: {}]
  %s3 = inlined_call_operand.hbm [shape: f32[128,384], index: 3, kind: input, shape index: {}]
  %s4 = inlined_call_operand.vmem [shape: f32[1,384], index: 4, kind: input, shape index: {}]
  %s5 = inlined_call_operand.hbm [shape: f32[128,128], index: 5, kind: input, shape index: {}]
  %s6 = inlined_call_operand.hbm [shape: f32[1,128], index: 6, kind: input, shape index: {}]
  %s7 = inlined_call_operand.hbm [shape: f32[1,128], index: 7, kind: input, shape index: {}]
  %s8 = inlined_call_operand.hbm [shape: f32[1,128], index: 8, kind: input, shape index: {}]
  %s9 = inlined_call_operand.hbm [shape: f32[128,512], index: 9, kind: input, shape index: {}]
  %s10 = inlined_call_operand.vmem [shape: f32[1,512], index: 10, kind: input, shape index: {}]
  %s11 = inlined_call_operand.hbm [shape: f32[512,128], index: 11, kind: input, shape index: {}]
  %s12 = inlined_call_operand.vmem [shape: f32[1,128], index: 12, kind: input, shape index: {}]
  %s13 = inlined_call_operand.hbm [shape: f32[2,16,128], index: 13, kind: output, shape index: {}]
  %s14 = sld [smem:[#allocation0]]
  $region125: #{tpu_custom_call.1} parent=0
    _
  %s16 = ssub.s32 1, %s14
  %s17 = scalar_select 0, %s16, %s14
  $region1: #{tpu_custom_call.1} parent=0
    #allocation2 [shape = 'u8[16384]{0}', space=vmem, size = 0x4000, scoped, tag = 'input window, operand 0']
    #allocation3 [shape = 's32[2]{0}', space=sflag, size = 0x8, scoped, tag = 'scoped memory for tpu_custom_call.1']
    #allocation4 [shape = 's32[2]{0}', space=sflag, size = 0x8, scoped, tag = 'scoped memory for tpu_custom_call.1']
    #allocation5 [shape = 'u8[512]{0}', space=vmem, size = 0x400, scoped, tag = 'input window, operand 1, single buffered']
    #allocation6 [shape = 's32[1]{0}', space=sflag, size = 0x4, scoped, tag = 'scoped memory for tpu_custom_call.1']
    #allocation7 [shape = 'u8[512]{0}', space=vmem, size = 0x400, scoped, tag = 'input window, operand 2, single buffered']
    #allocation8 [shape = 'u8[196608]{0}', space=vmem, size = 0x30000, scoped, tag = 'input window, operand 3, single buffered']
    #allocation9 [shape = 's32[1]{0}', space=sflag, size = 0x4, scoped, tag = 'scoped memory for tpu_custom_call.1']
    #allocation10 [shape = 'u8[65536]{0}', space=vmem, size = 0x10000, scoped, tag = 'input window, operand 5, single buffered']
    #allocation11 [shape = 'u8[512]{0}', space=vmem, size = 0x400, scoped, tag = 'input window, operand 6, single buffered']
    #allocation12 [shape = 's32[1]{0}', space=sflag, size = 0x4, scoped, tag = 'scoped memory for tpu_custom_call.1']
    #allocation13 [shape = 'u8[512]{0}', space=vmem, size = 0x400, scoped, tag = 'input window, operand 7, single buffered']
    #allocation14 [shape = 'u8[512]{0}', space=vmem, size = 0x400, scoped, tag = 'input window, operand 8, single buffered']
    #allocation15 [shape = 's32[1]{0}', space=sflag, size = 0x4, scoped, tag = 'scoped memory for tpu_custom_call.1']
    #allocation16 [shape = 'u8[262144]{0}', space=vmem, size = 0x40000, scoped, tag = 'input window, operand 9, single buffered']
    #allocation17 [shape = 'u8[262144]{0}', space=vmem, size = 0x40000, scoped, tag = 'input window, operand 11, single buffered']
    #allocation18 [shape = 's32[1]{0}', space=sflag, size = 0x4, scoped, tag = 'scoped memory for tpu_custom_call.1']
    #allocation19 [shape = 'u8[16384]{0}', space=vmem, size = 0x4000, scoped, tag = 'output window, operand 0']
    %18 = vsyncpa [#allocation3], 0
    %s19 = scalar_lea.sflag [#allocation3], 1
    %20 = vsyncpa %s19, 0
    %21 = vsyncpa [#allocation6], 0
    %22 = vsyncpa [#allocation9], 0
    %23 = vsyncpa [#allocation12], 0
    %24 = vsyncpa [#allocation15], 0
    %25 = vsyncpa [#allocation18], 0
    %26 = vsyncpa [#allocation4], 0
    %s27 = scalar_lea.sflag [#allocation4], 1
    %28 = vsyncpa %s27, 0
    loop: start=0, step=1, limit=4
    $region2: #{tpu_custom_call.1} parent=1 // loop_pre_header
      _
    $region3: #{tpu_custom_call.1} parent=1 // loop_header
      %s30 = sphi 0, %s34
      %p31 = scmp.ge.s32.totalorder %s30, 4
      %s40 = sphi 0, %s42
      %s43 = sphi 0, %s40
      %s44 = sphi 0, %s43
      %s60 = sphi 0, %s44
      %s64 = sphi 0, %s64
      %s66 = sphi 0, %s64
      %s67 = sphi 0, %s66
      %s81 = sphi 0, %s67
      %s85 = sphi 0, %s85
      %s87 = sphi 0, %s85
      %s88 = sphi 0, %s87
      %s102 = sphi 0, %s88
      %s106 = sphi 0, %s106
      %s108 = sphi 0, %s106
      %s109 = sphi 0, %s108
      %s123 = sphi 0, %s109
      %s127 = sphi 0, %s127
      %s129 = sphi 0, %s127
      %s130 = sphi 0, %s129
      %s144 = sphi 0, %s130
      %s148 = sphi 0, %s148
      %s150 = sphi 0, %s148
      %s151 = sphi 0, %s150
      %s165 = sphi 0, %s151
      %s169 = sphi 0, %s169
      %s171 = sphi 0, %s169
      %s172 = sphi 0, %s171
      %s186 = sphi 0, %s172
      %s190 = sphi 0, %s190
      %s192 = sphi 0, %s190
      %s193 = sphi 0, %s192
      %s207 = sphi 0, %s193
      %s211 = sphi 0, %s211
      %s213 = sphi 0, %s211
      %s214 = sphi 0, %s213
      %s228 = sphi 0, %s214
      %s232 = sphi 0, %s232
      %s234 = sphi 0, %s232
      %s235 = sphi 0, %s234
      %s249 = sphi 0, %s235
      %s253 = sphi 0, %s253
      %s255 = sphi 0, %s253
      %s256 = sphi 0, %s255
      %s270 = sphi 0, %s256
      %s274 = sphi 0, %s274
      %s276 = sphi 0, %s274
      %s277 = sphi 0, %s276
      %s291 = sphi 0, %s277
      %s295 = sphi 0, %s295
      %s297 = sphi 0, %s295
      %s298 = sphi 0, %s297
      %s312 = sphi 0, %s298
      %s318 = sphi 0, %s320
      %s321 = sphi 0, %s318
      %s322 = sphi 0, %s321
      %s338 = sphi 0, %s322
    $region4: #{tpu_custom_call.1} parent=1 // loop_header_branch
      %33 = sbr.rel (%p31) target = $region8
    $region5: #{tpu_custom_call.1} parent=1 // loop_body
      %s35 = ssub.s32 %s30, 1
      %s36 = ssub.s32 %s30, 2
      %s37 = sadd.s32 %s30, 1
      %s38 = ssub.s32 %s30, %s37
      %p39 = scmp.eq.s32.totalorder %s38, 0
      %s41 = sadd.s32 %s40, 1
      %s42 = scalar_select %p39, %s40, %s41
      %p45 = pneg %p39
      %p46 = scmp.eq.s32.totalorder %s30, 1
      %p47 = por %p45, %p46
      %p48 = scmp.ne.s32.totalorder %s40, %s43
      %p49 = scmp.eq.s32.totalorder %s30, 0
      %p50 = por %p48, %p49
      %p51 = scmp.ne.s32.totalorder %s40, %s43
      %p52 = scmp.eq.s32.totalorder %s35, 1
      %p53 = por %p51, %p52
      %p54 = scmp.ne.s32.totalorder %s43, %s44
      %p55 = scmp.eq.s32.totalorder %s35, 0
      %p56 = por %p54, %p55
      %p57 = scmp.ne.s32.totalorder %s43, %s44
      %p58 = scmp.eq.s32.totalorder %s36, 1
      %p59 = por %p57, %p58
      %p61 = scmp.ne.s32.totalorder %s44, %s60
      %p62 = scmp.eq.s32.totalorder %s36, 0
      %p63 = por %p61, %p62
      %s65 = sadd.s32 %s64, 1
      %p68 = scmp.eq.s32.totalorder %s30, 1
      %p69 = scmp.ne.s32.totalorder %s64, %s66
      %p70 = scmp.eq.s32.totalorder %s30, 0
      %p71 = por %p69, %p70
      %p72 = scmp.ne.s32.totalorder %s64, %s66
      %p73 = scmp.eq.s32.totalorder %s35, 1
      %p74 = por %p72, %p73
      %p75 = scmp.ne.s32.totalorder %s66, %s67
      %p76 = scmp.eq.s32.totalorder %s35, 0
      %p77 = por %p75, %p76
      %p78 = scmp.ne.s32.totalorder %s66, %s67
      %p79 = scmp.eq.s32.totalorder %s36, 1
      %p80 = por %p78, %p79
      %p82 = scmp.ne.s32.totalorder %s67, %s81
      %p83 = scmp.eq.s32.totalorder %s36, 0
      %p84 = por %p82, %p83
      %s86 = sadd.s32 %s85, 1
      %p89 = scmp.eq.s32.totalorder %s30, 1
      %p90 = scmp.ne.s32.totalorder %s85, %s87
      %p91 = scmp.eq.s32.totalorder %s30, 0
      %p92 = por %p90, %p91
      %p93 = scmp.ne.s32.totalorder %s85, %s87
      %p94 = scmp.eq.s32.totalorder %s35, 1
      %p95 = por %p93, %p94
      %p96 = scmp.ne.s32.totalorder %s87, %s88
      %p97 = scmp.eq.s32.totalorder %s35, 0
      %p98 = por %p96, %p97
      %p99 = scmp.ne.s32.totalorder %s87, %s88
      %p100 = scmp.eq.s32.totalorder %s36, 1
      %p101 = por %p99, %p100
      %p103 = scmp.ne.s32.totalorder %s88, %s102
      %p104 = scmp.eq.s32.totalorder %s36, 0
      %p105 = por %p103, %p104
      %s107 = sadd.s32 %s106, 1
      %p110 = scmp.eq.s32.totalorder %s30, 1
      %p111 = scmp.ne.s32.totalorder %s106, %s108
      %p112 = scmp.eq.s32.totalorder %s30, 0
      %p113 = por %p111, %p112
      %p114 = scmp.ne.s32.totalorder %s106, %s108
      %p115 = scmp.eq.s32.totalorder %s35, 1
      %p116 = por %p114, %p115
      %p117 = scmp.ne.s32.totalorder %s108, %s109
      %p118 = scmp.eq.s32.totalorder %s35, 0
      %p119 = por %p117, %p118
      %p120 = scmp.ne.s32.totalorder %s108, %s109
      %p121 = scmp.eq.s32.totalorder %s36, 1
      %p122 = por %p120, %p121
      %p124 = scmp.ne.s32.totalorder %s109, %s123
      %p125 = scmp.eq.s32.totalorder %s36, 0
      %p126 = por %p124, %p125
      %s128 = sadd.s32 %s127, 1
      %p131 = scmp.eq.s32.totalorder %s30, 1
      %p132 = scmp.ne.s32.totalorder %s127, %s129
      %p133 = scmp.eq.s32.totalorder %s30, 0
      %p134 = por %p132, %p133
      %p135 = scmp.ne.s32.totalorder %s127, %s129
      %p136 = scmp.eq.s32.totalorder %s35, 1
      %p137 = por %p135, %p136
      %p138 = scmp.ne.s32.totalorder %s129, %s130
      %p139 = scmp.eq.s32.totalorder %s35, 0
      %p140 = por %p138, %p139
      %p141 = scmp.ne.s32.totalorder %s129, %s130
      %p142 = scmp.eq.s32.totalorder %s36, 1
      %p143 = por %p141, %p142
      %p145 = scmp.ne.s32.totalorder %s130, %s144
      %p146 = scmp.eq.s32.totalorder %s36, 0
      %p147 = por %p145, %p146
      %s149 = sadd.s32 %s148, 1
      %p152 = scmp.eq.s32.totalorder %s30, 1
      %p153 = scmp.ne.s32.totalorder %s148, %s150
      %p154 = scmp.eq.s32.totalorder %s30, 0
      %p155 = por %p153, %p154
      %p156 = scmp.ne.s32.totalorder %s148, %s150
      %p157 = scmp.eq.s32.totalorder %s35, 1
      %p158 = por %p156, %p157
      %p159 = scmp.ne.s32.totalorder %s150, %s151
      %p160 = scmp.eq.s32.totalorder %s35, 0
      %p161 = por %p159, %p160
      %p162 = scmp.ne.s32.totalorder %s150, %s151
      %p163 = scmp.eq.s32.totalorder %s36, 1
      %p164 = por %p162, %p163
      %p166 = scmp.ne.s32.totalorder %s151, %s165
      %p167 = scmp.eq.s32.totalorder %s36, 0
      %p168 = por %p166, %p167
      %s170 = sadd.s32 %s169, 1
      %p173 = scmp.eq.s32.totalorder %s30, 1
      %p174 = scmp.ne.s32.totalorder %s169, %s171
      %p175 = scmp.eq.s32.totalorder %s30, 0
      %p176 = por %p174, %p175
      %p177 = scmp.ne.s32.totalorder %s169, %s171
      %p178 = scmp.eq.s32.totalorder %s35, 1
      %p179 = por %p177, %p178
      %p180 = scmp.ne.s32.totalorder %s171, %s172
      %p181 = scmp.eq.s32.totalorder %s35, 0
      %p182 = por %p180, %p181
      %p183 = scmp.ne.s32.totalorder %s171, %s172
      %p184 = scmp.eq.s32.totalorder %s36, 1
      %p185 = por %p183, %p184
      %p187 = scmp.ne.s32.totalorder %s172, %s186
      %p188 = scmp.eq.s32.totalorder %s36, 0
      %p189 = por %p187, %p188
      %s191 = sadd.s32 %s190, 1
      %p194 = scmp.eq.s32.totalorder %s30, 1
      %p195 = scmp.ne.s32.totalorder %s190, %s192
      %p196 = scmp.eq.s32.totalorder %s30, 0
      %p197 = por %p195, %p196
      %p198 = scmp.ne.s32.totalorder %s190, %s192
      %p199 = scmp.eq.s32.totalorder %s35, 1
      %p200 = por %p198, %p199
      %p201 = scmp.ne.s32.totalorder %s192, %s193
      %p202 = scmp.eq.s32.totalorder %s35, 0
      %p203 = por %p201, %p202
      %p204 = scmp.ne.s32.totalorder %s192, %s193
      %p205 = scmp.eq.s32.totalorder %s36, 1
      %p206 = por %p204, %p205
      %p208 = scmp.ne.s32.totalorder %s193, %s207
      %p209 = scmp.eq.s32.totalorder %s36, 0
      %p210 = por %p208, %p209
      %s212 = sadd.s32 %s211, 1
      %p215 = scmp.eq.s32.totalorder %s30, 1
      %p216 = scmp.ne.s32.totalorder %s211, %s213
      %p217 = scmp.eq.s32.totalorder %s30, 0
      %p218 = por %p216, %p217
      %p219 = scmp.ne.s32.totalorder %s211, %s213
      %p220 = scmp.eq.s32.totalorder %s35, 1
      %p221 = por %p219, %p220
      %p222 = scmp.ne.s32.totalorder %s213, %s214
      %p223 = scmp.eq.s32.totalorder %s35, 0
      %p224 = por %p222, %p223
      %p225 = scmp.ne.s32.totalorder %s213, %s214
      %p226 = scmp.eq.s32.totalorder %s36, 1
      %p227 = por %p225, %p226
      %p229 = scmp.ne.s32.totalorder %s214, %s228
      %p230 = scmp.eq.s32.totalorder %s36, 0
      %p231 = por %p229, %p230
      %s233 = sadd.s32 %s232, 1
      %p236 = scmp.eq.s32.totalorder %s30, 1
      %p237 = scmp.ne.s32.totalorder %s232, %s234
      %p238 = scmp.eq.s32.totalorder %s30, 0
      %p239 = por %p237, %p238
      %p240 = scmp.ne.s32.totalorder %s232, %s234
      %p241 = scmp.eq.s32.totalorder %s35, 1
      %p242 = por %p240, %p241
      %p243 = scmp.ne.s32.totalorder %s234, %s235
      %p244 = scmp.eq.s32.totalorder %s35, 0
      %p245 = por %p243, %p244
      %p246 = scmp.ne.s32.totalorder %s234, %s235
      %p247 = scmp.eq.s32.totalorder %s36, 1
      %p248 = por %p246, %p247
      %p250 = scmp.ne.s32.totalorder %s235, %s249
      %p251 = scmp.eq.s32.totalorder %s36, 0
      %p252 = por %p250, %p251
      %s254 = sadd.s32 %s253, 1
      %p257 = scmp.eq.s32.totalorder %s30, 1
      %p258 = scmp.ne.s32.totalorder %s253, %s255
      %p259 = scmp.eq.s32.totalorder %s30, 0
      %p260 = por %p258, %p259
      %p261 = scmp.ne.s32.totalorder %s253, %s255
      %p262 = scmp.eq.s32.totalorder %s35, 1
      %p263 = por %p261, %p262
      %p264 = scmp.ne.s32.totalorder %s255, %s256
      %p265 = scmp.eq.s32.totalorder %s35, 0
      %p266 = por %p264, %p265
      %p267 = scmp.ne.s32.totalorder %s255, %s256
      %p268 = scmp.eq.s32.totalorder %s36, 1
      %p269 = por %p267, %p268
      %p271 = scmp.ne.s32.totalorder %s256, %s270
      %p272 = scmp.eq.s32.totalorder %s36, 0
      %p273 = por %p271, %p272
      %s275 = sadd.s32 %s274, 1
      %p278 = scmp.eq.s32.totalorder %s30, 1
      %p279 = scmp.ne.s32.totalorder %s274, %s276
      %p280 = scmp.eq.s32.totalorder %s30, 0
      %p281 = por %p279, %p280
      %p282 = scmp.ne.s32.totalorder %s274, %s276
      %p283 = scmp.eq.s32.totalorder %s35, 1
      %p284 = por %p282, %p283
      %p285 = scmp.ne.s32.totalorder %s276, %s277
      %p286 = scmp.eq.s32.totalorder %s35, 0
      %p287 = por %p285, %p286
      %p288 = scmp.ne.s32.totalorder %s276, %s277
      %p289 = scmp.eq.s32.totalorder %s36, 1
      %p290 = por %p288, %p289
      %p292 = scmp.ne.s32.totalorder %s277, %s291
      %p293 = scmp.eq.s32.totalorder %s36, 0
      %p294 = por %p292, %p293
      %s296 = sadd.s32 %s295, 1
      %p299 = scmp.eq.s32.totalorder %s30, 1
      %p300 = scmp.ne.s32.totalorder %s295, %s297
      %p301 = scmp.eq.s32.totalorder %s30, 0
      %p302 = por %p300, %p301
      %p303 = scmp.ne.s32.totalorder %s295, %s297
      %p304 = scmp.eq.s32.totalorder %s35, 1
      %p305 = por %p303, %p304
      %p306 = scmp.ne.s32.totalorder %s297, %s298
      %p307 = scmp.eq.s32.totalorder %s35, 0
      %p308 = por %p306, %p307
      %p309 = scmp.ne.s32.totalorder %s297, %s298
      %p310 = scmp.eq.s32.totalorder %s36, 1
      %p311 = por %p309, %p310
      %p313 = scmp.ne.s32.totalorder %s298, %s312
      %p314 = scmp.eq.s32.totalorder %s36, 0
      %p315 = por %p313, %p314
      %s316 = ssub.s32 %s30, %s37
      %p317 = scmp.eq.s32.totalorder %s316, 0
      %s319 = sadd.s32 %s318, 1
      %s320 = scalar_select %p317, %s318, %s319
      %p323 = pneg %p317
      %p324 = scmp.eq.s32.totalorder %s30, 1
      %p325 = por %p323, %p324
      %p326 = scmp.ne.s32.totalorder %s318, %s321
      %p327 = scmp.eq.s32.totalorder %s30, 0
      %p328 = por %p326, %p327
      %p329 = scmp.ne.s32.totalorder %s318, %s321
      %p330 = scmp.eq.s32.totalorder %s35, 1
      %p331 = por %p329, %p330
      %p332 = scmp.ne.s32.totalorder %s321, %s322
      %p333 = scmp.eq.s32.totalorder %s35, 0
      %p334 = por %p332, %p333
      %p335 = scmp.ne.s32.totalorder %s321, %s322
      %p336 = scmp.eq.s32.totalorder %s36, 1
      %p337 = por %p335, %p336
      %p339 = scmp.ne.s32.totalorder %s322, %s338
      %p340 = scmp.eq.s32.totalorder %s36, 0
      %p341 = por %p339, %p340
      %p342 = scmp.le.s32.totalorder 1, %s30
      %p343 = scmp.lt.s32.totalorder %s30, 3
      %p344 = pnand %p342, %p343
      %p345 = pneg %p344
      // Predicated region
      $region9: #{tpu_custom_call.1} parent=5 // pred_check
        _
      $region10: #{tpu_custom_call.1} parent=5 // pred_check_branch
        %347 = sbr.rel (%p344) target = $region12
      $region11: #{tpu_custom_call.1} parent=5 // pred_region
        %s348 = ssub.s32 %s30, 1
        // Predicated region
        $region13: #{tpu_custom_call.1} parent=11 // pred_check
          %p349 = pneg %p77
        $region14: #{tpu_custom_call.1} parent=11 // pred_check_branch
          %351 = sbr.rel (%p349) target = $region16
        $region15: #{tpu_custom_call.1} parent=11 // pred_region
          %353 = vsyncadd [#allocation6], 0
          %s355 = sshll.u32 %s1, 4
          %s356 = int_to_ptr.hbm [resolvable:$true] %s355
          %s357 = sshll.u32 [#allocation5], 4
          %s358 = int_to_ptr.vmem [resolvable:$true] %s357
          %360 = dma.hbm_to_vmem [thread:$0]  %s356, 16, %s358, [#allocation6]
        $region16: #{tpu_custom_call.1} parent=11 // pred_fallthru
          _
        // Predicated region
        $region17: #{tpu_custom_call.1} parent=11 // pred_check
          %p361 = pneg %p98
        $region18: #{tpu_custom_call.1} parent=11 // pred_check_branch
          %363 = sbr.rel (%p361) target = $region20
        $region19: #{tpu_custom_call.1} parent=11 // pred_region
          %365 = vsyncadd [#allocation6], 0
          %s367 = sshll.u32 %s2, 4
          %s368 = int_to_ptr.hbm [resolvable:$true] %s367
          %s369 = sshll.u32 [#allocation7], 4
          %s370 = int_to_ptr.vmem [resolvable:$true] %s369
          %372 = dma.hbm_to_vmem [thread:$0]  %s368, 16, %s370, [#allocation6]
        $region20: #{tpu_custom_call.1} parent=11 // pred_fallthru
          _
        // Predicated region
        $region21: #{tpu_custom_call.1} parent=11 // pred_check
          %p373 = pneg %p119
        $region22: #{tpu_custom_call.1} parent=11 // pred_check_branch
          %375 = sbr.rel (%p373) target = $region24
        $region23: #{tpu_custom_call.1} parent=11 // pred_region
          %377 = vsyncadd [#allocation9], 0
          %s378 = sshll.u32 %s3, 4
          %s379 = int_to_ptr.hbm [resolvable:$true] %s378
          %s380 = sshll.u32 [#allocation8], 4
          %s381 = int_to_ptr.vmem [resolvable:$true] %s380
          %386 = dma.hbm_to_vmem [thread:$0]  %s379, 6144, %s381, [#allocation9], 384, 384, 24
        $region24: #{tpu_custom_call.1} parent=11 // pred_fallthru
          _
        // Predicated region
        $region25: #{tpu_custom_call.1} parent=11 // pred_check
          %p387 = pneg %p140
        $region26: #{tpu_custom_call.1} parent=11 // pred_check_branch
          %389 = sbr.rel (%p387) target = $region28
        $region27: #{tpu_custom_call.1} parent=11 // pred_region
          _
        $region28: #{tpu_custom_call.1} parent=11 // pred_fallthru
          _
        // Predicated region
        $region29: #{tpu_custom_call.1} parent=11 // pred_check
          %p390 = pneg %p161
        $region30: #{tpu_custom_call.1} parent=11 // pred_check_branch
          %392 = sbr.rel (%p390) target = $region32
        $region31: #{tpu_custom_call.1} parent=11 // pred_region
          %394 = vsyncadd [#allocation9], 0
          %s395 = sshll.u32 %s5, 4
          %s396 = int_to_ptr.hbm [resolvable:$true] %s395
          %s397 = sshll.u32 [#allocation10], 4
          %s398 = int_to_ptr.vmem [resolvable:$true] %s397
          %403 = dma.hbm_to_vmem [thread:$0]  %s396, 2048, %s398, [#allocation9], 128, 128, 8
        $region32: #{tpu_custom_call.1} parent=11 // pred_fallthru
          _
        // Predicated region
        $region33: #{tpu_custom_call.1} parent=11 // pred_check
          %p404 = pneg %p182
        $region34: #{tpu_custom_call.1} parent=11 // pred_check_branch
          %406 = sbr.rel (%p404) target = $region36
        $region35: #{tpu_custom_call.1} parent=11 // pred_region
          %408 = vsyncadd [#allocation12], 0
          %s410 = sshll.u32 %s6, 4
          %s411 = int_to_ptr.hbm [resolvable:$true] %s410
          %s412 = sshll.u32 [#allocation11], 4
          %s413 = int_to_ptr.vmem [resolvable:$true] %s412
          %415 = dma.hbm_to_vmem [thread:$0]  %s411, 16, %s413, [#allocation12]
        $region36: #{tpu_custom_call.1} parent=11 // pred_fallthru
          _
        // Predicated region
        $region37: #{tpu_custom_call.1} parent=11 // pred_check
          %p416 = pneg %p203
        $region38: #{tpu_custom_call.1} parent=11 // pred_check_branch
          %418 = sbr.rel (%p416) target = $region40
        $region39: #{tpu_custom_call.1} parent=11 // pred_region
          %420 = vsyncadd [#allocation12], 0
          %s422 = sshll.u32 %s7, 4
          %s423 = int_to_ptr.hbm [resolvable:$true] %s422
          %s424 = sshll.u32 [#allocation13], 4
          %s425 = int_to_ptr.vmem [resolvable:$true] %s424
          %427 = dma.hbm_to_vmem [thread:$0]  %s423, 16, %s425, [#allocation12]
        $region40: #{tpu_custom_call.1} parent=11 // pred_fallthru
          _
        // Predicated region
        $region41: #{tpu_custom_call.1} parent=11 // pred_check
          %p428 = pneg %p224
        $region42: #{tpu_custom_call.1} parent=11 // pred_check_branch
          %430 = sbr.rel (%p428) target = $region44
        $region43: #{tpu_custom_call.1} parent=11 // pred_region
          %432 = vsyncadd [#allocation15], 0
          %s434 = sshll.u32 %s8, 4
          %s435 = int_to_ptr.hbm [resolvable:$true] %s434
          %s436 = sshll.u32 [#allocation14], 4
          %s437 = int_to_ptr.vmem [resolvable:$true] %s436
          %439 = dma.hbm_to_vmem [thread:$0]  %s435, 16, %s437, [#allocation15]
        $region44: #{tpu_custom_call.1} parent=11 // pred_fallthru
          _
        // Predicated region
        $region45: #{tpu_custom_call.1} parent=11 // pred_check
          %p440 = pneg %p245
        $region46: #{tpu_custom_call.1} parent=11 // pred_check_branch
          %442 = sbr.rel (%p440) target = $region48
        $region47: #{tpu_custom_call.1} parent=11 // pred_region
          %444 = vsyncadd [#allocation15], 0
          %s445 = sshll.u32 %s9, 4
          %s446 = int_to_ptr.hbm [resolvable:$true] %s445
          %s447 = sshll.u32 [#allocation16], 4
          %s448 = int_to_ptr.vmem [resolvable:$true] %s447
          %453 = dma.hbm_to_vmem [thread:$0]  %s446, 8192, %s448, [#allocation15], 512, 512, 32
        $region48: #{tpu_custom_call.1} parent=11 // pred_fallthru
          _
        // Predicated region
        $region49: #{tpu_custom_call.1} parent=11 // pred_check
          %p454 = pneg %p266
        $region50: #{tpu_custom_call.1} parent=11 // pred_check_branch
          %456 = sbr.rel (%p454) target = $region52
        $region51: #{tpu_custom_call.1} parent=11 // pred_region
          _
        $region52: #{tpu_custom_call.1} parent=11 // pred_fallthru
          _
        // Predicated region
        $region53: #{tpu_custom_call.1} parent=11 // pred_check
          %p457 = pneg %p287
        $region54: #{tpu_custom_call.1} parent=11 // pred_check_branch
          %459 = sbr.rel (%p457) target = $region56
        $region55: #{tpu_custom_call.1} parent=11 // pred_region
          %461 = vsyncadd [#allocation18], 0
          %s462 = sshll.u32 %s11, 4
          %s463 = int_to_ptr.hbm [resolvable:$true] %s462
          %s464 = sshll.u32 [#allocation17], 4
          %s465 = int_to_ptr.vmem [resolvable:$true] %s464
          %470 = dma.hbm_to_vmem [thread:$0]  %s463, 8192, %s465, [#allocation18], 128, 128, 8
        $region56: #{tpu_custom_call.1} parent=11 // pred_fallthru
          _
        // Predicated region
        $region57: #{tpu_custom_call.1} parent=11 // pred_check
          %p471 = pneg %p308
        $region58: #{tpu_custom_call.1} parent=11 // pred_check_branch
          %473 = sbr.rel (%p471) target = $region60
        $region59: #{tpu_custom_call.1} parent=11 // pred_region
          _
        $region60: #{tpu_custom_call.1} parent=11 // pred_fallthru
          _
      $region12: #{tpu_custom_call.1} parent=5 // pred_fallthru
        _
      %p474 = scmp.lt.s32.totalorder %s30, 2
      // Predicated region
      $region61: #{tpu_custom_call.1} parent=5 // pred_check
        %p475 = pneg %p474
      $region62: #{tpu_custom_call.1} parent=5 // pred_check_branch
        %477 = sbr.rel (%p475) target = $region64
      $region63: #{tpu_custom_call.1} parent=5 // pred_region
        // Predicated region
        $region65: #{tpu_custom_call.1} parent=63 // pred_check
          %p478 = pneg %p50
        $region66: #{tpu_custom_call.1} parent=63 // pred_check_branch
          %480 = sbr.rel (%p478) target = $region68
        $region67: #{tpu_custom_call.1} parent=63 // pred_region
          %s481 = sand.u32 %s40, 1
          %s482 = scalar_lea.sflag [#allocation3], %s481
          %s483 = sand.u32 %s40, 1
          %s484 = smul.addr %s483, 16
          %s485 = scalar_lea.vmem [#allocation2], %s484
          %487 = vsyncadd %s482, 0
          %s488 = smul.addr %s30, 2
          %s489 = smul.addr %s488, 8
          %s490 = scalar_lea.hbm %s0, %s489
          %s491 = sshll.u32 %s490, 4
          %s492 = int_to_ptr.hbm [resolvable:$true] %s491
          %s493 = sshll.u32 %s485, 4
          %s494 = int_to_ptr.vmem [resolvable:$true] %s493
          %499 = dma.hbm_to_vmem [thread:$0]  %s492, 256, %s494, %s482, 128, 128, 8
        $region68: #{tpu_custom_call.1} parent=63 // pred_fallthru
          _
      $region64: #{tpu_custom_call.1} parent=5 // pred_fallthru
        _
      %p500 = scmp.le.s32.totalorder 1, %s30
      %p501 = scmp.lt.s32.totalorder %s30, 3
      %p502 = pnand %p500, %p501
      %p503 = pneg %p502
      // Predicated region
      $region69: #{tpu_custom_call.1} parent=5 // pred_check
        _
      $region70: #{tpu_custom_call.1} parent=5 // pred_check_branch
        %505 = sbr.rel (%p502) target = $region72
      $region71: #{tpu_custom_call.1} parent=5 // pred_region
        %s506 = ssub.s32 %s30, 1
        %s507 = sand.u32 %s43, 1
        %s508 = scalar_lea.sflag [#allocation3], %s507
        %s509 = sand.u32 %s43, 1
        %s510 = smul.addr %s509, 16
        %s511 = scalar_lea.vmem [#allocation2], %s510
        // Predicated region
        $region73: #{tpu_custom_call.1} parent=71 // pred_check
          %p512 = pneg %p56
        $region74: #{tpu_custom_call.1} parent=71 // pred_check_branch
          %514 = sbr.rel (%p512) target = $region76
        $region75: #{tpu_custom_call.1} parent=71 // pred_region
          %516 = dma.done %s508, 256
        $region76: #{tpu_custom_call.1} parent=71 // pred_fallthru
          _
        // Predicated region
        $region77: #{tpu_custom_call.1} parent=71 // pred_check
          %p517 = pneg %p77
        $region78: #{tpu_custom_call.1} parent=71 // pred_check_branch
          %519 = sbr.rel (%p517) target = $region80
        $region79: #{tpu_custom_call.1} parent=71 // pred_region
          %521 = dma.done [#allocation6], 16
        $region80: #{tpu_custom_call.1} parent=71 // pred_fallthru
          _
        // Predicated region
        $region81: #{tpu_custom_call.1} parent=71 // pred_check
          %p522 = pneg %p98
        $region82: #{tpu_custom_call.1} parent=71 // pred_check_branch
          %524 = sbr.rel (%p522) target = $region84
        $region83: #{tpu_custom_call.1} parent=71 // pred_region
          %526 = dma.done [#allocation6], 16
        $region84: #{tpu_custom_call.1} parent=71 // pred_fallthru
          _
        // Predicated region
        $region85: #{tpu_custom_call.1} parent=71 // pred_check
          %p527 = pneg %p119
        $region86: #{tpu_custom_call.1} parent=71 // pred_check_branch
          %529 = sbr.rel (%p527) target = $region88
        $region87: #{tpu_custom_call.1} parent=71 // pred_region
          %531 = dma.done [#allocation9], 6144
        $region88: #{tpu_custom_call.1} parent=71 // pred_fallthru
          _
        // Predicated region
        $region89: #{tpu_custom_call.1} parent=71 // pred_check
          %p532 = pneg %p161
        $region90: #{tpu_custom_call.1} parent=71 // pred_check_branch
          %534 = sbr.rel (%p532) target = $region92
        $region91: #{tpu_custom_call.1} parent=71 // pred_region
          %536 = dma.done [#allocation9], 2048
        $region92: #{tpu_custom_call.1} parent=71 // pred_fallthru
          _
        // Predicated region
        $region93: #{tpu_custom_call.1} parent=71 // pred_check
          %p537 = pneg %p182
        $region94: #{tpu_custom_call.1} parent=71 // pred_check_branch
          %539 = sbr.rel (%p537) target = $region96
        $region95: #{tpu_custom_call.1} parent=71 // pred_region
          %541 = dma.done [#allocation12], 16
        $region96: #{tpu_custom_call.1} parent=71 // pred_fallthru
          _
        // Predicated region
        $region97: #{tpu_custom_call.1} parent=71 // pred_check
          %p542 = pneg %p203
        $region98: #{tpu_custom_call.1} parent=71 // pred_check_branch
          %544 = sbr.rel (%p542) target = $region100
        $region99: #{tpu_custom_call.1} parent=71 // pred_region
          %546 = dma.done [#allocation12], 16
        $region100: #{tpu_custom_call.1} parent=71 // pred_fallthru
          _
        // Predicated region
        $region101: #{tpu_custom_call.1} parent=71 // pred_check
          %p547 = pneg %p224
        $region102: #{tpu_custom_call.1} parent=71 // pred_check_branch
          %549 = sbr.rel (%p547) target = $region104
        $region103: #{tpu_custom_call.1} parent=71 // pred_region
          %551 = dma.done [#allocation15], 16
        $region104: #{tpu_custom_call.1} parent=71 // pred_fallthru
          _
        // Predicated region
        $region105: #{tpu_custom_call.1} parent=71 // pred_check
          %p552 = pneg %p245
        $region106: #{tpu_custom_call.1} parent=71 // pred_check_branch
          %554 = sbr.rel (%p552) target = $region108
        $region107: #{tpu_custom_call.1} parent=71 // pred_region
          %556 = dma.done [#allocation15], 8192
        $region108: #{tpu_custom_call.1} parent=71 // pred_fallthru
          _
        // Predicated region
        $region109: #{tpu_custom_call.1} parent=71 // pred_check
          %p557 = pneg %p287
        $region110: #{tpu_custom_call.1} parent=71 // pred_check_branch
          %559 = sbr.rel (%p557) target = $region112
        $region111: #{tpu_custom_call.1} parent=71 // pred_region
          %561 = dma.done [#allocation18], 8192
        $region112: #{tpu_custom_call.1} parent=71 // pred_fallthru
          _
        %s562 = sand.u32 %s43, 1
        %s563 = scalar_lea.sflag [#allocation3], %s562
        %s564 = sand.u32 %s43, 1
        %s565 = smul.addr %s564, 16
        %s566 = scalar_lea.vmem [#allocation2], %s565
        %p567 = pneg %p56
        %p568 = pneg %p53
        %p569 = pneg %p77
        %p570 = pneg %p74
        %p571 = pneg %p98
        %p572 = pneg %p95
        %p573 = pneg %p119
        %p574 = pneg %p116
        %p575 = pneg %p140
        %p576 = pneg %p137
        %p577 = pneg %p161
        %p578 = pneg %p158
        %p579 = pneg %p182
        %p580 = pneg %p179
        %p581 = pneg %p203
        %p582 = pneg %p200
        %p583 = pneg %p224
        %p584 = pneg %p221
        %p585 = pneg %p245
        %p586 = pneg %p242
        %p587 = pneg %p266
        %p588 = pneg %p263
        %p589 = pneg %p287
        %p590 = pneg %p284
        %p591 = pneg %p308
        %p592 = pneg %p305
        %p593 = pneg %p334
        %p594 = pneg %p331
        %s595 = sand.u32 %s321, 1
        %s596 = scalar_lea.sflag [#allocation4], %s595
        %s597 = sand.u32 %s321, 1
        %s598 = smul.addr %s597, 16
        %s599 = scalar_lea.vmem [#allocation19], %s598
        %v600 = vld [vmem:[%s511] sm:$0xff]
        %v601 = vld [vmem:[%s511 + $0x8] sm:$0xff]
        %v602 = vld [vmem:[#allocation5] sm:$0x1]
        %v603 = vld [vmem:[#allocation7] sm:$0x1]
        %604 = vadd.xlane.f32.xlu0 %v600
        %v605 = vpop.xlane.xlu0 %604
        %606 = vadd.xlane.f32.xlu0 %v601
        %v607 = vpop.xlane.xlu0 %606
        %v608 = vrcp.pop 128.0
        %v609 = vmul.f32 128.0, %v608
        %v610 = vsub.f32 1.0, %v609
        %v611 = vmul.f32 %v608, %v610
        %v612 = vadd.f32 %v608, %v611
        %vm613 = vweird.f32 %v608
        %v614 = vsel %vm613, %v608, %v612
        %v615 = vmul.f32 %v605, %v614
        %v616 = vmul.f32 %v607, %v614
        %v617 = vsub.f32 %v600, %v615
        %v618 = vsub.f32 %v601, %v616
        %v619 = vmul.f32 %v617, %v617
        %v620 = vmul.f32 %v618, %v618
        %621 = vadd.xlane.f32.xlu0 %v619
        %v622 = vpop.xlane.xlu0 %621
        %623 = vadd.xlane.f32.xlu0 %v620
        %v624 = vpop.xlane.xlu0 %623
        %v625 = vmul.f32 %v622, %v614
        %v626 = vmul.f32 %v624, %v614
        %v627 = vadd.f32 %v625, 1e-05
        %v628 = vadd.f32 %v626, 1e-05
        %v629 = vrsqrt.pop %v627
        %v630 = vmul.f32 %v629, %v627
        %v631 = vmul.f32 %v630, %v629
        %v632 = vmul.f32 0.5, %v631
        %v633 = vsub.f32 1.5, %v632
        %v634 = vmul.f32 %v629, %v633
        %vm635 = vweird.f32 %v627
        %vm636 = vweird.f32 %v629
        %vm637 = vmor %vm635, %vm636
        %v638 = vsel %vm637, %v629, %v634
        %v639 = vrsqrt.pop %v628
        %v640 = vmul.f32 %v639, %v628
        %v641 = vmul.f32 %v640, %v639
        %v642 = vmul.f32 0.5, %v641
        %v643 = vsub.f32 1.5, %v642
        %v644 = vmul.f32 %v639, %v643
        %vm645 = vweird.f32 %v628
        %vm646 = vweird.f32 %v639
        %vm647 = vmor %vm645, %vm646
        %v648 = vsel %vm647, %v639, %v644
        %v649 = vmul.f32 %v617, %v638
        %v650 = vmul.f32 %v618, %v648
        %v652 = vperm.slane %v602, 0
        %v654 = vmul.f32 %v649, %v652
        %v655 = vmul.f32 %v650, %v652
        %v657 = vperm.slane %v603, 0
        %v659 = vadd.f32 %v654, %v657
        %v660 = vadd.f32 %v655, %v657
        %v661 = vld [vmem:[#allocation8] sm:$0xff]
        %v662 = vld [vmem:[#allocation8 + $0x8] sm:$0xff]
        %v663 = vld [vmem:[#allocation8 + $0x10] sm:$0xff]
        %v664 = vld [vmem:[#allocation8 + $0x18] sm:$0xff]
        %v665 = vld [vmem:[#allocation8 + $0x20] sm:$0xff]
        %v666 = vld [vmem:[#allocation8 + $0x28] sm:$0xff]
        %v667 = vld [vmem:[#allocation8 + $0x30] sm:$0xff]
        %v668 = vld [vmem:[#allocation8 + $0x38] sm:$0xff]
        %v669 = vld [vmem:[#allocation8 + $0x40] sm:$0xff]
        %v670 = vld [vmem:[#allocation8 + $0x48] sm:$0xff]
        %v671 = vld [vmem:[#allocation8 + $0x50] sm:$0xff]
        %v672 = vld [vmem:[#allocation8 + $0x58] sm:$0xff]
        %v673 = vld [vmem:[#allocation8 + $0x60] sm:$0xff]
        %v674 = vld [vmem:[#allocation8 + $0x68] sm:$0xff]
        %v675 = vld [vmem:[#allocation8 + $0x70] sm:$0xff]
        %v676 = vld [vmem:[#allocation8 + $0x78] sm:$0xff]
        %v677 = vld [vmem:[#allocation8 + $0x80] sm:$0xff]
        %v678 = vld [vmem:[#allocation8 + $0x88] sm:$0xff]
        %v679 = vld [vmem:[#allocation8 + $0x90] sm:$0xff]
        %v680 = vld [vmem:[#allocation8 + $0x98] sm:$0xff]
        %v681 = vld [vmem:[#allocation8 + $0xa0] sm:$0xff]
        %v682 = vld [vmem:[#allocation8 + $0xa8] sm:$0xff]
        %v683 = vld [vmem:[#allocation8 + $0xb0] sm:$0xff]
        %v684 = vld [vmem:[#allocation8 + $0xb8] sm:$0xff]
        %v685 = vld [vmem:[#allocation8 + $0xc0] sm:$0xff]
        %v686 = vld [vmem:[#allocation8 + $0xc8] sm:$0xff]
        %v687 = vld [vmem:[#allocation8 + $0xd0] sm:$0xff]
        %v688 = vld [vmem:[#allocation8 + $0xd8] sm:$0xff]
        %v689 = vld [vmem:[#allocation8 + $0xe0] sm:$0xff]
        %v690 = vld [vmem:[#allocation8 + $0xe8] sm:$0xff]
        %v691 = vld [vmem:[#allocation8 + $0xf0] sm:$0xff]
        %v692 = vld [vmem:[#allocation8 + $0xf8] sm:$0xff]
        %v693 = vld [vmem:[#allocation8 + $0x100] sm:$0xff]
        %v694 = vld [vmem:[#allocation8 + $0x108] sm:$0xff]
        %v695 = vld [vmem:[#allocation8 + $0x110] sm:$0xff]
        %v696 = vld [vmem:[#allocation8 + $0x118] sm:$0xff]
        %v697 = vld [vmem:[#allocation8 + $0x120] sm:$0xff]
        %v698 = vld [vmem:[#allocation8 + $0x128] sm:$0xff]
        %v699 = vld [vmem:[#allocation8 + $0x130] sm:$0xff]
        %v700 = vld [vmem:[#allocation8 + $0x138] sm:$0xff]
        %v701 = vld [vmem:[#allocation8 + $0x140] sm:$0xff]
        %v702 = vld [vmem:[#allocation8 + $0x148] sm:$0xff]
        %v703 = vld [vmem:[#allocation8 + $0x150] sm:$0xff]
        %v704 = vld [vmem:[#allocation8 + $0x158] sm:$0xff]
        %v705 = vld [vmem:[#allocation8 + $0x160] sm:$0xff]
        %v706 = vld [vmem:[#allocation8 + $0x168] sm:$0xff]
        %v707 = vld [vmem:[#allocation8 + $0x170] sm:$0xff]
        %v708 = vld [vmem:[#allocation8 + $0x178] sm:$0xff]
        %v709 = vld [vmem:[%s4] sm:$0x7]
        %v711 = vperm.slane %v709, 0
        %v712 = vperm.slane %v709, 1
        %v713 = vperm.slane %v709, 2
        %717 = vmatpush.msra.mxu0 %v706
        %718 = vmatpush.msra.mxu0 %v703
        %719 = vmatpush.msra.mxu0 %v700
        %720 = vmatpush.msra.mxu0 %v697
        %721 = vmatpush.msra.mxu0 %v694
        %722 = vmatpush.msra.mxu0 %v691
        %723 = vmatpush.msra.mxu0 %v688
        %724 = vmatpush.msra.mxu0 %v685
        %725 = vmatpush.msra.mxu0 %v682
        %726 = vmatpush.msra.mxu0 %v679
        %727 = vmatpush.msra.mxu0 %v676
        %728 = vmatpush.msra.mxu0 %v673
        %729 = vmatpush.msra.mxu0 %v670
        %730 = vmatpush.msra.mxu0 %v667
        %731 = vmatpush.msra.mxu0 %v664
        %732 = vmatpush.msra.mxu0 %v661
        %733 = vmatmul.f32.gmra.mxu0 %v659
        %v734 = vpop.f32.mrf.mxu0
        %v735 = vadd.f32 %v711, %v734
        %736 = vmatmul.f32.gmra.mxu0 %v660
        %v737 = vpop.f32.mrf.mxu0
        %v738 = vadd.f32 %v711, %v737
        %739 = vdwg.mxu0
        %740 = vmatpush.msra.mxu0 %v707
        %741 = vmatpush.msra.mxu0 %v704
        %742 = vmatpush.msra.mxu0 %v701
        %743 = vmatpush.msra.mxu0 %v698
        %744 = vmatpush.msra.mxu0 %v695
        %745 = vmatpush.msra.mxu0 %v692
        %746 = vmatpush.msra.mxu0 %v689
        %747 = vmatpush.msra.mxu0 %v686
        %748 = vmatpush.msra.mxu0 %v683
        %749 = vmatpush.msra.mxu0 %v680
        %750 = vmatpush.msra.mxu0 %v677
        %751 = vmatpush.msra.mxu0 %v674
        %752 = vmatpush.msra.mxu0 %v671
        %753 = vmatpush.msra.mxu0 %v668
        %754 = vmatpush.msra.mxu0 %v665
        %755 = vmatpush.msra.mxu0 %v662
        %756 = vmatmul.f32.gmra.mxu0 %v659
        %v757 = vpop.f32.mrf.mxu0
        %v758 = vadd.f32 %v712, %v757
        %759 = vmatmul.f32.gmra.mxu0 %v660
        %v760 = vpop.f32.mrf.mxu0
        %v761 = vadd.f32 %v712, %v760
        %762 = vdwg.mxu0
        %763 = vmatpush.msra.mxu0 %v708
        %764 = vmatpush.msra.mxu0 %v705
        %765 = vmatpush.msra.mxu0 %v702
        %766 = vmatpush.msra.mxu0 %v699
        %767 = vmatpush.msra.mxu0 %v696
        %768 = vmatpush.msra.mxu0 %v693
        %769 = vmatpush.msra.mxu0 %v690
        %770 = vmatpush.msra.mxu0 %v687
        %771 = vmatpush.msra.mxu0 %v684
        %772 = vmatpush.msra.mxu0 %v681
        %773 = vmatpush.msra.mxu0 %v678
        %774 = vmatpush.msra.mxu0 %v675
        %775 = vmatpush.msra.mxu0 %v672
        %776 = vmatpush.msra.mxu0 %v669
        %777 = vmatpush.msra.mxu0 %v666
        %778 = vmatpush.msra.mxu0 %v663
        %779 = vmatmul.f32.gmra.mxu0 %v659
        %v780 = vpop.f32.mrf.mxu0
        %v781 = vadd.f32 %v713, %v780
        %782 = vmatmul.f32.gmra.mxu0 %v660
        %v783 = vpop.f32.mrf.mxu0
        %v784 = vadd.f32 %v713, %v783
        %785 = vdwg.mxu0
        %788 = vrot.lane.b32.xlu0 %v735, 96
        %v789 = vpop.permute.xlu0 %788
        %790 = vrot.lane.b32.xlu0 %v738, 96
        %v791 = vpop.permute.xlu0 %790
        %794 = vrot.lane.b32.xlu0 %v735, 64
        %v795 = vpop.permute.xlu0 %794
        %796 = vrot.lane.b32.xlu0 %v738, 64
        %v797 = vpop.permute.xlu0 %796
        %800 = vrot.lane.b32.xlu0 %v735, 32
        %v801 = vpop.permute.xlu0 %800
        %802 = vrot.lane.b32.xlu0 %v738, 32
        %v803 = vpop.permute.xlu0 %802
        %v806 = vrot.slane %v795, 4
        %vm807 = vcmask 1047556
        %v808 = vsel %vm807, %v806, %v735
        %v809 = vrot.slane %v735, 4
        %v810 = vsel %vm807, %v795, %v809
        %v812 = vunpack.c.l.s4 1983009808
        %v813 = vunpack.c.0.s8 %v812
        %v814 = vperm.slane %v808, %v813
        %v816 = vunpack.c.l.s4 1983009808
        %v817 = vunpack.c.0.s8 %v816
        %v818 = vperm.slane %v810, %v817
        %v819 = vrot.slane %v801, 4
        %v820 = vsel %vm807, %v819, %v789
        %v821 = vrot.slane %v789, 4
        %v822 = vsel %vm807, %v801, %v821
        %v824 = vunpack.c.l.s4 1983009808
        %v825 = vunpack.c.0.s8 %v824
        %v826 = vperm.slane %v820, %v825
        %v828 = vunpack.c.l.s4 1983009808
        %v829 = vunpack.c.0.s8 %v828
        %v830 = vperm.slane %v822, %v829
        %v831 = vrot.slane %v826, 4
        %v832 = vsel %vm807, %v831, %v814
        %v833 = vrot.slane %v814, 4
        %v834 = vsel %vm807, %v826, %v833
        %v836 = vunpack.c.l.s4 1934713408
        %v837 = vunpack.c.0.s8 %v836
        %v838 = vperm.slane %v832, %v837
        %v840 = vunpack.c.l.s4 1934713408
        %v841 = vunpack.c.0.s8 %v840
        %v842 = vperm.slane %v834, %v841
        %v843 = vrot.slane %v830, 4
        %v844 = vsel %vm807, %v843, %v818
        %v845 = vrot.slane %v818, 4
        %v846 = vsel %vm807, %v830, %v845
        %v848 = vunpack.c.l.s4 1934713408
        %v849 = vunpack.c.0.s8 %v848
        %v850 = vperm.slane %v844, %v849
        %v852 = vunpack.c.l.s4 1934713408
        %v853 = vunpack.c.0.s8 %v852
        %v854 = vperm.slane %v846, %v853
        %v855 = vrot.slane %v838, 4
        %v856 = vsel %vm807, 0.0, %v855
        %v857 = vrot.slane %v842, 4
        %v858 = vsel %vm807, 0.0, %v857
        %v859 = vrot.slane %v850, 4
        %v860 = vsel %vm807, 0.0, %v859
        %v861 = vrot.slane %v854, 4
        %v862 = vsel %vm807, 0.0, %v861
        %v863 = vrot.slane %v797, 4
        %v864 = vsel %vm807, %v863, %v738
        %v865 = vrot.slane %v738, 4
        %v866 = vsel %vm807, %v797, %v865
        %v868 = vunpack.c.l.s4 1983009808
        %v869 = vunpack.c.0.s8 %v868
        %v870 = vperm.slane %v864, %v869
        %v872 = vunpack.c.l.s4 1983009808
        %v873 = vunpack.c.0.s8 %v872
        %v874 = vperm.slane %v866, %v873
        %v875 = vrot.slane %v803, 4
        %v876 = vsel %vm807, %v875, %v791
        %v877 = vrot.slane %v791, 4
        %v878 = vsel %vm807, %v803, %v877
        %v880 = vunpack.c.l.s4 1983009808
        %v881 = vunpack.c.0.s8 %v880
        %v882 = vperm.slane %v876, %v881
        %v884 = vunpack.c.l.s4 1983009808
        %v885 = vunpack.c.0.s8 %v884
        %v886 = vperm.slane %v878, %v885
        %v887 = vrot.slane %v882, 4
        %v888 = vsel %vm807, %v887, %v870
        %v889 = vrot.slane %v870, 4
        %v890 = vsel %vm807, %v882, %v889
        %v892 = vunpack.c.l.s4 1934713408
        %v893 = vunpack.c.0.s8 %v892
        %v894 = vperm.slane %v888, %v893
        %v896 = vunpack.c.l.s4 1934713408
        %v897 = vunpack.c.0.s8 %v896
        %v898 = vperm.slane %v890, %v897
        %v899 = vrot.slane %v886, 4
        %v900 = vsel %vm807, %v899, %v874
        %v901 = vrot.slane %v874, 4
        %v902 = vsel %vm807, %v886, %v901
        %v904 = vunpack.c.l.s4 1934713408
        %v905 = vunpack.c.0.s8 %v904
        %v906 = vperm.slane %v900, %v905
        %v908 = vunpack.c.l.s4 1934713408
        %v909 = vunpack.c.0.s8 %v908
        %v910 = vperm.slane %v902, %v909
        %v911 = vrot.slane %v894, 4
        %v912 = vsel %vm807, 0.0, %v911
        %v913 = vrot.slane %v898, 4
        %v914 = vsel %vm807, 0.0, %v913
        %v915 = vrot.slane %v906, 4
        %v916 = vsel %vm807, 0.0, %v915
        %v917 = vrot.slane %v910, 4
        %v918 = vsel %vm807, 0.0, %v917
        %v919 = vsel %vm807, %v857, %v838
        %v921 = vunpack.c.l.s4 1983009808
        %v922 = vunpack.c.0.s8 %v921
        %v923 = vperm.slane %v919, %v922
        %v924 = vrot.slane %v858, 4
        %v925 = vsel %vm807, %v924, %v856
        %v927 = vunpack.c.l.s4 1983009808
        %v928 = vunpack.c.0.s8 %v927
        %v929 = vperm.slane %v925, %v928
        %v930 = vsel %vm807, %v861, %v850
        %v932 = vunpack.c.l.s4 1983009808
        %v933 = vunpack.c.0.s8 %v932
        %v934 = vperm.slane %v930, %v933
        %v935 = vrot.slane %v862, 4
        %v936 = vsel %vm807, %v935, %v860
        %v938 = vunpack.c.l.s4 1983009808
        %v939 = vunpack.c.0.s8 %v938
        %v940 = vperm.slane %v936, %v939
        %v941 = vrot.slane %v929, 4
        %v942 = vsel %vm807, %v941, %v923
        %v943 = vrot.slane %v923, 4
        %v944 = vsel %vm807, %v929, %v943
        %v946 = vunpack.c.l.s4 1934713408
        %v947 = vunpack.c.0.s8 %v946
        %v948 = vperm.slane %v942, %v947
        %v950 = vunpack.c.l.s4 1934713408
        %v951 = vunpack.c.0.s8 %v950
        %v952 = vperm.slane %v944, %v951
        %v953 = vrot.slane %v940, 4
        %v954 = vsel %vm807, %v953, %v934
        %v955 = vrot.slane %v934, 4
        %v956 = vsel %vm807, %v940, %v955
        %v958 = vunpack.c.l.s4 1934713408
        %v959 = vunpack.c.0.s8 %v958
        %v960 = vperm.slane %v954, %v959
        %v962 = vunpack.c.l.s4 1934713408
        %v963 = vunpack.c.0.s8 %v962
        %v964 = vperm.slane %v956, %v963
        %v965 = vrot.slane %v960, 4
        %v966 = vsel %vm807, %v965, %v948
        %v967 = vrot.slane %v948, 4
        %v968 = vsel %vm807, %v960, %v967
        %v969 = vrot.slane %v964, 4
        %v970 = vsel %vm807, %v969, %v952
        %v971 = vrot.slane %v952, 4
        %v972 = vsel %vm807, %v964, %v971
        %v973 = vsel %vm807, %v913, %v894
        %v975 = vunpack.c.l.s4 1983009808
        %v976 = vunpack.c.0.s8 %v975
        %v977 = vperm.slane %v973, %v976
        %v978 = vrot.slane %v914, 4
        %v979 = vsel %vm807, %v978, %v912
        %v981 = vunpack.c.l.s4 1983009808
        %v982 = vunpack.c.0.s8 %v981
        %v983 = vperm.slane %v979, %v982
        %v984 = vsel %vm807, %v917, %v906
        %v986 = vunpack.c.l.s4 1983009808
        %v987 = vunpack.c.0.s8 %v986
        %v988 = vperm.slane %v984, %v987
        %v989 = vrot.slane %v918, 4
        %v990 = vsel %vm807, %v989, %v916
        %v992 = vunpack.c.l.s4 1983009808
        %v993 = vunpack.c.0.s8 %v992
        %v994 = vperm.slane %v990, %v993
        %v995 = vrot.slane %v983, 4
        %v996 = vsel %vm807, %v995, %v977
        %v997 = vrot.slane %v977, 4
        %v998 = vsel %vm807, %v983, %v997
        %v1000 = vunpack.c.l.s4 1934713408
        %v1001 = vunpack.c.0.s8 %v1000
        %v1002 = vperm.slane %v996, %v1001
        %v1004 = vunpack.c.l.s4 1934713408
        %v1005 = vunpack.c.0.s8 %v1004
        %v1006 = vperm.slane %v998, %v1005
        %v1007 = vrot.slane %v994, 4
        %v1008 = vsel %vm807, %v1007, %v988
        %v1009 = vrot.slane %v988, 4
        %v1010 = vsel %vm807, %v994, %v1009
        %v1012 = vunpack.c.l.s4 1934713408
        %v1013 = vunpack.c.0.s8 %v1012
        %v1014 = vperm.slane %v1008, %v1013
        %v1016 = vunpack.c.l.s4 1934713408
        %v1017 = vunpack.c.0.s8 %v1016
        %v1018 = vperm.slane %v1010, %v1017
        %v1019 = vrot.slane %v1014, 4
        %v1020 = vsel %vm807, %v1019, %v1002
        %v1021 = vrot.slane %v1002, 4
        %v1022 = vsel %vm807, %v1014, %v1021
        %v1023 = vrot.slane %v1018, 4
        %v1024 = vsel %vm807, %v1023, %v1006
        %v1025 = vrot.slane %v1006, 4
        %v1026 = vsel %vm807, %v1018, %v1025
        %1029 = vrot.lane.b32.xlu0 %v758, 96
        %v1030 = vpop.permute.xlu0 %1029
        %1031 = vrot.lane.b32.xlu0 %v761, 96
        %v1032 = vpop.permute.xlu0 %1031
        %1035 = vrot.lane.b32.xlu0 %v758, 64
        %v1036 = vpop.permute.xlu0 %1035
        %1037 = vrot.lane.b32.xlu0 %v761, 64
        %v1038 = vpop.permute.xlu0 %1037
        %1041 = vrot.lane.b32.xlu0 %v758, 32
        %v1042 = vpop.permute.xlu0 %1041
        %1043 = vrot.lane.b32.xlu0 %v761, 32
        %v1044 = vpop.permute.xlu0 %1043
        %v1047 = vrot.slane %v1036, 4
        %v1048 = vsel %vm807, %v1047, %v758
        %v1049 = vrot.slane %v758, 4
        %v1050 = vsel %vm807, %v1036, %v1049
        %v1052 = vunpack.c.l.s4 1983009808
        %v1053 = vunpack.c.0.s8 %v1052
        %v1054 = vperm.slane %v1048, %v1053
        %v1056 = vunpack.c.l.s4 1983009808
        %v1057 = vunpack.c.0.s8 %v1056
        %v1058 = vperm.slane %v1050, %v1057
        %v1059 = vrot.slane %v1042, 4
        %v1060 = vsel %vm807, %v1059, %v1030
        %v1061 = vrot.slane %v1030, 4
        %v1062 = vsel %vm807, %v1042, %v1061
        %v1064 = vunpack.c.l.s4 1983009808
        %v1065 = vunpack.c.0.s8 %v1064
        %v1066 = vperm.slane %v1060, %v1065
        %v1068 = vunpack.c.l.s4 1983009808
        %v1069 = vunpack.c.0.s8 %v1068
        %v1070 = vperm.slane %v1062, %v1069
        %v1071 = vrot.slane %v1066, 4
        %v1072 = vsel %vm807, %v1071, %v1054
        %v1073 = vrot.slane %v1054, 4
        %v1074 = vsel %vm807, %v1066, %v1073
        %v1076 = vunpack.c.l.s4 1934713408
        %v1077 = vunpack.c.0.s8 %v1076
        %v1078 = vperm.slane %v1072, %v1077
        %v1080 = vunpack.c.l.s4 1934713408
        %v1081 = vunpack.c.0.s8 %v1080
        %v1082 = vperm.slane %v1074, %v1081
        %v1083 = vrot.slane %v1070, 4
        %v1084 = vsel %vm807, %v1083, %v1058
        %v1085 = vrot.slane %v1058, 4
        %v1086 = vsel %vm807, %v1070, %v1085
        %v1088 = vunpack.c.l.s4 1934713408
        %v1089 = vunpack.c.0.s8 %v1088
        %v1090 = vperm.slane %v1084, %v1089
        %v1092 = vunpack.c.l.s4 1934713408
        %v1093 = vunpack.c.0.s8 %v1092
        %v1094 = vperm.slane %v1086, %v1093
        %v1095 = vrot.slane %v1078, 4
        %v1096 = vsel %vm807, 0.0, %v1095
        %v1097 = vrot.slane %v1082, 4
        %v1098 = vsel %vm807, 0.0, %v1097
        %v1099 = vrot.slane %v1090, 4
        %v1100 = vsel %vm807, 0.0, %v1099
        %v1101 = vrot.slane %v1094, 4
        %v1102 = vsel %vm807, 0.0, %v1101
        %v1103 = vrot.slane %v1038, 4
        %v1104 = vsel %vm807, %v1103, %v761
        %v1105 = vrot.slane %v761, 4
        %v1106 = vsel %vm807, %v1038, %v1105
        %v1108 = vunpack.c.l.s4 1983009808
        %v1109 = vunpack.c.0.s8 %v1108
        %v1110 = vperm.slane %v1104, %v1109
        %v1112 = vunpack.c.l.s4 1983009808
        %v1113 = vunpack.c.0.s8 %v1112
        %v1114 = vperm.slane %v1106, %v1113
        %v1115 = vrot.slane %v1044, 4
        %v1116 = vsel %vm807, %v1115, %v1032
        %v1117 = vrot.slane %v1032, 4
        %v1118 = vsel %vm807, %v1044, %v1117
        %v1120 = vunpack.c.l.s4 1983009808
        %v1121 = vunpack.c.0.s8 %v1120
        %v1122 = vperm.slane %v1116, %v1121
        %v1124 = vunpack.c.l.s4 1983009808
        %v1125 = vunpack.c.0.s8 %v1124
        %v1126 = vperm.slane %v1118, %v1125
        %v1127 = vrot.slane %v1122, 4
        %v1128 = vsel %vm807, %v1127, %v1110
        %v1129 = vrot.slane %v1110, 4
        %v1130 = vsel %vm807, %v1122, %v1129
        %v1132 = vunpack.c.l.s4 1934713408
        %v1133 = vunpack.c.0.s8 %v1132
        %v1134 = vperm.slane %v1128, %v1133
        %v1136 = vunpack.c.l.s4 1934713408
        %v1137 = vunpack.c.0.s8 %v1136
        %v1138 = vperm.slane %v1130, %v1137
        %v1139 = vrot.slane %v1126, 4
        %v1140 = vsel %vm807, %v1139, %v1114
        %v1141 = vrot.slane %v1114, 4
        %v1142 = vsel %vm807, %v1126, %v1141
        %v1144 = vunpack.c.l.s4 1934713408
        %v1145 = vunpack.c.0.s8 %v1144
        %v1146 = vperm.slane %v1140, %v1145
        %v1148 = vunpack.c.l.s4 1934713408
        %v1149 = vunpack.c.0.s8 %v1148
        %v1150 = vperm.slane %v1142, %v1149
        %v1151 = vrot.slane %v1134, 4
        %v1152 = vsel %vm807, 0.0, %v1151
        %v1153 = vrot.slane %v1138, 4
        %v1154 = vsel %vm807, 0.0, %v1153
        %v1155 = vrot.slane %v1146, 4
        %v1156 = vsel %vm807, 0.0, %v1155
        %v1157 = vrot.slane %v1150, 4
        %v1158 = vsel %vm807, 0.0, %v1157
        %v1159 = vsel %vm807, %v1097, %v1078
        %v1161 = vunpack.c.l.s4 1983009808
        %v1162 = vunpack.c.0.s8 %v1161
        %v1163 = vperm.slane %v1159, %v1162
        %v1164 = vrot.slane %v1098, 4
        %v1165 = vsel %vm807, %v1164, %v1096
        %v1167 = vunpack.c.l.s4 1983009808
        %v1168 = vunpack.c.0.s8 %v1167
        %v1169 = vperm.slane %v1165, %v1168
        %v1170 = vsel %vm807, %v1101, %v1090
        %v1172 = vunpack.c.l.s4 1983009808
        %v1173 = vunpack.c.0.s8 %v1172
        %v1174 = vperm.slane %v1170, %v1173
        %v1175 = vrot.slane %v1102, 4
        %v1176 = vsel %vm807, %v1175, %v1100
        %v1178 = vunpack.c.l.s4 1983009808
        %v1179 = vunpack.c.0.s8 %v1178
        %v1180 = vperm.slane %v1176, %v1179
        %v1181 = vrot.slane %v1169, 4
        %v1182 = vsel %vm807, %v1181, %v1163
        %v1183 = vrot.slane %v1163, 4
        %v1184 = vsel %vm807, %v1169, %v1183
        %v1186 = vunpack.c.l.s4 1934713408
        %v1187 = vunpack.c.0.s8 %v1186
        %v1188 = vperm.slane %v1182, %v1187
        %v1190 = vunpack.c.l.s4 1934713408
        %v1191 = vunpack.c.0.s8 %v1190
        %v1192 = vperm.slane %v1184, %v1191
        %v1193 = vrot.slane %v1180, 4
        %v1194 = vsel %vm807, %v1193, %v1174
        %v1195 = vrot.slane %v1174, 4
        %v1196 = vsel %vm807, %v1180, %v1195
        %v1198 = vunpack.c.l.s4 1934713408
        %v1199 = vunpack.c.0.s8 %v1198
        %v1200 = vperm.slane %v1194, %v1199
        %v1202 = vunpack.c.l.s4 1934713408
        %v1203 = vunpack.c.0.s8 %v1202
        %v1204 = vperm.slane %v1196, %v1203
        %v1205 = vrot.slane %v1200, 4
        %v1206 = vsel %vm807, %v1205, %v1188
        %v1207 = vrot.slane %v1188, 4
        %v1208 = vsel %vm807, %v1200, %v1207
        %v1209 = vrot.slane %v1204, 4
        %v1210 = vsel %vm807, %v1209, %v1192
        %v1211 = vrot.slane %v1192, 4
        %v1212 = vsel %vm807, %v1204, %v1211
        %v1213 = vsel %vm807, %v1153, %v1134
        %v1215 = vunpack.c.l.s4 1983009808
        %v1216 = vunpack.c.0.s8 %v1215
        %v1217 = vperm.slane %v1213, %v1216
        %v1218 = vrot.slane %v1154, 4
        %v1219 = vsel %vm807, %v1218, %v1152
        %v1221 = vunpack.c.l.s4 1983009808
        %v1222 = vunpack.c.0.s8 %v1221
        %v1223 = vperm.slane %v1219, %v1222
        %v1224 = vsel %vm807, %v1157, %v1146
        %v1226 = vunpack.c.l.s4 1983009808
        %v1227 = vunpack.c.0.s8 %v1226
        %v1228 = vperm.slane %v1224, %v1227
        %v1229 = vrot.slane %v1158, 4
        %v1230 = vsel %vm807, %v1229, %v1156
        %v1232 = vunpack.c.l.s4 1983009808
        %v1233 = vunpack.c.0.s8 %v1232
        %v1234 = vperm.slane %v1230, %v1233
        %v1235 = vrot.slane %v1223, 4
        %v1236 = vsel %vm807, %v1235, %v1217
        %v1237 = vrot.slane %v1217, 4
        %v1238 = vsel %vm807, %v1223, %v1237
        %v1240 = vunpack.c.l.s4 1934713408
        %v1241 = vunpack.c.0.s8 %v1240
        %v1242 = vperm.slane %v1236, %v1241
        %v1244 = vunpack.c.l.s4 1934713408
        %v1245 = vunpack.c.0.s8 %v1244
        %v1246 = vperm.slane %v1238, %v1245
        %v1247 = vrot.slane %v1234, 4
        %v1248 = vsel %vm807, %v1247, %v1228
        %v1249 = vrot.slane %v1228, 4
        %v1250 = vsel %vm807, %v1234, %v1249
        %v1252 = vunpack.c.l.s4 1934713408
        %v1253 = vunpack.c.0.s8 %v1252
        %v1254 = vperm.slane %v1248, %v1253
        %v1256 = vunpack.c.l.s4 1934713408
        %v1257 = vunpack.c.0.s8 %v1256
        %v1258 = vperm.slane %v1250, %v1257
        %v1259 = vrot.slane %v1254, 4
        %v1260 = vsel %vm807, %v1259, %v1242
        %v1261 = vrot.slane %v1242, 4
        %v1262 = vsel %vm807, %v1254, %v1261
        %v1263 = vrot.slane %v1258, 4
        %v1264 = vsel %vm807, %v1263, %v1246
        %v1265 = vrot.slane %v1246, 4
        %v1266 = vsel %vm807, %v1258, %v1265
        %1269 = vrot.lane.b32.xlu0 %v781, 96
        %v1270 = vpop.permute.xlu0 %1269
        %1271 = vrot.lane.b32.xlu0 %v784, 96
        %v1272 = vpop.permute.xlu0 %1271
        %1275 = vrot.lane.b32.xlu0 %v781, 64
        %v1276 = vpop.permute.xlu0 %1275
        %1277 = vrot.lane.b32.xlu0 %v784, 64
        %v1278 = vpop.permute.xlu0 %1277
        %1281 = vrot.lane.b32.xlu0 %v781, 32
        %v1282 = vpop.permute.xlu0 %1281
        %1283 = vrot.lane.b32.xlu0 %v784, 32
        %v1284 = vpop.permute.xlu0 %1283
        %v1287 = vrot.slane %v1276, 4
        %v1288 = vsel %vm807, %v1287, %v781
        %v1289 = vrot.slane %v781, 4
        %v1290 = vsel %vm807, %v1276, %v1289
        %v1292 = vunpack.c.l.s4 1983009808
        %v1293 = vunpack.c.0.s8 %v1292
        %v1294 = vperm.slane %v1288, %v1293
        %v1296 = vunpack.c.l.s4 1983009808
        %v1297 = vunpack.c.0.s8 %v1296
        %v1298 = vperm.slane %v1290, %v1297
        %v1299 = vrot.slane %v1282, 4
        %v1300 = vsel %vm807, %v1299, %v1270
        %v1301 = vrot.slane %v1270, 4
        %v1302 = vsel %vm807, %v1282, %v1301
        %v1304 = vunpack.c.l.s4 1983009808
        %v1305 = vunpack.c.0.s8 %v1304
        %v1306 = vperm.slane %v1300, %v1305
        %v1308 = vunpack.c.l.s4 1983009808
        %v1309 = vunpack.c.0.s8 %v1308
        %v1310 = vperm.slane %v1302, %v1309
        %v1311 = vrot.slane %v1306, 4
        %v1312 = vsel %vm807, %v1311, %v1294
        %v1313 = vrot.slane %v1294, 4
        %v1314 = vsel %vm807, %v1306, %v1313
        %v1316 = vunpack.c.l.s4 1934713408
        %v1317 = vunpack.c.0.s8 %v1316
        %v1318 = vperm.slane %v1312, %v1317
        %v1320 = vunpack.c.l.s4 1934713408
        %v1321 = vunpack.c.0.s8 %v1320
        %v1322 = vperm.slane %v1314, %v1321
        %v1323 = vrot.slane %v1310, 4
        %v1324 = vsel %vm807, %v1323, %v1298
        %v1325 = vrot.slane %v1298, 4
        %v1326 = vsel %vm807, %v1310, %v1325
        %v1328 = vunpack.c.l.s4 1934713408
        %v1329 = vunpack.c.0.s8 %v1328
        %v1330 = vperm.slane %v1324, %v1329
        %v1332 = vunpack.c.l.s4 1934713408
        %v1333 = vunpack.c.0.s8 %v1332
        %v1334 = vperm.slane %v1326, %v1333
        %v1335 = vrot.slane %v1318, 4
        %v1336 = vsel %vm807, 0.0, %v1335
        %v1337 = vrot.slane %v1322, 4
        %v1338 = vsel %vm807, 0.0, %v1337
        %v1339 = vrot.slane %v1330, 4
        %v1340 = vsel %vm807, 0.0, %v1339
        %v1341 = vrot.slane %v1334, 4
        %v1342 = vsel %vm807, 0.0, %v1341
        %v1343 = vrot.slane %v1278, 4
        %v1344 = vsel %vm807, %v1343, %v784
        %v1345 = vrot.slane %v784, 4
        %v1346 = vsel %vm807, %v1278, %v1345
        %v1348 = vunpack.c.l.s4 1983009808
        %v1349 = vunpack.c.0.s8 %v1348
        %v1350 = vperm.slane %v1344, %v1349
        %v1352 = vunpack.c.l.s4 1983009808
        %v1353 = vunpack.c.0.s8 %v1352
        %v1354 = vperm.slane %v1346, %v1353
        %v1355 = vrot.slane %v1284, 4
        %v1356 = vsel %vm807, %v1355, %v1272
        %v1357 = vrot.slane %v1272, 4
        %v1358 = vsel %vm807, %v1284, %v1357
        %v1360 = vunpack.c.l.s4 1983009808
        %v1361 = vunpack.c.0.s8 %v1360
        %v1362 = vperm.slane %v1356, %v1361
        %v1364 = vunpack.c.l.s4 1983009808
        %v1365 = vunpack.c.0.s8 %v1364
        %v1366 = vperm.slane %v1358, %v1365
        %v1367 = vrot.slane %v1362, 4
        %v1368 = vsel %vm807, %v1367, %v1350
        %v1369 = vrot.slane %v1350, 4
        %v1370 = vsel %vm807, %v1362, %v1369
        %v1372 = vunpack.c.l.s4 1934713408
        %v1373 = vunpack.c.0.s8 %v1372
        %v1374 = vperm.slane %v1368, %v1373
        %v1376 = vunpack.c.l.s4 1934713408
        %v1377 = vunpack.c.0.s8 %v1376
        %v1378 = vperm.slane %v1370, %v1377
        %v1379 = vrot.slane %v1366, 4
        %v1380 = vsel %vm807, %v1379, %v1354
        %v1381 = vrot.slane %v1354, 4
        %v1382 = vsel %vm807, %v1366, %v1381
        %v1384 = vunpack.c.l.s4 1934713408
        %v1385 = vunpack.c.0.s8 %v1384
        %v1386 = vperm.slane %v1380, %v1385
        %v1388 = vunpack.c.l.s4 1934713408
        %v1389 = vunpack.c.0.s8 %v1388
        %v1390 = vperm.slane %v1382, %v1389
        %v1391 = vrot.slane %v1374, 4
        %v1392 = vsel %vm807, 0.0, %v1391
        %v1393 = vrot.slane %v1378, 4
        %v1394 = vsel %vm807, 0.0, %v1393
        %v1395 = vrot.slane %v1386, 4
        %v1396 = vsel %vm807, 0.0, %v1395
        %v1397 = vrot.slane %v1390, 4
        %v1398 = vsel %vm807, 0.0, %v1397
        %v1399 = vsel %vm807, %v1337, %v1318
        %v1401 = vunpack.c.l.s4 1983009808
        %v1402 = vunpack.c.0.s8 %v1401
        %v1403 = vperm.slane %v1399, %v1402
        %v1404 = vrot.slane %v1338, 4
        %v1405 = vsel %vm807, %v1404, %v1336
        %v1407 = vunpack.c.l.s4 1983009808
        %v1408 = vunpack.c.0.s8 %v1407
        %v1409 = vperm.slane %v1405, %v1408
        %v1410 = vsel %vm807, %v1341, %v1330
        %v1412 = vunpack.c.l.s4 1983009808
        %v1413 = vunpack.c.0.s8 %v1412
        %v1414 = vperm.slane %v1410, %v1413
        %v1415 = vrot.slane %v1342, 4
        %v1416 = vsel %vm807, %v1415, %v1340
        %v1418 = vunpack.c.l.s4 1983009808
        %v1419 = vunpack.c.0.s8 %v1418
        %v1420 = vperm.slane %v1416, %v1419
        %v1421 = vrot.slane %v1409, 4
        %v1422 = vsel %vm807, %v1421, %v1403
        %v1423 = vrot.slane %v1403, 4
        %v1424 = vsel %vm807, %v1409, %v1423
        %v1426 = vunpack.c.l.s4 1934713408
        %v1427 = vunpack.c.0.s8 %v1426
        %v1428 = vperm.slane %v1422, %v1427
        %v1430 = vunpack.c.l.s4 1934713408
        %v1431 = vunpack.c.0.s8 %v1430
        %v1432 = vperm.slane %v1424, %v1431
        %v1433 = vrot.slane %v1420, 4
        %v1434 = vsel %vm807, %v1433, %v1414
        %v1435 = vrot.slane %v1414, 4
        %v1436 = vsel %vm807, %v1420, %v1435
        %v1438 = vunpack.c.l.s4 1934713408
        %v1439 = vunpack.c.0.s8 %v1438
        %v1440 = vperm.slane %v1434, %v1439
        %v1442 = vunpack.c.l.s4 1934713408
        %v1443 = vunpack.c.0.s8 %v1442
        %v1444 = vperm.slane %v1436, %v1443
        %v1445 = vrot.slane %v1440, 4
        %v1446 = vsel %vm807, %v1445, %v1428
        %v1447 = vrot.slane %v1428, 4
        %v1448 = vsel %vm807, %v1440, %v1447
        %v1449 = vrot.slane %v1444, 4
        %v1450 = vsel %vm807, %v1449, %v1432
        %v1451 = vrot.slane %v1432, 4
        %v1452 = vsel %vm807, %v1444, %v1451
        %v1453 = vsel %vm807, %v1393, %v1374
        %v1455 = vunpack.c.l.s4 1983009808
        %v1456 = vunpack.c.0.s8 %v1455
        %v1457 = vperm.slane %v1453, %v1456
        %v1458 = vrot.slane %v1394, 4
        %v1459 = vsel %vm807, %v1458, %v1392
        %v1461 = vunpack.c.l.s4 1983009808
        %v1462 = vunpack.c.0.s8 %v1461
        %v1463 = vperm.slane %v1459, %v1462
        %v1464 = vsel %vm807, %v1397, %v1386
        %v1466 = vunpack.c.l.s4 1983009808
        %v1467 = vunpack.c.0.s8 %v1466
        %v1468 = vperm.slane %v1464, %v1467
        %v1469 = vrot.slane %v1398, 4
        %v1470 = vsel %vm807, %v1469, %v1396
        %v1472 = vunpack.c.l.s4 1983009808
        %v1473 = vunpack.c.0.s8 %v1472
        %v1474 = vperm.slane %v1470, %v1473
        %v1475 = vrot.slane %v1463, 4
        %v1476 = vsel %vm807, %v1475, %v1457
        %v1477 = vrot.slane %v1457, 4
        %v1478 = vsel %vm807, %v1463, %v1477
        %v1480 = vunpack.c.l.s4 1934713408
        %v1481 = vunpack.c.0.s8 %v1480
        %v1482 = vperm.slane %v1476, %v1481
        %v1484 = vunpack.c.l.s4 1934713408
        %v1485 = vunpack.c.0.s8 %v1484
        %v1486 = vperm.slane %v1478, %v1485
        %v1487 = vrot.slane %v1474, 4
        %v1488 = vsel %vm807, %v1487, %v1468
        %v1489 = vrot.slane %v1468, 4
        %v1490 = vsel %vm807, %v1474, %v1489
        %v1492 = vunpack.c.l.s4 1934713408
        %v1493 = vunpack.c.0.s8 %v1492
        %v1494 = vperm.slane %v1488, %v1493
        %v1496 = vunpack.c.l.s4 1934713408
        %v1497 = vunpack.c.0.s8 %v1496
        %v1498 = vperm.slane %v1490, %v1497
        %v1499 = vrot.slane %v1494, 4
        %v1500 = vsel %vm807, %v1499, %v1482
        %v1501 = vrot.slane %v1482, 4
        %v1502 = vsel %vm807, %v1494, %v1501
        %v1503 = vrot.slane %v1498, 4
        %v1504 = vsel %vm807, %v1503, %v1486
        %v1505 = vrot.slane %v1486, 4
        %v1506 = vsel %vm807, %v1498, %v1505
        %vm1507 = vcmask 261120
        %v1509 = vsel %vm1507, %v966, 0
        %v1512 = vsel %vm1507, %v1020, 0
        %v1515 = vsel %vm1507, %v1206, 0
        %v1518 = vsel %vm1507, %v1260, 0
        %1520 = vmatpush.xpose.msra.mxu0 0.0
        %1521 = vmatpush.xpose.msra.mxu0 0.0
        %1522 = vmatpush.xpose.msra.mxu0 0.0
        %1523 = vmatpush.xpose.msra.mxu0 0.0
        %1524 = vmatpush.xpose.msra.mxu0 0.0
        %1525 = vmatpush.xpose.msra.mxu0 0.0
        %1526 = vmatpush.xpose.msra.mxu0 0.0
        %1527 = vmatpush.xpose.msra.mxu0 0.0
        %1528 = vmatpush.xpose.msra.mxu0 0.0
        %1529 = vmatpush.xpose.msra.mxu0 0.0
        %1530 = vmatpush.xpose.msra.mxu0 0.0
        %1531 = vmatpush.xpose.msra.mxu0 0.0
        %1532 = vmatpush.xpose.msra.mxu0 0.0
        %1533 = vmatpush.xpose.msra.mxu0 0.0
        %1534 = vmatpush.xpose.msra.mxu0 %v1518
        %1535 = vmatpush.xpose.msra.mxu0 %v1515
        %1536 = vmatmul.f32.gmra.mxu0 %v1509
        %v1537 = vpop.f32.mrf.mxu0
        %v1538 = vadd.f32 0.0, %v1537
        %1539 = vmatmul.f32.gmra.mxu0 %v1512
        %v1540 = vpop.f32.mrf.mxu0
        %v1541 = vadd.f32 0.0, %v1540
        %1542 = vdwg.mxu0
        %v1544 = vsel %vm1507, %v968, 0
        %v1547 = vsel %vm1507, %v1022, 0
        %v1550 = vsel %vm1507, %v1208, 0
        %v1553 = vsel %vm1507, %v1262, 0
        %1555 = vmatpush.xpose.msra.mxu0 0.0
        %1556 = vmatpush.xpose.msra.mxu0 0.0
        %1557 = vmatpush.xpose.msra.mxu0 0.0
        %1558 = vmatpush.xpose.msra.mxu0 0.0
        %1559 = vmatpush.xpose.msra.mxu0 0.0
        %1560 = vmatpush.xpose.msra.mxu0 0.0
        %1561 = vmatpush.xpose.msra.mxu0 0.0
        %1562 = vmatpush.xpose.msra.mxu0 0.0
        %1563 = vmatpush.xpose.msra.mxu0 0.0
        %1564 = vmatpush.xpose.msra.mxu0 0.0
        %1565 = vmatpush.xpose.msra.mxu0 0.0
        %1566 = vmatpush.xpose.msra.mxu0 0.0
        %1567 = vmatpush.xpose.msra.mxu0 0.0
        %1568 = vmatpush.xpose.msra.mxu0 0.0
        %1569 = vmatpush.xpose.msra.mxu0 %v1553
        %1570 = vmatpush.xpose.msra.mxu0 %v1550
        %1571 = vmatmul.f32.gmra.mxu0 %v1544
        %v1572 = vpop.f32.mrf.mxu0
        %v1573 = vadd.f32 0.0, %v1572
        %1574 = vmatmul.f32.gmra.mxu0 %v1547
        %v1575 = vpop.f32.mrf.mxu0
        %v1576 = vadd.f32 0.0, %v1575
        %1577 = vdwg.mxu0
        %v1579 = vsel %vm1507, %v970, 0
        %v1582 = vsel %vm1507, %v1024, 0
        %v1585 = vsel %vm1507, %v1210, 0
        %v1588 = vsel %vm1507, %v1264, 0
        %1590 = vmatpush.xpose.msra.mxu0 0.0
        %1591 = vmatpush.xpose.msra.mxu0 0.0
        %1592 = vmatpush.xpose.msra.mxu0 0.0
        %1593 = vmatpush.xpose.msra.mxu0 0.0
        %1594 = vmatpush.xpose.msra.mxu0 0.0
        %1595 = vmatpush.xpose.msra.mxu0 0.0
        %1596 = vmatpush.xpose.msra.mxu0 0.0
        %1597 = vmatpush.xpose.msra.mxu0 0.0
        %1598 = vmatpush.xpose.msra.mxu0 0.0
        %1599 = vmatpush.xpose.msra.mxu0 0.0
        %1600 = vmatpush.xpose.msra.mxu0 0.0
        %1601 = vmatpush.xpose.msra.mxu0 0.0
        %1602 = vmatpush.xpose.msra.mxu0 0.0
        %1603 = vmatpush.xpose.msra.mxu0 0.0
        %1604 = vmatpush.xpose.msra.mxu0 %v1588
        %1605 = vmatpush.xpose.msra.mxu0 %v1585
        %1606 = vmatmul.f32.gmra.mxu0 %v1579
        %v1607 = vpop.f32.mrf.mxu0
        %v1608 = vadd.f32 0.0, %v1607
        %1609 = vmatmul.f32.gmra.mxu0 %v1582
        %v1610 = vpop.f32.mrf.mxu0
        %v1611 = vadd.f32 0.0, %v1610
        %1612 = vdwg.mxu0
        %v1614 = vsel %vm1507, %v972, 0
        %v1617 = vsel %vm1507, %v1026, 0
        %v1620 = vsel %vm1507, %v1212, 0
        %v1623 = vsel %vm1507, %v1266, 0
        %1625 = vmatpush.xpose.msra.mxu0 0.0
        %1626 = vmatpush.xpose.msra.mxu0 0.0
        %1627 = vmatpush.xpose.msra.mxu0 0.0
        %1628 = vmatpush.xpose.msra.mxu0 0.0
        %1629 = vmatpush.xpose.msra.mxu0 0.0
        %1630 = vmatpush.xpose.msra.mxu0 0.0
        %1631 = vmatpush.xpose.msra.mxu0 0.0
        %1632 = vmatpush.xpose.msra.mxu0 0.0
        %1633 = vmatpush.xpose.msra.mxu0 0.0
        %1634 = vmatpush.xpose.msra.mxu0 0.0
        %1635 = vmatpush.xpose.msra.mxu0 0.0
        %1636 = vmatpush.xpose.msra.mxu0 0.0
        %1637 = vmatpush.xpose.msra.mxu0 0.0
        %1638 = vmatpush.xpose.msra.mxu0 0.0
        %1639 = vmatpush.xpose.msra.mxu0 %v1623
        %1640 = vmatpush.xpose.msra.mxu0 %v1620
        %1641 = vmatmul.f32.gmra.mxu0 %v1614
        %v1642 = vpop.f32.mrf.mxu0
        %v1643 = vadd.f32 0.0, %v1642
        %1644 = vmatmul.f32.gmra.mxu0 %v1617
        %v1645 = vpop.f32.mrf.mxu0
        %v1646 = vadd.f32 0.0, %v1645
        %1647 = vdwg.mxu0
        %v1648 = vlaneseq
        %v1649 = vand.u32 %v1648, 127
        %vm1650 = vcmp.lt.s32.totalorder %v1649, 8
        %v1651 = vsel %vm1650, 1, 0
        %vm1652 = vcmp.eq.s32.totalorder %v1651, 1
        %v1653 = vsel %vm1652, %v1538, -1e+30
        %v1654 = vsel %vm1652, %v1541, -1e+30
        %v1655 = vsel %vm1652, %v1573, -1e+30
        %v1656 = vsel %vm1652, %v1576, -1e+30
        %v1657 = vsel %vm1652, %v1608, -1e+30
        %v1658 = vsel %vm1652, %v1611, -1e+30
        %v1659 = vsel %vm1652, %v1643, -1e+30
        %v1660 = vsel %vm1652, %v1646, -1e+30
        %vm1661 = vcmask 130048
        %v1662 = vsel %vm1661, %v1653, -inf
        %1663 = vmax.xlane.f32.xlu0 %v1662
        %v1664 = vpop.xlane.xlu0 %1663
        %v1665 = vsel %vm1661, %v1654, -inf
        %1666 = vmax.xlane.f32.xlu0 %v1665
        %v1667 = vpop.xlane.xlu0 %1666
        %v1668 = vsel %vm1661, %v1655, -inf
        %1669 = vmax.xlane.f32.xlu0 %v1668
        %v1670 = vpop.xlane.xlu0 %1669
        %v1671 = vsel %vm1661, %v1656, -inf
        %1672 = vmax.xlane.f32.xlu0 %v1671
        %v1673 = vpop.xlane.xlu0 %1672
        %v1674 = vsel %vm1661, %v1657, -inf
        %1675 = vmax.xlane.f32.xlu0 %v1674
        %v1676 = vpop.xlane.xlu0 %1675
        %v1677 = vsel %vm1661, %v1658, -inf
        %1678 = vmax.xlane.f32.xlu0 %v1677
        %v1679 = vpop.xlane.xlu0 %1678
        %v1680 = vsel %vm1661, %v1659, -inf
        %1681 = vmax.xlane.f32.xlu0 %v1680
        %v1682 = vpop.xlane.xlu0 %1681
        %v1683 = vsel %vm1661, %v1660, -inf
        %1684 = vmax.xlane.f32.xlu0 %v1683
        %v1685 = vpop.xlane.xlu0 %1684
        %v1686 = vsub.f32 %v1653, %v1664
        %v1687 = vsub.f32 %v1654, %v1667
        %v1688 = vsub.f32 %v1655, %v1670
        %v1689 = vsub.f32 %v1656, %v1673
        %v1690 = vsub.f32 %v1657, %v1676
        %v1691 = vsub.f32 %v1658, %v1679
        %v1692 = vsub.f32 %v1659, %v1682
        %v1693 = vsub.f32 %v1660, %v1685
        %v1694 = vmul.f32 %v1686, 1.442695
        %v1695 = vpow.pop %v1694
        %v1696 = vmul.f32 %v1687, 1.442695
        %v1697 = vpow.pop %v1696
        %v1698 = vmul.f32 %v1688, 1.442695
        %v1699 = vpow.pop %v1698
        %v1700 = vmul.f32 %v1689, 1.442695
        %v1701 = vpow.pop %v1700
        %v1702 = vmul.f32 %v1690, 1.442695
        %v1703 = vpow.pop %v1702
        %v1704 = vmul.f32 %v1691, 1.442695
        %v1705 = vpow.pop %v1704
        %v1706 = vmul.f32 %v1692, 1.442695
        %v1707 = vpow.pop %v1706
        %v1708 = vmul.f32 %v1693, 1.442695
        %v1709 = vpow.pop %v1708
        %v1710 = vsel %vm1661, %v1695, 0.0
        %1711 = vadd.xlane.f32.xlu0 %v1710
        %v1712 = vpop.xlane.xlu0 %1711
        %v1713 = vsel %vm1661, %v1697, 0.0
        %1714 = vadd.xlane.f32.xlu0 %v1713
        %v1715 = vpop.xlane.xlu0 %1714
        %v1716 = vsel %vm1661, %v1699, 0.0
        %1717 = vadd.xlane.f32.xlu0 %v1716
        %v1718 = vpop.xlane.xlu0 %1717
        %v1719 = vsel %vm1661, %v1701, 0.0
        %1720 = vadd.xlane.f32.xlu0 %v1719
        %v1721 = vpop.xlane.xlu0 %1720
        %v1722 = vsel %vm1661, %v1703, 0.0
        %1723 = vadd.xlane.f32.xlu0 %v1722
        %v1724 = vpop.xlane.xlu0 %1723
        %v1725 = vsel %vm1661, %v1705, 0.0
        %1726 = vadd.xlane.f32.xlu0 %v1725
        %v1727 = vpop.xlane.xlu0 %1726
        %v1728 = vsel %vm1661, %v1707, 0.0
        %1729 = vadd.xlane.f32.xlu0 %v1728
        %v1730 = vpop.xlane.xlu0 %1729
        %v1731 = vsel %vm1661, %v1709, 0.0
        %1732 = vadd.xlane.f32.xlu0 %v1731
        %v1733 = vpop.xlane.xlu0 %1732
        %v1734 = vrcp.pop %v1712
        %v1735 = vrcp.pop %v1715
        %v1736 = vrcp.pop %v1718
        %v1737 = vrcp.pop %v1721
        %v1738 = vrcp.pop %v1724
        %v1739 = vrcp.pop %v1727
        %v1740 = vrcp.pop %v1730
        %v1741 = vrcp.pop %v1733
        %v1742 = vmul.f32 %v1695, %v1734
        %v1743 = vmul.f32 %v1697, %v1735
        %v1744 = vmul.f32 %v1699, %v1736
        %v1745 = vmul.f32 %v1701, %v1737
        %v1746 = vmul.f32 %v1703, %v1738
        %v1747 = vmul.f32 %v1705, %v1739
        %v1748 = vmul.f32 %v1707, %v1740
        %v1749 = vmul.f32 %v1709, %v1741
        %v1751 = vsel %vm1661, %v1742, 0
        %v1754 = vsel %vm1661, %v1743, 0
        %1756 = vmatpush.msra.mxu0 0.0
        %1757 = vmatpush.msra.mxu0 0.0
        %1758 = vmatpush.msra.mxu0 0.0
        %1759 = vmatpush.msra.mxu0 0.0
        %1760 = vmatpush.msra.mxu0 0.0
        %1761 = vmatpush.msra.mxu0 0.0
        %1762 = vmatpush.msra.mxu0 0.0
        %1763 = vmatpush.msra.mxu0 0.0
        %1764 = vmatpush.msra.mxu0 0.0
        %1765 = vmatpush.msra.mxu0 0.0
        %1766 = vmatpush.msra.mxu0 0.0
        %1767 = vmatpush.msra.mxu0 0.0
        %1768 = vmatpush.msra.mxu0 0.0
        %1769 = vmatpush.msra.mxu0 0.0
        %1770 = vmatpush.msra.mxu0 %v1500
        %1771 = vmatpush.msra.mxu0 %v1446
        %1772 = vmatmul.f32.gmra.mxu0 %v1751
        %v1773 = vpop.f32.mrf.mxu0
        %v1774 = vadd.f32 0.0, %v1773
        %1775 = vmatmul.f32.gmra.mxu0 %v1754
        %v1776 = vpop.f32.mrf.mxu0
        %v1777 = vadd.f32 0.0, %v1776
        %1778 = vdwg.mxu0
        %v1780 = vsel %vm1661, %v1744, 0
        %v1783 = vsel %vm1661, %v1745, 0
        %1785 = vmatpush.msra.mxu0 0.0
        %1786 = vmatpush.msra.mxu0 0.0
        %1787 = vmatpush.msra.mxu0 0.0
        %1788 = vmatpush.msra.mxu0 0.0
        %1789 = vmatpush.msra.mxu0 0.0
        %1790 = vmatpush.msra.mxu0 0.0
        %1791 = vmatpush.msra.mxu0 0.0
        %1792 = vmatpush.msra.mxu0 0.0
        %1793 = vmatpush.msra.mxu0 0.0
        %1794 = vmatpush.msra.mxu0 0.0
        %1795 = vmatpush.msra.mxu0 0.0
        %1796 = vmatpush.msra.mxu0 0.0
        %1797 = vmatpush.msra.mxu0 0.0
        %1798 = vmatpush.msra.mxu0 0.0
        %1799 = vmatpush.msra.mxu0 %v1502
        %1800 = vmatpush.msra.mxu0 %v1448
        %1801 = vmatmul.f32.gmra.mxu0 %v1780
        %v1802 = vpop.f32.mrf.mxu0
        %v1803 = vadd.f32 0.0, %v1802
        %1804 = vmatmul.f32.gmra.mxu0 %v1783
        %v1805 = vpop.f32.mrf.mxu0
        %v1806 = vadd.f32 0.0, %v1805
        %1807 = vdwg.mxu0
        %v1809 = vsel %vm1661, %v1746, 0
        %v1812 = vsel %vm1661, %v1747, 0
        %1814 = vmatpush.msra.mxu0 0.0
        %1815 = vmatpush.msra.mxu0 0.0
        %1816 = vmatpush.msra.mxu0 0.0
        %1817 = vmatpush.msra.mxu0 0.0
        %1818 = vmatpush.msra.mxu0 0.0
        %1819 = vmatpush.msra.mxu0 0.0
        %1820 = vmatpush.msra.mxu0 0.0
        %1821 = vmatpush.msra.mxu0 0.0
        %1822 = vmatpush.msra.mxu0 0.0
        %1823 = vmatpush.msra.mxu0 0.0
        %1824 = vmatpush.msra.mxu0 0.0
        %1825 = vmatpush.msra.mxu0 0.0
        %1826 = vmatpush.msra.mxu0 0.0
        %1827 = vmatpush.msra.mxu0 0.0
        %1828 = vmatpush.msra.mxu0 %v1504
        %1829 = vmatpush.msra.mxu0 %v1450
        %1830 = vmatmul.f32.gmra.mxu0 %v1809
        %v1831 = vpop.f32.mrf.mxu0
        %v1832 = vadd.f32 0.0, %v1831
        %1833 = vmatmul.f32.gmra.mxu0 %v1812
        %v1834 = vpop.f32.mrf.mxu0
        %v1835 = vadd.f32 0.0, %v1834
        %1836 = vdwg.mxu0
        %v1838 = vsel %vm1661, %v1748, 0
        %v1841 = vsel %vm1661, %v1749, 0
        %1843 = vmatpush.msra.mxu0 0.0
        %1844 = vmatpush.msra.mxu0 0.0
        %1845 = vmatpush.msra.mxu0 0.0
        %1846 = vmatpush.msra.mxu0 0.0
        %1847 = vmatpush.msra.mxu0 0.0
        %1848 = vmatpush.msra.mxu0 0.0
        %1849 = vmatpush.msra.mxu0 0.0
        %1850 = vmatpush.msra.mxu0 0.0
        %1851 = vmatpush.msra.mxu0 0.0
        %1852 = vmatpush.msra.mxu0 0.0
        %1853 = vmatpush.msra.mxu0 0.0
        %1854 = vmatpush.msra.mxu0 0.0
        %1855 = vmatpush.msra.mxu0 0.0
        %1856 = vmatpush.msra.mxu0 0.0
        %1857 = vmatpush.msra.mxu0 %v1506
        %1858 = vmatpush.msra.mxu0 %v1452
        %1859 = vmatmul.f32.gmra.mxu0 %v1838
        %v1860 = vpop.f32.mrf.mxu0
        %v1861 = vadd.f32 0.0, %v1860
        %1862 = vmatmul.f32.gmra.mxu0 %v1841
        %v1863 = vpop.f32.mrf.mxu0
        %v1864 = vadd.f32 0.0, %v1863
        %1865 = vdwg.mxu0
        %v1866 = vrot.slane %v1832, 4
        %v1867 = vsel %vm807, %v1866, %v1774
        %v1868 = vrot.slane %v1774, 4
        %v1869 = vsel %vm807, %v1832, %v1868
        %v1871 = vunpack.c.l.s4 1983009808
        %v1872 = vunpack.c.0.s8 %v1871
        %v1873 = vperm.slane %v1867, %v1872
        %v1875 = vunpack.c.l.s4 1983009808
        %v1876 = vunpack.c.0.s8 %v1875
        %v1877 = vperm.slane %v1869, %v1876
        %v1878 = vrot.slane %v1861, 4
        %v1879 = vsel %vm807, %v1878, %v1803
        %v1880 = vrot.slane %v1803, 4
        %v1881 = vsel %vm807, %v1861, %v1880
        %v1883 = vunpack.c.l.s4 1983009808
        %v1884 = vunpack.c.0.s8 %v1883
        %v1885 = vperm.slane %v1879, %v1884
        %v1887 = vunpack.c.l.s4 1983009808
        %v1888 = vunpack.c.0.s8 %v1887
        %v1889 = vperm.slane %v1881, %v1888
        %v1890 = vrot.slane %v1885, 4
        %v1891 = vsel %vm807, %v1890, %v1873
        %v1892 = vrot.slane %v1873, 4
        %v1893 = vsel %vm807, %v1885, %v1892
        %v1895 = vunpack.c.l.s4 1934713408
        %v1896 = vunpack.c.0.s8 %v1895
        %v1897 = vperm.slane %v1891, %v1896
        %v1899 = vunpack.c.l.s4 1934713408
        %v1900 = vunpack.c.0.s8 %v1899
        %v1901 = vperm.slane %v1893, %v1900
        %v1902 = vrot.slane %v1889, 4
        %v1903 = vsel %vm807, %v1902, %v1877
        %v1904 = vrot.slane %v1877, 4
        %v1905 = vsel %vm807, %v1889, %v1904
        %v1907 = vunpack.c.l.s4 1934713408
        %v1908 = vunpack.c.0.s8 %v1907
        %v1909 = vperm.slane %v1903, %v1908
        %v1911 = vunpack.c.l.s4 1934713408
        %v1912 = vunpack.c.0.s8 %v1911
        %v1913 = vperm.slane %v1905, %v1912
        %v1914 = vrot.slane %v1897, 4
        %v1915 = vsel %vm807, 0.0, %v1914
        %v1916 = vrot.slane %v1901, 4
        %v1917 = vsel %vm807, 0.0, %v1916
        %v1918 = vrot.slane %v1909, 4
        %v1919 = vsel %vm807, 0.0, %v1918
        %v1920 = vrot.slane %v1913, 4
        %v1921 = vsel %vm807, 0.0, %v1920
        %v1922 = vrot.slane %v1835, 4
        %v1923 = vsel %vm807, %v1922, %v1777
        %v1924 = vrot.slane %v1777, 4
        %v1925 = vsel %vm807, %v1835, %v1924
        %v1927 = vunpack.c.l.s4 1983009808
        %v1928 = vunpack.c.0.s8 %v1927
        %v1929 = vperm.slane %v1923, %v1928
        %v1931 = vunpack.c.l.s4 1983009808
        %v1932 = vunpack.c.0.s8 %v1931
        %v1933 = vperm.slane %v1925, %v1932
        %v1934 = vrot.slane %v1864, 4
        %v1935 = vsel %vm807, %v1934, %v1806
        %v1936 = vrot.slane %v1806, 4
        %v1937 = vsel %vm807, %v1864, %v1936
        %v1939 = vunpack.c.l.s4 1983009808
        %v1940 = vunpack.c.0.s8 %v1939
        %v1941 = vperm.slane %v1935, %v1940
        %v1943 = vunpack.c.l.s4 1983009808
        %v1944 = vunpack.c.0.s8 %v1943
        %v1945 = vperm.slane %v1937, %v1944
        %v1946 = vrot.slane %v1941, 4
        %v1947 = vsel %vm807, %v1946, %v1929
        %v1948 = vrot.slane %v1929, 4
        %v1949 = vsel %vm807, %v1941, %v1948
        %v1951 = vunpack.c.l.s4 1934713408
        %v1952 = vunpack.c.0.s8 %v1951
        %v1953 = vperm.slane %v1947, %v1952
        %v1955 = vunpack.c.l.s4 1934713408
        %v1956 = vunpack.c.0.s8 %v1955
        %v1957 = vperm.slane %v1949, %v1956
        %v1958 = vrot.slane %v1945, 4
        %v1959 = vsel %vm807, %v1958, %v1933
        %v1960 = vrot.slane %v1933, 4
        %v1961 = vsel %vm807, %v1945, %v1960
        %v1963 = vunpack.c.l.s4 1934713408
        %v1964 = vunpack.c.0.s8 %v1963
        %v1965 = vperm.slane %v1959, %v1964
        %v1967 = vunpack.c.l.s4 1934713408
        %v1968 = vunpack.c.0.s8 %v1967
        %v1969 = vperm.slane %v1961, %v1968
        %v1970 = vrot.slane %v1953, 4
        %v1971 = vsel %vm807, 0.0, %v1970
        %v1972 = vrot.slane %v1957, 4
        %v1973 = vsel %vm807, 0.0, %v1972
        %v1974 = vrot.slane %v1965, 4
        %v1975 = vsel %vm807, 0.0, %v1974
        %v1976 = vrot.slane %v1969, 4
        %v1977 = vsel %vm807, 0.0, %v1976
        %v1978 = vsel %vm807, %v1916, %v1897
        %v1980 = vunpack.c.l.s4 1983009808
        %v1981 = vunpack.c.0.s8 %v1980
        %v1982 = vperm.slane %v1978, %v1981
        %v1983 = vrot.slane %v1917, 4
        %v1984 = vsel %vm807, %v1983, %v1915
        %v1986 = vunpack.c.l.s4 1983009808
        %v1987 = vunpack.c.0.s8 %v1986
        %v1988 = vperm.slane %v1984, %v1987
        %v1989 = vsel %vm807, %v1920, %v1909
        %v1991 = vunpack.c.l.s4 1983009808
        %v1992 = vunpack.c.0.s8 %v1991
        %v1993 = vperm.slane %v1989, %v1992
        %v1994 = vrot.slane %v1921, 4
        %v1995 = vsel %vm807, %v1994, %v1919
        %v1997 = vunpack.c.l.s4 1983009808
        %v1998 = vunpack.c.0.s8 %v1997
        %v1999 = vperm.slane %v1995, %v1998
        %v2000 = vrot.slane %v1988, 4
        %v2001 = vsel %vm807, %v2000, %v1982
        %v2002 = vrot.slane %v1982, 4
        %v2003 = vsel %vm807, %v1988, %v2002
        %v2005 = vunpack.c.l.s4 1934713408
        %v2006 = vunpack.c.0.s8 %v2005
        %v2007 = vperm.slane %v2001, %v2006
        %v2009 = vunpack.c.l.s4 1934713408
        %v2010 = vunpack.c.0.s8 %v2009
        %v2011 = vperm.slane %v2003, %v2010
        %v2012 = vrot.slane %v1999, 4
        %v2013 = vsel %vm807, %v2012, %v1993
        %v2014 = vrot.slane %v1993, 4
        %v2015 = vsel %vm807, %v1999, %v2014
        %v2017 = vunpack.c.l.s4 1934713408
        %v2018 = vunpack.c.0.s8 %v2017
        %v2019 = vperm.slane %v2013, %v2018
        %v2021 = vunpack.c.l.s4 1934713408
        %v2022 = vunpack.c.0.s8 %v2021
        %v2023 = vperm.slane %v2015, %v2022
        %v2024 = vrot.slane %v2019, 4
        %v2025 = vsel %vm807, %v2024, %v2007
        %v2026 = vrot.slane %v2007, 4
        %v2027 = vsel %vm807, %v2019, %v2026
        %v2028 = vrot.slane %v2023, 4
        %v2029 = vsel %vm807, %v2028, %v2011
        %v2030 = vrot.slane %v2011, 4
        %v2031 = vsel %vm807, %v2023, %v2030
        %v2032 = vsel %vm807, %v1972, %v1953
        %v2034 = vunpack.c.l.s4 1983009808
        %v2035 = vunpack.c.0.s8 %v2034
        %v2036 = vperm.slane %v2032, %v2035
        %v2037 = vrot.slane %v1973, 4
        %v2038 = vsel %vm807, %v2037, %v1971
        %v2040 = vunpack.c.l.s4 1983009808
        %v2041 = vunpack.c.0.s8 %v2040
        %v2042 = vperm.slane %v2038, %v2041
        %v2043 = vsel %vm807, %v1976, %v1965
        %v2045 = vunpack.c.l.s4 1983009808
        %v2046 = vunpack.c.0.s8 %v2045
        %v2047 = vperm.slane %v2043, %v2046
        %v2048 = vrot.slane %v1977, 4
        %v2049 = vsel %vm807, %v2048, %v1975
        %v2051 = vunpack.c.l.s4 1983009808
        %v2052 = vunpack.c.0.s8 %v2051
        %v2053 = vperm.slane %v2049, %v2052
        %v2054 = vrot.slane %v2042, 4
        %v2055 = vsel %vm807, %v2054, %v2036
        %v2056 = vrot.slane %v2036, 4
        %v2057 = vsel %vm807, %v2042, %v2056
        %v2059 = vunpack.c.l.s4 1934713408
        %v2060 = vunpack.c.0.s8 %v2059
        %v2061 = vperm.slane %v2055, %v2060
        %v2063 = vunpack.c.l.s4 1934713408
        %v2064 = vunpack.c.0.s8 %v2063
        %v2065 = vperm.slane %v2057, %v2064
        %v2066 = vrot.slane %v2053, 4
        %v2067 = vsel %vm807, %v2066, %v2047
        %v2068 = vrot.slane %v2047, 4
        %v2069 = vsel %vm807, %v2053, %v2068
        %v2071 = vunpack.c.l.s4 1934713408
        %v2072 = vunpack.c.0.s8 %v2071
        %v2073 = vperm.slane %v2067, %v2072
        %v2075 = vunpack.c.l.s4 1934713408
        %v2076 = vunpack.c.0.s8 %v2075
        %v2077 = vperm.slane %v2069, %v2076
        %v2078 = vrot.slane %v2073, 4
        %v2079 = vsel %vm807, %v2078, %v2061
        %v2080 = vrot.slane %v2061, 4
        %v2081 = vsel %vm807, %v2073, %v2080
        %v2082 = vrot.slane %v2077, 4
        %v2083 = vsel %vm807, %v2082, %v2065
        %v2084 = vrot.slane %v2065, 4
        %v2085 = vsel %vm807, %v2077, %v2084
        %2088 = vrot.lane.b32.xlu0 %v2027, 32
        %v2089 = vpop.permute.xlu0 %2088
        %2090 = vrot.lane.b32.xlu0 %v2081, 32
        %v2091 = vpop.permute.xlu0 %2090
        %2096 = vrot.lane.b32.xlu0 %v2029, 64
        %v2097 = vpop.permute.xlu0 %2096
        %2098 = vrot.lane.b32.xlu0 %v2083, 64
        %v2099 = vpop.permute.xlu0 %2098
        %2104 = vrot.lane.b32.xlu0 %v2031, 96
        %v2105 = vpop.permute.xlu0 %2104
        %2106 = vrot.lane.b32.xlu0 %v2085, 96
        %v2107 = vpop.permute.xlu0 %2106
        %v2110 = vsel %vm1507, %v2025, %v2089
        %v2111 = vsel %vm1507, %v2079, %v2091
        %vm2112 = vcmask 523264
        %v2113 = vsel %vm2112, %v2110, %v2097
        %v2114 = vsel %vm2112, %v2111, %v2099
        %vm2115 = vcmask 785408
        %v2116 = vsel %vm2115, %v2113, %v2105
        %v2117 = vsel %vm2115, %v2114, %v2107
        %v2118 = vld [vmem:[#allocation10] sm:$0xff]
        %v2119 = vld [vmem:[#allocation10 + $0x8] sm:$0xff]
        %v2120 = vld [vmem:[#allocation10 + $0x10] sm:$0xff]
        %v2121 = vld [vmem:[#allocation10 + $0x18] sm:$0xff]
        %v2122 = vld [vmem:[#allocation10 + $0x20] sm:$0xff]
        %v2123 = vld [vmem:[#allocation10 + $0x28] sm:$0xff]
        %v2124 = vld [vmem:[#allocation10 + $0x30] sm:$0xff]
        %v2125 = vld [vmem:[#allocation10 + $0x38] sm:$0xff]
        %v2126 = vld [vmem:[#allocation10 + $0x40] sm:$0xff]
        %v2127 = vld [vmem:[#allocation10 + $0x48] sm:$0xff]
        %v2128 = vld [vmem:[#allocation10 + $0x50] sm:$0xff]
        %v2129 = vld [vmem:[#allocation10 + $0x58] sm:$0xff]
        %v2130 = vld [vmem:[#allocation10 + $0x60] sm:$0xff]
        %v2131 = vld [vmem:[#allocation10 + $0x68] sm:$0xff]
        %v2132 = vld [vmem:[#allocation10 + $0x70] sm:$0xff]
        %v2133 = vld [vmem:[#allocation10 + $0x78] sm:$0xff]
        %v2134 = vld [vmem:[#allocation11] sm:$0x1]
        %v2136 = vperm.slane %v2134, 0
        %2138 = vmatpush.msra.mxu0 %v2133
        %2139 = vmatpush.msra.mxu0 %v2132
        %2140 = vmatpush.msra.mxu0 %v2131
        %2141 = vmatpush.msra.mxu0 %v2130
        %2142 = vmatpush.msra.mxu0 %v2129
        %2143 = vmatpush.msra.mxu0 %v2128
        %2144 = vmatpush.msra.mxu0 %v2127
        %2145 = vmatpush.msra.mxu0 %v2126
        %2146 = vmatpush.msra.mxu0 %v2125
        %2147 = vmatpush.msra.mxu0 %v2124
        %2148 = vmatpush.msra.mxu0 %v2123
        %2149 = vmatpush.msra.mxu0 %v2122
        %2150 = vmatpush.msra.mxu0 %v2121
        %2151 = vmatpush.msra.mxu0 %v2120
        %2152 = vmatpush.msra.mxu0 %v2119
        %2153 = vmatpush.msra.mxu0 %v2118
        %2154 = vmatmul.f32.gmra.mxu0 %v2116
        %v2155 = vpop.f32.mrf.mxu0
        %v2156 = vadd.f32 %v2136, %v2155
        %2157 = vmatmul.f32.gmra.mxu0 %v2117
        %v2158 = vpop.f32.mrf.mxu0
        %v2159 = vadd.f32 %v2136, %v2158
        %2160 = vdwg.mxu0
        %v2161 = vadd.f32 %v600, %v2156
        %v2162 = vadd.f32 %v601, %v2159
        %v2163 = vld [vmem:[#allocation13] sm:$0x1]
        %v2164 = vld [vmem:[#allocation14] sm:$0x1]
        %2165 = vadd.xlane.f32.xlu0 %v2161
        %v2166 = vpop.xlane.xlu0 %2165
        %2167 = vadd.xlane.f32.xlu0 %v2162
        %v2168 = vpop.xlane.xlu0 %2167
        %v2169 = vmul.f32 %v2166, %v614
        %v2170 = vmul.f32 %v2168, %v614
        %v2171 = vsub.f32 %v2161, %v2169
        %v2172 = vsub.f32 %v2162, %v2170
        %v2173 = vmul.f32 %v2171, %v2171
        %v2174 = vmul.f32 %v2172, %v2172
        %2175 = vadd.xlane.f32.xlu0 %v2173
        %v2176 = vpop.xlane.xlu0 %2175
        %2177 = vadd.xlane.f32.xlu0 %v2174
        %v2178 = vpop.xlane.xlu0 %2177
        %v2179 = vmul.f32 %v2176, %v614
        %v2180 = vmul.f32 %v2178, %v614
        %v2181 = vadd.f32 %v2179, 1e-05
        %v2182 = vadd.f32 %v2180, 1e-05
        %v2183 = vrsqrt.pop %v2181
        %v2184 = vmul.f32 %v2183, %v2181
        %v2185 = vmul.f32 %v2184, %v2183
        %v2186 = vmul.f32 0.5, %v2185
        %v2187 = vsub.f32 1.5, %v2186
        %v2188 = vmul.f32 %v2183, %v2187
        %vm2189 = vweird.f32 %v2181
        %vm2190 = vweird.f32 %v2183
        %vm2191 = vmor %vm2189, %vm2190
        %v2192 = vsel %vm2191, %v2183, %v2188
        %v2193 = vrsqrt.pop %v2182
        %v2194 = vmul.f32 %v2193, %v2182
        %v2195 = vmul.f32 %v2194, %v2193
        %v2196 = vmul.f32 0.5, %v2195
        %v2197 = vsub.f32 1.5, %v2196
        %v2198 = vmul.f32 %v2193, %v2197
        %vm2199 = vweird.f32 %v2182
        %vm2200 = vweird.f32 %v2193
        %vm2201 = vmor %vm2199, %vm2200
        %v2202 = vsel %vm2201, %v2193, %v2198
        %v2203 = vmul.f32 %v2171, %v2192
        %v2204 = vmul.f32 %v2172, %v2202
        %v2206 = vperm.slane %v2163, 0
        %v2208 = vmul.f32 %v2203, %v2206
        %v2209 = vmul.f32 %v2204, %v2206
        %v2211 = vperm.slane %v2164, 0
        %v2213 = vadd.f32 %v2208, %v2211
        %v2214 = vadd.f32 %v2209, %v2211
        %v2215 = vld [vmem:[#allocation16] sm:$0xff]
        %v2216 = vld [vmem:[#allocation16 + $0x8] sm:$0xff]
        %v2217 = vld [vmem:[#allocation16 + $0x10] sm:$0xff]
        %v2218 = vld [vmem:[#allocation16 + $0x18] sm:$0xff]
        %v2219 = vld [vmem:[#allocation16 + $0x20] sm:$0xff]
        %v2220 = vld [vmem:[#allocation16 + $0x28] sm:$0xff]
        %v2221 = vld [vmem:[#allocation16 + $0x30] sm:$0xff]
        %v2222 = vld [vmem:[#allocation16 + $0x38] sm:$0xff]
        %v2223 = vld [vmem:[#allocation16 + $0x40] sm:$0xff]
        %v2224 = vld [vmem:[#allocation16 + $0x48] sm:$0xff]
        %v2225 = vld [vmem:[#allocation16 + $0x50] sm:$0xff]
        %v2226 = vld [vmem:[#allocation16 + $0x58] sm:$0xff]
        %v2227 = vld [vmem:[#allocation16 + $0x60] sm:$0xff]
        %v2228 = vld [vmem:[#allocation16 + $0x68] sm:$0xff]
        %v2229 = vld [vmem:[#allocation16 + $0x70] sm:$0xff]
        %v2230 = vld [vmem:[#allocation16 + $0x78] sm:$0xff]
        %v2231 = vld [vmem:[#allocation16 + $0x80] sm:$0xff]
        %v2232 = vld [vmem:[#allocation16 + $0x88] sm:$0xff]
        %v2233 = vld [vmem:[#allocation16 + $0x90] sm:$0xff]
        %v2234 = vld [vmem:[#allocation16 + $0x98] sm:$0xff]
        %v2235 = vld [vmem:[#allocation16 + $0xa0] sm:$0xff]
        %v2236 = vld [vmem:[#allocation16 + $0xa8] sm:$0xff]
        %v2237 = vld [vmem:[#allocation16 + $0xb0] sm:$0xff]
        %v2238 = vld [vmem:[#allocation16 + $0xb8] sm:$0xff]
        %v2239 = vld [vmem:[#allocation16 + $0xc0] sm:$0xff]
        %v2240 = vld [vmem:[#allocation16 + $0xc8] sm:$0xff]
        %v2241 = vld [vmem:[#allocation16 + $0xd0] sm:$0xff]
        %v2242 = vld [vmem:[#allocation16 + $0xd8] sm:$0xff]
        %v2243 = vld [vmem:[#allocation16 + $0xe0] sm:$0xff]
        %v2244 = vld [vmem:[#allocation16 + $0xe8] sm:$0xff]
        %v2245 = vld [vmem:[#allocation16 + $0xf0] sm:$0xff]
        %v2246 = vld [vmem:[#allocation16 + $0xf8] sm:$0xff]
        %v2247 = vld [vmem:[#allocation16 + $0x100] sm:$0xff]
        %v2248 = vld [vmem:[#allocation16 + $0x108] sm:$0xff]
        %v2249 = vld [vmem:[#allocation16 + $0x110] sm:$0xff]
        %v2250 = vld [vmem:[#allocation16 + $0x118] sm:$0xff]
        %v2251 = vld [vmem:[#allocation16 + $0x120] sm:$0xff]
        %v2252 = vld [vmem:[#allocation16 + $0x128] sm:$0xff]
        %v2253 = vld [vmem:[#allocation16 + $0x130] sm:$0xff]
        %v2254 = vld [vmem:[#allocation16 + $0x138] sm:$0xff]
        %v2255 = vld [vmem:[#allocation16 + $0x140] sm:$0xff]
        %v2256 = vld [vmem:[#allocation16 + $0x148] sm:$0xff]
        %v2257 = vld [vmem:[#allocation16 + $0x150] sm:$0xff]
        %v2258 = vld [vmem:[#allocation16 + $0x158] sm:$0xff]
        %v2259 = vld [vmem:[#allocation16 + $0x160] sm:$0xff]
        %v2260 = vld [vmem:[#allocation16 + $0x168] sm:$0xff]
        %v2261 = vld [vmem:[#allocation16 + $0x170] sm:$0xff]
        %v2262 = vld [vmem:[#allocation16 + $0x178] sm:$0xff]
        %v2263 = vld [vmem:[#allocation16 + $0x180] sm:$0xff]
        %v2264 = vld [vmem:[#allocation16 + $0x188] sm:$0xff]
        %v2265 = vld [vmem:[#allocation16 + $0x190] sm:$0xff]
        %v2266 = vld [vmem:[#allocation16 + $0x198] sm:$0xff]
        %v2267 = vld [vmem:[#allocation16 + $0x1a0] sm:$0xff]
        %v2268 = vld [vmem:[#allocation16 + $0x1a8] sm:$0xff]
        %v2269 = vld [vmem:[#allocation16 + $0x1b0] sm:$0xff]
        %v2270 = vld [vmem:[#allocation16 + $0x1b8] sm:$0xff]
        %v2271 = vld [vmem:[#allocation16 + $0x1c0] sm:$0xff]
        %v2272 = vld [vmem:[#allocation16 + $0x1c8] sm:$0xff]
        %v2273 = vld [vmem:[#allocation16 + $0x1d0] sm:$0xff]
        %v2274 = vld [vmem:[#allocation16 + $0x1d8] sm:$0xff]
        %v2275 = vld [vmem:[#allocation16 + $0x1e0] sm:$0xff]
        %v2276 = vld [vmem:[#allocation16 + $0x1e8] sm:$0xff]
        %v2277 = vld [vmem:[#allocation16 + $0x1f0] sm:$0xff]
        %v2278 = vld [vmem:[#allocation16 + $0x1f8] sm:$0xff]
        %v2279 = vld [vmem:[%s10] sm:$0xf]
        %v2281 = vperm.slane %v2279, 0
        %v2282 = vperm.slane %v2279, 1
        %v2283 = vperm.slane %v2279, 2
        %v2284 = vperm.slane %v2279, 3
        %2289 = vmatpush.msra.mxu0 %v2275
        %2290 = vmatpush.msra.mxu0 %v2271
        %2291 = vmatpush.msra.mxu0 %v2267
        %2292 = vmatpush.msra.mxu0 %v2263
        %2293 = vmatpush.msra.mxu0 %v2259
        %2294 = vmatpush.msra.mxu0 %v2255
        %2295 = vmatpush.msra.mxu0 %v2251
        %2296 = vmatpush.msra.mxu0 %v2247
        %2297 = vmatpush.msra.mxu0 %v2243
        %2298 = vmatpush.msra.mxu0 %v2239
        %2299 = vmatpush.msra.mxu0 %v2235
        %2300 = vmatpush.msra.mxu0 %v2231
        %2301 = vmatpush.msra.mxu0 %v2227
        %2302 = vmatpush.msra.mxu0 %v2223
        %2303 = vmatpush.msra.mxu0 %v2219
        %2304 = vmatpush.msra.mxu0 %v2215
        %2305 = vmatmul.f32.gmra.mxu0 %v2213
        %v2306 = vpop.f32.mrf.mxu0
        %v2307 = vadd.f32 %v2281, %v2306
        %2308 = vmatmul.f32.gmra.mxu0 %v2214
        %v2309 = vpop.f32.mrf.mxu0
        %v2310 = vadd.f32 %v2281, %v2309
        %2311 = vdwg.mxu0
        %2312 = vmatpush.msra.mxu0 %v2276
        %2313 = vmatpush.msra.mxu0 %v2272
        %2314 = vmatpush.msra.mxu0 %v2268
        %2315 = vmatpush.msra.mxu0 %v2264
        %2316 = vmatpush.msra.mxu0 %v2260
        %2317 = vmatpush.msra.mxu0 %v2256
        %2318 = vmatpush.msra.mxu0 %v2252
        %2319 = vmatpush.msra.mxu0 %v2248
        %2320 = vmatpush.msra.mxu0 %v2244
        %2321 = vmatpush.msra.mxu0 %v2240
        %2322 = vmatpush.msra.mxu0 %v2236
        %2323 = vmatpush.msra.mxu0 %v2232
        %2324 = vmatpush.msra.mxu0 %v2228
        %2325 = vmatpush.msra.mxu0 %v2224
        %2326 = vmatpush.msra.mxu0 %v2220
        %2327 = vmatpush.msra.mxu0 %v2216
        %2328 = vmatmul.f32.gmra.mxu0 %v2213
        %v2329 = vpop.f32.mrf.mxu0
        %v2330 = vadd.f32 %v2282, %v2329
        %2331 = vmatmul.f32.gmra.mxu0 %v2214
        %v2332 = vpop.f32.mrf.mxu0
        %v2333 = vadd.f32 %v2282, %v2332
        %2334 = vdwg.mxu0
        %2335 = vmatpush.msra.mxu0 %v2277
        %2336 = vmatpush.msra.mxu0 %v2273
        %2337 = vmatpush.msra.mxu0 %v2269
        %2338 = vmatpush.msra.mxu0 %v2265
        %2339 = vmatpush.msra.mxu0 %v2261
        %2340 = vmatpush.msra.mxu0 %v2257
        %2341 = vmatpush.msra.mxu0 %v2253
        %2342 = vmatpush.msra.mxu0 %v2249
        %2343 = vmatpush.msra.mxu0 %v2245
        %2344 = vmatpush.msra.mxu0 %v2241
        %2345 = vmatpush.msra.mxu0 %v2237
        %2346 = vmatpush.msra.mxu0 %v2233
        %2347 = vmatpush.msra.mxu0 %v2229
        %2348 = vmatpush.msra.mxu0 %v2225
        %2349 = vmatpush.msra.mxu0 %v2221
        %2350 = vmatpush.msra.mxu0 %v2217
        %2351 = vmatmul.f32.gmra.mxu0 %v2213
        %v2352 = vpop.f32.mrf.mxu0
        %v2353 = vadd.f32 %v2283, %v2352
        %2354 = vmatmul.f32.gmra.mxu0 %v2214
        %v2355 = vpop.f32.mrf.mxu0
        %v2356 = vadd.f32 %v2283, %v2355
        %2357 = vdwg.mxu0
        %2358 = vmatpush.msra.mxu0 %v2278
        %2359 = vmatpush.msra.mxu0 %v2274
        %2360 = vmatpush.msra.mxu0 %v2270
        %2361 = vmatpush.msra.mxu0 %v2266
        %2362 = vmatpush.msra.mxu0 %v2262
        %2363 = vmatpush.msra.mxu0 %v2258
        %2364 = vmatpush.msra.mxu0 %v2254
        %2365 = vmatpush.msra.mxu0 %v2250
        %2366 = vmatpush.msra.mxu0 %v2246
        %2367 = vmatpush.msra.mxu0 %v2242
        %2368 = vmatpush.msra.mxu0 %v2238
        %2369 = vmatpush.msra.mxu0 %v2234
        %2370 = vmatpush.msra.mxu0 %v2230
        %2371 = vmatpush.msra.mxu0 %v2226
        %2372 = vmatpush.msra.mxu0 %v2222
        %2373 = vmatpush.msra.mxu0 %v2218
        %2374 = vmatmul.f32.gmra.mxu0 %v2213
        %v2375 = vpop.f32.mrf.mxu0
        %v2376 = vadd.f32 %v2284, %v2375
        %2377 = vmatmul.f32.gmra.mxu0 %v2214
        %v2378 = vpop.f32.mrf.mxu0
        %v2379 = vadd.f32 %v2284, %v2378
        %2380 = vdwg.mxu0
        %v2381 = vmul.f32 %v2307, 1.702
        %v2382 = vmul.f32 %v2330, 1.702
        %v2383 = vmul.f32 %v2353, 1.702
        %v2384 = vmul.f32 %v2376, 1.702
        %v2385 = vmul.f32 %v2310, 1.702
        %v2386 = vmul.f32 %v2333, 1.702
        %v2387 = vmul.f32 %v2356, 1.702
        %v2388 = vmul.f32 %v2379, 1.702
        %v2389 = vxor.u32 %v2381, 2147483648
        %v2390 = vxor.u32 %v2382, 2147483648
        %v2391 = vxor.u32 %v2383, 2147483648
        %v2392 = vxor.u32 %v2384, 2147483648
        %v2393 = vxor.u32 %v2385, 2147483648
        %v2394 = vxor.u32 %v2386, 2147483648
        %v2395 = vxor.u32 %v2387, 2147483648
        %v2396 = vxor.u32 %v2388, 2147483648
        %v2397 = vmul.f32 %v2389, 1.442695
        %v2398 = vpow.pop %v2397
        %v2399 = vmul.f32 %v2390, 1.442695
        %v2400 = vpow.pop %v2399
        %v2401 = vmul.f32 %v2391, 1.442695
        %v2402 = vpow.pop %v2401
        %v2403 = vmul.f32 %v2392, 1.442695
        %v2404 = vpow.pop %v2403
        %v2405 = vmul.f32 %v2393, 1.442695
        %v2406 = vpow.pop %v2405
        %v2407 = vmul.f32 %v2394, 1.442695
        %v2408 = vpow.pop %v2407
        %v2409 = vmul.f32 %v2395, 1.442695
        %v2410 = vpow.pop %v2409
        %v2411 = vmul.f32 %v2396, 1.442695
        %v2412 = vpow.pop %v2411
        %v2413 = vadd.f32 %v2398, 1.0
        %v2414 = vadd.f32 %v2400, 1.0
        %v2415 = vadd.f32 %v2402, 1.0
        %v2416 = vadd.f32 %v2404, 1.0
        %v2417 = vadd.f32 %v2406, 1.0
        %v2418 = vadd.f32 %v2408, 1.0
        %v2419 = vadd.f32 %v2410, 1.0
        %v2420 = vadd.f32 %v2412, 1.0
        %v2421 = vrcp.pop %v2413
        %v2422 = vmul.f32 %v2413, %v2421
        %v2423 = vsub.f32 1.0, %v2422
        %v2424 = vmul.f32 %v2421, %v2423
        %v2425 = vadd.f32 %v2421, %v2424
        %vm2426 = vweird.f32 %v2413
        %vm2427 = vweird.f32 %v2421
        %vm2428 = vmor %vm2426, %vm2427
        %v2429 = vsel %vm2428, %v2421, %v2425
        %v2430 = vand.u32 2147483647, %v2413
        %vm2431 = vcmp.eq.f32.partialorder %v2430, 8.507059e+37
        %v2432 = vand.u32 %v2413, 2147483648
        %v2433 = vor.u32 1.1754944e-38, %v2432
        %v2434 = vsel %vm2431, %v2433, %v2429
        %v2435 = vmul.f32 1.0, %v2434
        %v2436 = vrcp.pop %v2414
        %v2437 = vmul.f32 %v2414, %v2436
        %v2438 = vsub.f32 1.0, %v2437
        %v2439 = vmul.f32 %v2436, %v2438
        %v2440 = vadd.f32 %v2436, %v2439
        %vm2441 = vweird.f32 %v2414
        %vm2442 = vweird.f32 %v2436
        %vm2443 = vmor %vm2441, %vm2442
        %v2444 = vsel %vm2443, %v2436, %v2440
        %v2445 = vand.u32 2147483647, %v2414
        %vm2446 = vcmp.eq.f32.partialorder %v2445, 8.507059e+37
        %v2447 = vand.u32 %v2414, 2147483648
        %v2448 = vor.u32 1.1754944e-38, %v2447
        %v2449 = vsel %vm2446, %v2448, %v2444
        %v2450 = vmul.f32 1.0, %v2449
        %v2451 = vrcp.pop %v2415
        %v2452 = vmul.f32 %v2415, %v2451
        %v2453 = vsub.f32 1.0, %v2452
        %v2454 = vmul.f32 %v2451, %v2453
        %v2455 = vadd.f32 %v2451, %v2454
        %vm2456 = vweird.f32 %v2415
        %vm2457 = vweird.f32 %v2451
        %vm2458 = vmor %vm2456, %vm2457
        %v2459 = vsel %vm2458, %v2451, %v2455
        %v2460 = vand.u32 2147483647, %v2415
        %vm2461 = vcmp.eq.f32.partialorder %v2460, 8.507059e+37
        %v2462 = vand.u32 %v2415, 2147483648
        %v2463 = vor.u32 1.1754944e-38, %v2462
        %v2464 = vsel %vm2461, %v2463, %v2459
        %v2465 = vmul.f32 1.0, %v2464
        %v2466 = vrcp.pop %v2416
        %v2467 = vmul.f32 %v2416, %v2466
        %v2468 = vsub.f32 1.0, %v2467
        %v2469 = vmul.f32 %v2466, %v2468
        %v2470 = vadd.f32 %v2466, %v2469
        %vm2471 = vweird.f32 %v2416
        %vm2472 = vweird.f32 %v2466
        %vm2473 = vmor %vm2471, %vm2472
        %v2474 = vsel %vm2473, %v2466, %v2470
        %v2475 = vand.u32 2147483647, %v2416
        %vm2476 = vcmp.eq.f32.partialorder %v2475, 8.507059e+37
        %v2477 = vand.u32 %v2416, 2147483648
        %v2478 = vor.u32 1.1754944e-38, %v2477
        %v2479 = vsel %vm2476, %v2478, %v2474
        %v2480 = vmul.f32 1.0, %v2479
        %v2481 = vrcp.pop %v2417
        %v2482 = vmul.f32 %v2417, %v2481
        %v2483 = vsub.f32 1.0, %v2482
        %v2484 = vmul.f32 %v2481, %v2483
        %v2485 = vadd.f32 %v2481, %v2484
        %vm2486 = vweird.f32 %v2417
        %vm2487 = vweird.f32 %v2481
        %vm2488 = vmor %vm2486, %vm2487
        %v2489 = vsel %vm2488, %v2481, %v2485
        %v2490 = vand.u32 2147483647, %v2417
        %vm2491 = vcmp.eq.f32.partialorder %v2490, 8.507059e+37
        %v2492 = vand.u32 %v2417, 2147483648
        %v2493 = vor.u32 1.1754944e-38, %v2492
        %v2494 = vsel %vm2491, %v2493, %v2489
        %v2495 = vmul.f32 1.0, %v2494
        %v2496 = vrcp.pop %v2418
        %v2497 = vmul.f32 %v2418, %v2496
        %v2498 = vsub.f32 1.0, %v2497
        %v2499 = vmul.f32 %v2496, %v2498
        %v2500 = vadd.f32 %v2496, %v2499
        %vm2501 = vweird.f32 %v2418
        %vm2502 = vweird.f32 %v2496
        %vm2503 = vmor %vm2501, %vm2502
        %v2504 = vsel %vm2503, %v2496, %v2500
        %v2505 = vand.u32 2147483647, %v2418
        %vm2506 = vcmp.eq.f32.partialorder %v2505, 8.507059e+37
        %v2507 = vand.u32 %v2418, 2147483648
        %v2508 = vor.u32 1.1754944e-38, %v2507
        %v2509 = vsel %vm2506, %v2508, %v2504
        %v2510 = vmul.f32 1.0, %v2509
        %v2511 = vrcp.pop %v2419
        %v2512 = vmul.f32 %v2419, %v2511
        %v2513 = vsub.f32 1.0, %v2512
        %v2514 = vmul.f32 %v2511, %v2513
        %v2515 = vadd.f32 %v2511, %v2514
        %vm2516 = vweird.f32 %v2419
        %vm2517 = vweird.f32 %v2511
        %vm2518 = vmor %vm2516, %vm2517
        %v2519 = vsel %vm2518, %v2511, %v2515
        %v2520 = vand.u32 2147483647, %v2419
        %vm2521 = vcmp.eq.f32.partialorder %v2520, 8.507059e+37
        %v2522 = vand.u32 %v2419, 2147483648
        %v2523 = vor.u32 1.1754944e-38, %v2522
        %v2524 = vsel %vm2521, %v2523, %v2519
        %v2525 = vmul.f32 1.0, %v2524
        %v2526 = vrcp.pop %v2420
        %v2527 = vmul.f32 %v2420, %v2526
        %v2528 = vsub.f32 1.0, %v2527
        %v2529 = vmul.f32 %v2526, %v2528
        %v2530 = vadd.f32 %v2526, %v2529
        %vm2531 = vweird.f32 %v2420
        %vm2532 = vweird.f32 %v2526
        %vm2533 = vmor %vm2531, %vm2532
        %v2534 = vsel %vm2533, %v2526, %v2530
        %v2535 = vand.u32 2147483647, %v2420
        %vm2536 = vcmp.eq.f32.partialorder %v2535, 8.507059e+37
        %v2537 = vand.u32 %v2420, 2147483648
        %v2538 = vor.u32 1.1754944e-38, %v2537
        %v2539 = vsel %vm2536, %v2538, %v2534
        %v2540 = vmul.f32 1.0, %v2539
        %v2541 = vmul.f32 %v2307, %v2435
        %v2542 = vmul.f32 %v2330, %v2450
        %v2543 = vmul.f32 %v2353, %v2465
        %v2544 = vmul.f32 %v2376, %v2480
        %v2545 = vmul.f32 %v2310, %v2495
        %v2546 = vmul.f32 %v2333, %v2510
        %v2547 = vmul.f32 %v2356, %v2525
        %v2548 = vmul.f32 %v2379, %v2540
        %v2549 = vld [vmem:[#allocation17] sm:$0xff]
        %v2550 = vld [vmem:[#allocation17 + $0x8] sm:$0xff]
        %v2551 = vld [vmem:[#allocation17 + $0x10] sm:$0xff]
        %v2552 = vld [vmem:[#allocation17 + $0x18] sm:$0xff]
        %v2553 = vld [vmem:[#allocation17 + $0x20] sm:$0xff]
        %v2554 = vld [vmem:[#allocation17 + $0x28] sm:$0xff]
        %v2555 = vld [vmem:[#allocation17 + $0x30] sm:$0xff]
        %v2556 = vld [vmem:[#allocation17 + $0x38] sm:$0xff]
        %v2557 = vld [vmem:[#allocation17 + $0x40] sm:$0xff]
        %v2558 = vld [vmem:[#allocation17 + $0x48] sm:$0xff]
        %v2559 = vld [vmem:[#allocation17 + $0x50] sm:$0xff]
        %v2560 = vld [vmem:[#allocation17 + $0x58] sm:$0xff]
        %v2561 = vld [vmem:[#allocation17 + $0x60] sm:$0xff]
        %v2562 = vld [vmem:[#allocation17 + $0x68] sm:$0xff]
        %v2563 = vld [vmem:[#allocation17 + $0x70] sm:$0xff]
        %v2564 = vld [vmem:[#allocation17 + $0x78] sm:$0xff]
        %v2565 = vld [vmem:[#allocation17 + $0x80] sm:$0xff]
        %v2566 = vld [vmem:[#allocation17 + $0x88] sm:$0xff]
        %v2567 = vld [vmem:[#allocation17 + $0x90] sm:$0xff]
        %v2568 = vld [vmem:[#allocation17 + $0x98] sm:$0xff]
        %v2569 = vld [vmem:[#allocation17 + $0xa0] sm:$0xff]
        %v2570 = vld [vmem:[#allocation17 + $0xa8] sm:$0xff]
        %v2571 = vld [vmem:[#allocation17 + $0xb0] sm:$0xff]
        %v2572 = vld [vmem:[#allocation17 + $0xb8] sm:$0xff]
        %v2573 = vld [vmem:[#allocation17 + $0xc0] sm:$0xff]
        %v2574 = vld [vmem:[#allocation17 + $0xc8] sm:$0xff]
        %v2575 = vld [vmem:[#allocation17 + $0xd0] sm:$0xff]
        %v2576 = vld [vmem:[#allocation17 + $0xd8] sm:$0xff]
        %v2577 = vld [vmem:[#allocation17 + $0xe0] sm:$0xff]
        %v2578 = vld [vmem:[#allocation17 + $0xe8] sm:$0xff]
        %v2579 = vld [vmem:[#allocation17 + $0xf0] sm:$0xff]
        %v2580 = vld [vmem:[#allocation17 + $0xf8] sm:$0xff]
        %v2581 = vld [vmem:[#allocation17 + $0x100] sm:$0xff]
        %v2582 = vld [vmem:[#allocation17 + $0x108] sm:$0xff]
        %v2583 = vld [vmem:[#allocation17 + $0x110] sm:$0xff]
        %v2584 = vld [vmem:[#allocation17 + $0x118] sm:$0xff]
        %v2585 = vld [vmem:[#allocation17 + $0x120] sm:$0xff]
        %v2586 = vld [vmem:[#allocation17 + $0x128] sm:$0xff]
        %v2587 = vld [vmem:[#allocation17 + $0x130] sm:$0xff]
        %v2588 = vld [vmem:[#allocation17 + $0x138] sm:$0xff]
        %v2589 = vld [vmem:[#allocation17 + $0x140] sm:$0xff]
        %v2590 = vld [vmem:[#allocation17 + $0x148] sm:$0xff]
        %v2591 = vld [vmem:[#allocation17 + $0x150] sm:$0xff]
        %v2592 = vld [vmem:[#allocation17 + $0x158] sm:$0xff]
        %v2593 = vld [vmem:[#allocation17 + $0x160] sm:$0xff]
        %v2594 = vld [vmem:[#allocation17 + $0x168] sm:$0xff]
        %v2595 = vld [vmem:[#allocation17 + $0x170] sm:$0xff]
        %v2596 = vld [vmem:[#allocation17 + $0x178] sm:$0xff]
        %v2597 = vld [vmem:[#allocation17 + $0x180] sm:$0xff]
        %v2598 = vld [vmem:[#allocation17 + $0x188] sm:$0xff]
        %v2599 = vld [vmem:[#allocation17 + $0x190] sm:$0xff]
        %v2600 = vld [vmem:[#allocation17 + $0x198] sm:$0xff]
        %v2601 = vld [vmem:[#allocation17 + $0x1a0] sm:$0xff]
        %v2602 = vld [vmem:[#allocation17 + $0x1a8] sm:$0xff]
        %v2603 = vld [vmem:[#allocation17 + $0x1b0] sm:$0xff]
        %v2604 = vld [vmem:[#allocation17 + $0x1b8] sm:$0xff]
        %v2605 = vld [vmem:[#allocation17 + $0x1c0] sm:$0xff]
        %v2606 = vld [vmem:[#allocation17 + $0x1c8] sm:$0xff]
        %v2607 = vld [vmem:[#allocation17 + $0x1d0] sm:$0xff]
        %v2608 = vld [vmem:[#allocation17 + $0x1d8] sm:$0xff]
        %v2609 = vld [vmem:[#allocation17 + $0x1e0] sm:$0xff]
        %v2610 = vld [vmem:[#allocation17 + $0x1e8] sm:$0xff]
        %v2611 = vld [vmem:[#allocation17 + $0x1f0] sm:$0xff]
        %v2612 = vld [vmem:[#allocation17 + $0x1f8] sm:$0xff]
        %v2613 = vld [vmem:[%s12] sm:$0x1]
        %v2615 = vperm.slane %v2613, 0
        %2617 = vmatpush.msra.mxu0 %v2564
        %2618 = vmatpush.msra.mxu0 %v2563
        %2619 = vmatpush.msra.mxu0 %v2562
        %2620 = vmatpush.msra.mxu0 %v2561
        %2621 = vmatpush.msra.mxu0 %v2560
        %2622 = vmatpush.msra.mxu0 %v2559
        %2623 = vmatpush.msra.mxu0 %v2558
        %2624 = vmatpush.msra.mxu0 %v2557
        %2625 = vmatpush.msra.mxu0 %v2556
        %2626 = vmatpush.msra.mxu0 %v2555
        %2627 = vmatpush.msra.mxu0 %v2554
        %2628 = vmatpush.msra.mxu0 %v2553
        %2629 = vmatpush.msra.mxu0 %v2552
        %2630 = vmatpush.msra.mxu0 %v2551
        %2631 = vmatpush.msra.mxu0 %v2550
        %2632 = vmatpush.msra.mxu0 %v2549
        %2633 = vmatmul.f32.gmra.mxu0 %v2541
        %v2634 = vpop.f32.mrf.mxu0
        %v2635 = vadd.f32 %v2615, %v2634
        %2636 = vmatmul.f32.gmra.mxu0 %v2545
        %v2637 = vpop.f32.mrf.mxu0
        %v2638 = vadd.f32 %v2615, %v2637
        %2639 = vdwg.mxu0
        %2640 = vmatpush.msra.mxu0 %v2580
        %2641 = vmatpush.msra.mxu0 %v2579
        %2642 = vmatpush.msra.mxu0 %v2578
        %2643 = vmatpush.msra.mxu0 %v2577
        %2644 = vmatpush.msra.mxu0 %v2576
        %2645 = vmatpush.msra.mxu0 %v2575
        %2646 = vmatpush.msra.mxu0 %v2574
        %2647 = vmatpush.msra.mxu0 %v2573
        %2648 = vmatpush.msra.mxu0 %v2572
        %2649 = vmatpush.msra.mxu0 %v2571
        %2650 = vmatpush.msra.mxu0 %v2570
        %2651 = vmatpush.msra.mxu0 %v2569
        %2652 = vmatpush.msra.mxu0 %v2568
        %2653 = vmatpush.msra.mxu0 %v2567
        %2654 = vmatpush.msra.mxu0 %v2566
        %2655 = vmatpush.msra.mxu0 %v2565
        %2656 = vmatmul.f32.gmra.mxu0 %v2542
        %v2657 = vpop.f32.mrf.mxu0
        %v2658 = vadd.f32 %v2635, %v2657
        %2659 = vmatmul.f32.gmra.mxu0 %v2546
        %v2660 = vpop.f32.mrf.mxu0
        %v2661 = vadd.f32 %v2638, %v2660
        %2662 = vdwg.mxu0
        %2663 = vmatpush.msra.mxu0 %v2596
        %2664 = vmatpush.msra.mxu0 %v2595
        %2665 = vmatpush.msra.mxu0 %v2594
        %2666 = vmatpush.msra.mxu0 %v2593
        %2667 = vmatpush.msra.mxu0 %v2592
        %2668 = vmatpush.msra.mxu0 %v2591
        %2669 = vmatpush.msra.mxu0 %v2590
        %2670 = vmatpush.msra.mxu0 %v2589
        %2671 = vmatpush.msra.mxu0 %v2588
        %2672 = vmatpush.msra.mxu0 %v2587
        %2673 = vmatpush.msra.mxu0 %v2586
        %2674 = vmatpush.msra.mxu0 %v2585
        %2675 = vmatpush.msra.mxu0 %v2584
        %2676 = vmatpush.msra.mxu0 %v2583
        %2677 = vmatpush.msra.mxu0 %v2582
        %2678 = vmatpush.msra.mxu0 %v2581
        %2679 = vmatmul.f32.gmra.mxu0 %v2543
        %v2680 = vpop.f32.mrf.mxu0
        %v2681 = vadd.f32 %v2658, %v2680
        %2682 = vmatmul.f32.gmra.mxu0 %v2547
        %v2683 = vpop.f32.mrf.mxu0
        %v2684 = vadd.f32 %v2661, %v2683
        %2685 = vdwg.mxu0
        %2686 = vmatpush.msra.mxu0 %v2612
        %2687 = vmatpush.msra.mxu0 %v2611
        %2688 = vmatpush.msra.mxu0 %v2610
        %2689 = vmatpush.msra.mxu0 %v2609
        %2690 = vmatpush.msra.mxu0 %v2608
        %2691 = vmatpush.msra.mxu0 %v2607
        %2692 = vmatpush.msra.mxu0 %v2606
        %2693 = vmatpush.msra.mxu0 %v2605
        %2694 = vmatpush.msra.mxu0 %v2604
        %2695 = vmatpush.msra.mxu0 %v2603
        %2696 = vmatpush.msra.mxu0 %v2602
        %2697 = vmatpush.msra.mxu0 %v2601
        %2698 = vmatpush.msra.mxu0 %v2600
        %2699 = vmatpush.msra.mxu0 %v2599
        %2700 = vmatpush.msra.mxu0 %v2598
        %2701 = vmatpush.msra.mxu0 %v2597
        %2702 = vmatmul.f32.gmra.mxu0 %v2544
        %v2703 = vpop.f32.mrf.mxu0
        %v2704 = vadd.f32 %v2681, %v2703
        %2705 = vmatmul.f32.gmra.mxu0 %v2548
        %v2706 = vpop.f32.mrf.mxu0
        %v2707 = vadd.f32 %v2684, %v2706
        %2708 = vdwg.mxu0
        %v2709 = vadd.f32 %v2161, %v2704
        %v2710 = vadd.f32 %v2162, %v2707
        %2711 = vst [vmem:[%s599] sm:$0xff] %v2709
        %2712 = vst [vmem:[%s599 + $0x8] sm:$0xff] %v2710
        %s2713 = sand.u32 %s321, 1
        %s2714 = scalar_lea.sflag [#allocation4], %s2713
        %s2715 = sand.u32 %s321, 1
        %s2716 = smul.addr %s2715, 16
        %s2717 = scalar_lea.vmem [#allocation19], %s2716
        // Predicated region
        $region113: #{tpu_custom_call.1} parent=71 // pred_check
          %p2718 = pneg %p331
        $region114: #{tpu_custom_call.1} parent=71 // pred_check_branch
          %2720 = sbr.rel (%p2718) target = $region116
        $region115: #{tpu_custom_call.1} parent=71 // pred_region
          %2722 = vsyncadd %s2714, 0
          %s2723 = smul.addr %s35, 2
          %s2724 = smul.addr %s2723, 8
          %s2725 = scalar_lea.hbm %s13, %s2724
          %s2726 = sshll.u32 %s2717, 4
          %s2727 = int_to_ptr.vmem [resolvable:$true] %s2726
          %s2728 = sshll.u32 %s2725, 4
          %s2729 = int_to_ptr.hbm [resolvable:$true] %s2728
          %2734 = dma.vmem_to_hbm [thread:$0]  %s2727, 256, %s2729, %s2714, 128, 128, 8
        $region116: #{tpu_custom_call.1} parent=71 // pred_fallthru
          _
      $region72: #{tpu_custom_call.1} parent=5 // pred_fallthru
        _
      %p2735 = scmp.le.s32.totalorder 2, %s30
      // Predicated region
      $region117: #{tpu_custom_call.1} parent=5 // pred_check
        %p2736 = pneg %p2735
      $region118: #{tpu_custom_call.1} parent=5 // pred_check_branch
        %2738 = sbr.rel (%p2736) target = $region120
      $region119: #{tpu_custom_call.1} parent=5 // pred_region
        %s2739 = ssub.s32 %s30, 2
        // Predicated region
        $region121: #{tpu_custom_call.1} parent=119 // pred_check
          %p2740 = pneg %p337
        $region122: #{tpu_custom_call.1} parent=119 // pred_check_branch
          %2742 = sbr.rel (%p2740) target = $region124
        $region123: #{tpu_custom_call.1} parent=119 // pred_region
          %s2743 = sand.u32 %s322, 1
          %s2744 = scalar_lea.sflag [#allocation4], %s2743
          %s2745 = sand.u32 %s322, 1
          %s2746 = smul.addr %s2745, 16
          %s2747 = scalar_lea.vmem [#allocation19], %s2746
          %2749 = dma.done %s2744, 256
        $region124: #{tpu_custom_call.1} parent=119 // pred_fallthru
          _
      $region120: #{tpu_custom_call.1} parent=5 // pred_fallthru
        _
    $region6: #{tpu_custom_call.1} parent=1 // loop_footer
      %s34 = sadd.s32 1, %s30
    $region7: #{tpu_custom_call.1} parent=1 // loop_footer_branch
      %29 = sbr.rel target = $region3
    $region8: #{tpu_custom_call.1} parent=1 // loop_exit
      _
    %2750 = vsyncpa [#allocation3], 1
    %s2751 = scalar_lea.sflag [#allocation3], 1
    %2752 = vsyncpa %s2751, 1
    %2753 = vsyncpa [#allocation6], 1
    %2754 = vsyncpa [#allocation9], 1
    %2755 = vsyncpa [#allocation12], 1
    %2756 = vsyncpa [#allocation15], 1
    %2757 = vsyncpa [#allocation18], 1
    %2758 = vsyncpa [#allocation4], 1
    %s2759 = scalar_lea.sflag [#allocation4], 1
    %2760 = vsyncpa %s2759, 1

// kernel: tpu_custom_call.1
$region0: #{tpu_custom_call.1}
  #allocation0 [shape = 'u32[]', space=smem, size = 0x4, offset = 0x4, fixed_abs, tag = 'smem constant byte address 0x4 - core index']
  #allocation1 [shape = 'u32[72,128]{1,0:T(1,128)}', space=vmem, size = 0x9000, scoped, tag = 'internal scratch']
  %s0 = inlined_call_operand.hbm [shape: f32[2,16,128], index: 0, kind: input, shape index: {}]
  %s1 = inlined_call_operand.hbm [shape: f32[1,128], index: 1, kind: input, shape index: {}]
  %s2 = inlined_call_operand.hbm [shape: f32[1,128], index: 2, kind: input, shape index: {}]
  %s3 = inlined_call_operand.hbm [shape: f32[128,384], index: 3, kind: input, shape index: {}]
  %s4 = inlined_call_operand.vmem [shape: f32[1,384], index: 4, kind: input, shape index: {}]
  %s5 = inlined_call_operand.hbm [shape: f32[128,128], index: 5, kind: input, shape index: {}]
  %s6 = inlined_call_operand.hbm [shape: f32[1,128], index: 6, kind: input, shape index: {}]
  %s7 = inlined_call_operand.hbm [shape: f32[1,128], index: 7, kind: input, shape index: {}]
  %s8 = inlined_call_operand.hbm [shape: f32[1,128], index: 8, kind: input, shape index: {}]
  %s9 = inlined_call_operand.hbm [shape: f32[128,512], index: 9, kind: input, shape index: {}]
  %s10 = inlined_call_operand.vmem [shape: f32[1,512], index: 10, kind: input, shape index: {}]
  %s11 = inlined_call_operand.hbm [shape: f32[512,128], index: 11, kind: input, shape index: {}]
  %s12 = inlined_call_operand.vmem [shape: f32[1,128], index: 12, kind: input, shape index: {}]
  %s13 = inlined_call_operand.hbm [shape: f32[2,16,128], index: 13, kind: output, shape index: {}]
  %s14 = sld [smem:[#allocation0]]
  $region125: #{tpu_custom_call.1} parent=0
    _
  %s16 = ssub.s32 1, %s14
  %s17 = scalar_select 0, %s16, %s14
  $region1: #{tpu_custom_call.1} parent=0
    #allocation2 [shape = 'u8[16384]{0}', space=vmem, size = 0x4000, scoped, tag = 'input window, operand 0']
    #allocation3 [shape = 's32[2]{0}', space=sflag, size = 0x8, scoped, tag = 'scoped memory for tpu_custom_call.1']
    #allocation4 [shape = 's32[2]{0}', space=sflag, size = 0x8, scoped, tag = 'scoped memory for tpu_custom_call.1']
    #allocation5 [shape = 'u8[512]{0}', space=vmem, size = 0x400, scoped, tag = 'input window, operand 1, single buffered']
    #allocation6 [shape = 's32[1]{0}', space=sflag, size = 0x4, scoped, tag = 'scoped memory for tpu_custom_call.1']
    #allocation7 [shape = 'u8[512]{0}', space=vmem, size = 0x400, scoped, tag = 'input window, operand 2, single buffered']
    #allocation8 [shape = 'u8[196608]{0}', space=vmem, size = 0x30000, scoped, tag = 'input window, operand 3, single buffered']
    #allocation9 [shape = 's32[1]{0}', space=sflag, size = 0x4, scoped, tag = 'scoped memory for tpu_custom_call.1']
    #allocation10 [shape = 'u8[65536]{0}', space=vmem, size = 0x10000, scoped, tag = 'input window, operand 5, single buffered']
    #allocation11 [shape = 'u8[512]{0}', space=vmem, size = 0x400, scoped, tag = 'input window, operand 6, single buffered']
    #allocation12 [shape = 's32[1]{0}', space=sflag, size = 0x4, scoped, tag = 'scoped memory for tpu_custom_call.1']
    #allocation13 [shape = 'u8[512]{0}', space=vmem, size = 0x400, scoped, tag = 'input window, operand 7, single buffered']
    #allocation14 [shape = 'u8[512]{0}', space=vmem, size = 0x400, scoped, tag = 'input window, operand 8, single buffered']
    #allocation15 [shape = 's32[1]{0}', space=sflag, size = 0x4, scoped, tag = 'scoped memory for tpu_custom_call.1']
    #allocation16 [shape = 'u8[262144]{0}', space=vmem, size = 0x40000, scoped, tag = 'input window, operand 9, single buffered']
    #allocation17 [shape = 'u8[262144]{0}', space=vmem, size = 0x40000, scoped, tag = 'input window, operand 11, single buffered']
    #allocation18 [shape = 's32[1]{0}', space=sflag, size = 0x4, scoped, tag = 'scoped memory for tpu_custom_call.1']
    #allocation19 [shape = 'u8[16384]{0}', space=vmem, size = 0x4000, scoped, tag = 'output window, operand 0']
    %18 = vsyncpa [#allocation3], 0
    %s19 = scalar_lea.sflag [#allocation3], 1
    %20 = vsyncpa %s19, 0
    %21 = vsyncpa [#allocation6], 0
    %22 = vsyncpa [#allocation9], 0
    %23 = vsyncpa [#allocation12], 0
    %24 = vsyncpa [#allocation15], 0
    %25 = vsyncpa [#allocation18], 0
    %26 = vsyncpa [#allocation4], 0
    %s27 = scalar_lea.sflag [#allocation4], 1
    %28 = vsyncpa %s27, 0
    loop: start=0, step=1, limit=4
    $region2: #{tpu_custom_call.1} parent=1 // loop_pre_header
      _
    $region3: #{tpu_custom_call.1} parent=1 // loop_header
      %s30 = sphi 0, %s34
      %p31 = scmp.ge.s32.totalorder %s30, 4
      %s40 = sphi 0, %s42
      %s43 = sphi 0, %s40
      %s44 = sphi 0, %s43
      %s60 = sphi 0, %s44
      %s64 = sphi 0, %s64
      %s66 = sphi 0, %s64
      %s67 = sphi 0, %s66
      %s81 = sphi 0, %s67
      %s85 = sphi 0, %s85
      %s87 = sphi 0, %s85
      %s88 = sphi 0, %s87
      %s102 = sphi 0, %s88
      %s106 = sphi 0, %s106
      %s108 = sphi 0, %s106
      %s109 = sphi 0, %s108
      %s123 = sphi 0, %s109
      %s127 = sphi 0, %s127
      %s129 = sphi 0, %s127
      %s130 = sphi 0, %s129
      %s144 = sphi 0, %s130
      %s148 = sphi 0, %s148
      %s150 = sphi 0, %s148
      %s151 = sphi 0, %s150
      %s165 = sphi 0, %s151
      %s169 = sphi 0, %s169
      %s171 = sphi 0, %s169
      %s172 = sphi 0, %s171
      %s186 = sphi 0, %s172
      %s190 = sphi 0, %s190
      %s192 = sphi 0, %s190
      %s193 = sphi 0, %s192
      %s207 = sphi 0, %s193
      %s211 = sphi 0, %s211
      %s213 = sphi 0, %s211
      %s214 = sphi 0, %s213
      %s228 = sphi 0, %s214
      %s232 = sphi 0, %s232
      %s234 = sphi 0, %s232
      %s235 = sphi 0, %s234
      %s249 = sphi 0, %s235
      %s253 = sphi 0, %s253
      %s255 = sphi 0, %s253
      %s256 = sphi 0, %s255
      %s270 = sphi 0, %s256
      %s274 = sphi 0, %s274
      %s276 = sphi 0, %s274
      %s277 = sphi 0, %s276
      %s291 = sphi 0, %s277
      %s295 = sphi 0, %s295
      %s297 = sphi 0, %s295
      %s298 = sphi 0, %s297
      %s312 = sphi 0, %s298
      %s318 = sphi 0, %s320
      %s321 = sphi 0, %s318
      %s322 = sphi 0, %s321
      %s338 = sphi 0, %s322
    $region4: #{tpu_custom_call.1} parent=1 // loop_header_branch
      %33 = sbr.rel (%p31) target = $region8
    $region5: #{tpu_custom_call.1} parent=1 // loop_body
      %s35 = ssub.s32 %s30, 1
      %s36 = ssub.s32 %s30, 2
      %s37 = sadd.s32 %s30, 1
      %s38 = ssub.s32 %s30, %s37
      %p39 = scmp.eq.s32.totalorder %s38, 0
      %s41 = sadd.s32 %s40, 1
      %s42 = scalar_select %p39, %s40, %s41
      %p45 = pneg %p39
      %p46 = scmp.eq.s32.totalorder %s30, 1
      %p47 = por %p45, %p46
      %p48 = scmp.ne.s32.totalorder %s40, %s43
      %p49 = scmp.eq.s32.totalorder %s30, 0
      %p50 = por %p48, %p49
      %p51 = scmp.ne.s32.totalorder %s40, %s43
      %p52 = scmp.eq.s32.totalorder %s35, 1
      %p53 = por %p51, %p52
      %p54 = scmp.ne.s32.totalorder %s43, %s44
      %p55 = scmp.eq.s32.totalorder %s35, 0
      %p56 = por %p54, %p55
      %p57 = scmp.ne.s32.totalorder %s43, %s44
      %p58 = scmp.eq.s32.totalorder %s36, 1
      %p59 = por %p57, %p58
      %p61 = scmp.ne.s32.totalorder %s44, %s60
      %p62 = scmp.eq.s32.totalorder %s36, 0
      %p63 = por %p61, %p62
      %s65 = sadd.s32 %s64, 1
      %p68 = scmp.eq.s32.totalorder %s30, 1
      %p69 = scmp.ne.s32.totalorder %s64, %s66
      %p70 = scmp.eq.s32.totalorder %s30, 0
      %p71 = por %p69, %p70
      %p72 = scmp.ne.s32.totalorder %s64, %s66
      %p73 = scmp.eq.s32.totalorder %s35, 1
      %p74 = por %p72, %p73
      %p75 = scmp.ne.s32.totalorder %s66, %s67
      %p76 = scmp.eq.s32.totalorder %s35, 0
      %p77 = por %p75, %p76
      %p78 = scmp.ne.s32.totalorder %s66, %s67
      %p79 = scmp.eq.s32.totalorder %s36, 1
      %p80 = por %p78, %p79
      %p82 = scmp.ne.s32.totalorder %s67, %s81
      %p83 = scmp.eq.s32.totalorder %s36, 0
      %p84 = por %p82, %p83
      %s86 = sadd.s32 %s85, 1
      %p89 = scmp.eq.s32.totalorder %s30, 1
      %p90 = scmp.ne.s32.totalorder %s85, %s87
      %p91 = scmp.eq.s32.totalorder %s30, 0
      %p92 = por %p90, %p91
      %p93 = scmp.ne.s32.totalorder %s85, %s87
      %p94 = scmp.eq.s32.totalorder %s35, 1
      %p95 = por %p93, %p94
      %p96 = scmp.ne.s32.totalorder %s87, %s88
      %p97 = scmp.eq.s32.totalorder %s35, 0
      %p98 = por %p96, %p97
      %p99 = scmp.ne.s32.totalorder %s87, %s88
      %p100 = scmp.eq.s32.totalorder %s36, 1
      %p101 = por %p99, %p100
      %p103 = scmp.ne.s32.totalorder %s88, %s102
      %p104 = scmp.eq.s32.totalorder %s36, 0
      %p105 = por %p103, %p104
      %s107 = sadd.s32 %s106, 1
      %p110 = scmp.eq.s32.totalorder %s30, 1
      %p111 = scmp.ne.s32.totalorder %s106, %s108
      %p112 = scmp.eq.s32.totalorder %s30, 0
      %p113 = por %p111, %p112
      %p114 = scmp.ne.s32.totalorder %s106, %s108
      %p115 = scmp.eq.s32.totalorder %s35, 1
      %p116 = por %p114, %p115
      %p117 = scmp.ne.s32.totalorder %s108, %s109
      %p118 = scmp.eq.s32.totalorder %s35, 0
      %p119 = por %p117, %p118
      %p120 = scmp.ne.s32.totalorder %s108, %s109
      %p121 = scmp.eq.s32.totalorder %s36, 1
      %p122 = por %p120, %p121
      %p124 = scmp.ne.s32.totalorder %s109, %s123
      %p125 = scmp.eq.s32.totalorder %s36, 0
      %p126 = por %p124, %p125
      %s128 = sadd.s32 %s127, 1
      %p131 = scmp.eq.s32.totalorder %s30, 1
      %p132 = scmp.ne.s32.totalorder %s127, %s129
      %p133 = scmp.eq.s32.totalorder %s30, 0
      %p134 = por %p132, %p133
      %p135 = scmp.ne.s32.totalorder %s127, %s129
      %p136 = scmp.eq.s32.totalorder %s35, 1
      %p137 = por %p135, %p136
      %p138 = scmp.ne.s32.totalorder %s129, %s130
      %p139 = scmp.eq.s32.totalorder %s35, 0
      %p140 = por %p138, %p139
      %p141 = scmp.ne.s32.totalorder %s129, %s130
      %p142 = scmp.eq.s32.totalorder %s36, 1
      %p143 = por %p141, %p142
      %p145 = scmp.ne.s32.totalorder %s130, %s144
      %p146 = scmp.eq.s32.totalorder %s36, 0
      %p147 = por %p145, %p146
      %s149 = sadd.s32 %s148, 1
      %p152 = scmp.eq.s32.totalorder %s30, 1
      %p153 = scmp.ne.s32.totalorder %s148, %s150
      %p154 = scmp.eq.s32.totalorder %s30, 0
      %p155 = por %p153, %p154
      %p156 = scmp.ne.s32.totalorder %s148, %s150
      %p157 = scmp.eq.s32.totalorder %s35, 1
      %p158 = por %p156, %p157
      %p159 = scmp.ne.s32.totalorder %s150, %s151
      %p160 = scmp.eq.s32.totalorder %s35, 0
      %p161 = por %p159, %p160
      %p162 = scmp.ne.s32.totalorder %s150, %s151
      %p163 = scmp.eq.s32.totalorder %s36, 1
      %p164 = por %p162, %p163
      %p166 = scmp.ne.s32.totalorder %s151, %s165
      %p167 = scmp.eq.s32.totalorder %s36, 0
      %p168 = por %p166, %p167
      %s170 = sadd.s32 %s169, 1
      %p173 = scmp.eq.s32.totalorder %s30, 1
      %p174 = scmp.ne.s32.totalorder %s169, %s171
      %p175 = scmp.eq.s32.totalorder %s30, 0
      %p176 = por %p174, %p175
      %p177 = scmp.ne.s32.totalorder %s169, %s171
      %p178 = scmp.eq.s32.totalorder %s35, 1
      %p179 = por %p177, %p178
      %p180 = scmp.ne.s32.totalorder %s171, %s172
      %p181 = scmp.eq.s32.totalorder %s35, 0
      %p182 = por %p180, %p181
      %p183 = scmp.ne.s32.totalorder %s171, %s172
      %p184 = scmp.eq.s32.totalorder %s36, 1
      %p185 = por %p183, %p184
      %p187 = scmp.ne.s32.totalorder %s172, %s186
      %p188 = scmp.eq.s32.totalorder %s36, 0
      %p189 = por %p187, %p188
      %s191 = sadd.s32 %s190, 1
      %p194 = scmp.eq.s32.totalorder %s30, 1
      %p195 = scmp.ne.s32.totalorder %s190, %s192
      %p196 = scmp.eq.s32.totalorder %s30, 0
      %p197 = por %p195, %p196
      %p198 = scmp.ne.s32.totalorder %s190, %s192
      %p199 = scmp.eq.s32.totalorder %s35, 1
      %p200 = por %p198, %p199
      %p201 = scmp.ne.s32.totalorder %s192, %s193
      %p202 = scmp.eq.s32.totalorder %s35, 0
      %p203 = por %p201, %p202
      %p204 = scmp.ne.s32.totalorder %s192, %s193
      %p205 = scmp.eq.s32.totalorder %s36, 1
      %p206 = por %p204, %p205
      %p208 = scmp.ne.s32.totalorder %s193, %s207
      %p209 = scmp.eq.s32.totalorder %s36, 0
      %p210 = por %p208, %p209
      %s212 = sadd.s32 %s211, 1
      %p215 = scmp.eq.s32.totalorder %s30, 1
      %p216 = scmp.ne.s32.totalorder %s211, %s213
      %p217 = scmp.eq.s32.totalorder %s30, 0
      %p218 = por %p216, %p217
      %p219 = scmp.ne.s32.totalorder %s211, %s213
      %p220 = scmp.eq.s32.totalorder %s35, 1
      %p221 = por %p219, %p220
      %p222 = scmp.ne.s32.totalorder %s213, %s214
      %p223 = scmp.eq.s32.totalorder %s35, 0
      %p224 = por %p222, %p223
      %p225 = scmp.ne.s32.totalorder %s213, %s214
      %p226 = scmp.eq.s32.totalorder %s36, 1
      %p227 = por %p225, %p226
      %p229 = scmp.ne.s32.totalorder %s214, %s228
      %p230 = scmp.eq.s32.totalorder %s36, 0
      %p231 = por %p229, %p230
      %s233 = sadd.s32 %s232, 1
      %p236 = scmp.eq.s32.totalorder %s30, 1
      %p237 = scmp.ne.s32.totalorder %s232, %s234
      %p238 = scmp.eq.s32.totalorder %s30, 0
      %p239 = por %p237, %p238
      %p240 = scmp.ne.s32.totalorder %s232, %s234
      %p241 = scmp.eq.s32.totalorder %s35, 1
      %p242 = por %p240, %p241
      %p243 = scmp.ne.s32.totalorder %s234, %s235
      %p244 = scmp.eq.s32.totalorder %s35, 0
      %p245 = por %p243, %p244
      %p246 = scmp.ne.s32.totalorder %s234, %s235
      %p247 = scmp.eq.s32.totalorder %s36, 1
      %p248 = por %p246, %p247
      %p250 = scmp.ne.s32.totalorder %s235, %s249
      %p251 = scmp.eq.s32.totalorder %s36, 0
      %p252 = por %p250, %p251
      %s254 = sadd.s32 %s253, 1
      %p257 = scmp.eq.s32.totalorder %s30, 1
      %p258 = scmp.ne.s32.totalorder %s253, %s255
      %p259 = scmp.eq.s32.totalorder %s30, 0
      %p260 = por %p258, %p259
      %p261 = scmp.ne.s32.totalorder %s253, %s255
      %p262 = scmp.eq.s32.totalorder %s35, 1
      %p263 = por %p261, %p262
      %p264 = scmp.ne.s32.totalorder %s255, %s256
      %p265 = scmp.eq.s32.totalorder %s35, 0
      %p266 = por %p264, %p265
      %p267 = scmp.ne.s32.totalorder %s255, %s256
      %p268 = scmp.eq.s32.totalorder %s36, 1
      %p269 = por %p267, %p268
      %p271 = scmp.ne.s32.totalorder %s256, %s270
      %p272 = scmp.eq.s32.totalorder %s36, 0
      %p273 = por %p271, %p272
      %s275 = sadd.s32 %s274, 1
      %p278 = scmp.eq.s32.totalorder %s30, 1
      %p279 = scmp.ne.s32.totalorder %s274, %s276
      %p280 = scmp.eq.s32.totalorder %s30, 0
      %p281 = por %p279, %p280
      %p282 = scmp.ne.s32.totalorder %s274, %s276
      %p283 = scmp.eq.s32.totalorder %s35, 1
      %p284 = por %p282, %p283
      %p285 = scmp.ne.s32.totalorder %s276, %s277
      %p286 = scmp.eq.s32.totalorder %s35, 0
      %p287 = por %p285, %p286
      %p288 = scmp.ne.s32.totalorder %s276, %s277
      %p289 = scmp.eq.s32.totalorder %s36, 1
      %p290 = por %p288, %p289
      %p292 = scmp.ne.s32.totalorder %s277, %s291
      %p293 = scmp.eq.s32.totalorder %s36, 0
      %p294 = por %p292, %p293
      %s296 = sadd.s32 %s295, 1
      %p299 = scmp.eq.s32.totalorder %s30, 1
      %p300 = scmp.ne.s32.totalorder %s295, %s297
      %p301 = scmp.eq.s32.totalorder %s30, 0
      %p302 = por %p300, %p301
      %p303 = scmp.ne.s32.totalorder %s295, %s297
      %p304 = scmp.eq.s32.totalorder %s35, 1
      %p305 = por %p303, %p304
      %p306 = scmp.ne.s32.totalorder %s297, %s298
      %p307 = scmp.eq.s32.totalorder %s35, 0
      %p308 = por %p306, %p307
      %p309 = scmp.ne.s32.totalorder %s297, %s298
      %p310 = scmp.eq.s32.totalorder %s36, 1
      %p311 = por %p309, %p310
      %p313 = scmp.ne.s32.totalorder %s298, %s312
      %p314 = scmp.eq.s32.totalorder %s36, 0
      %p315 = por %p313, %p314
      %s316 = ssub.s32 %s30, %s37
      %p317 = scmp.eq.s32.totalorder %s316, 0
      %s319 = sadd.s32 %s318, 1
      %s320 = scalar_select %p317, %s318, %s319
      %p323 = pneg %p317
      %p324 = scmp.eq.s32.totalorder %s30, 1
      %p325 = por %p323, %p324
      %p326 = scmp.ne.s32.totalorder %s318, %s321
      %p327 = scmp.eq.s32.totalorder %s30, 0
      %p328 = por %p326, %p327
      %p329 = scmp.ne.s32.totalorder %s318, %s321
      %p330 = scmp.eq.s32.totalorder %s35, 1
      %p331 = por %p329, %p330
      %p332 = scmp.ne.s32.totalorder %s321, %s322
      %p333 = scmp.eq.s32.totalorder %s35, 0
      %p334 = por %p332, %p333
      %p335 = scmp.ne.s32.totalorder %s321, %s322
      %p336 = scmp.eq.s32.totalorder %s36, 1
      %p337 = por %p335, %p336
      %p339 = scmp.ne.s32.totalorder %s322, %s338
      %p340 = scmp.eq.s32.totalorder %s36, 0
      %p341 = por %p339, %p340
      %p342 = scmp.le.s32.totalorder 1, %s30
      %p343 = scmp.lt.s32.totalorder %s30, 3
      %p344 = pnand %p342, %p343
      %p345 = pneg %p344
      // Predicated region
      $region9: #{tpu_custom_call.1} parent=5 // pred_check
        _
      $region10: #{tpu_custom_call.1} parent=5 // pred_check_branch
        %347 = sbr.rel (%p344) target = $region12
      $region11: #{tpu_custom_call.1} parent=5 // pred_region
        %s348 = ssub.s32 %s30, 1
        // Predicated region
        $region13: #{tpu_custom_call.1} parent=11 // pred_check
          %p349 = pneg %p77
        $region14: #{tpu_custom_call.1} parent=11 // pred_check_branch
          %351 = sbr.rel (%p349) target = $region16
        $region15: #{tpu_custom_call.1} parent=11 // pred_region
          %353 = vsyncadd [#allocation6], 0
          %s355 = sshll.u32 %s1, 4
          %s356 = int_to_ptr.hbm [resolvable:$true] %s355
          %s357 = sshll.u32 [#allocation5], 4
          %s358 = int_to_ptr.vmem [resolvable:$true] %s357
          %360 = dma.hbm_to_vmem [thread:$0]  %s356, 16, %s358, [#allocation6]
        $region16: #{tpu_custom_call.1} parent=11 // pred_fallthru
          _
        // Predicated region
        $region17: #{tpu_custom_call.1} parent=11 // pred_check
          %p361 = pneg %p98
        $region18: #{tpu_custom_call.1} parent=11 // pred_check_branch
          %363 = sbr.rel (%p361) target = $region20
        $region19: #{tpu_custom_call.1} parent=11 // pred_region
          %365 = vsyncadd [#allocation6], 0
          %s367 = sshll.u32 %s2, 4
          %s368 = int_to_ptr.hbm [resolvable:$true] %s367
          %s369 = sshll.u32 [#allocation7], 4
          %s370 = int_to_ptr.vmem [resolvable:$true] %s369
          %372 = dma.hbm_to_vmem [thread:$0]  %s368, 16, %s370, [#allocation6]
        $region20: #{tpu_custom_call.1} parent=11 // pred_fallthru
          _
        // Predicated region
        $region21: #{tpu_custom_call.1} parent=11 // pred_check
          %p373 = pneg %p119
        $region22: #{tpu_custom_call.1} parent=11 // pred_check_branch
          %375 = sbr.rel (%p373) target = $region24
        $region23: #{tpu_custom_call.1} parent=11 // pred_region
          %377 = vsyncadd [#allocation9], 0
          %s378 = sshll.u32 %s3, 4
          %s379 = int_to_ptr.hbm [resolvable:$true] %s378
          %s380 = sshll.u32 [#allocation8], 4
          %s381 = int_to_ptr.vmem [resolvable:$true] %s380
          %386 = dma.hbm_to_vmem [thread:$0]  %s379, 6144, %s381, [#allocation9], 384, 384, 24
        $region24: #{tpu_custom_call.1} parent=11 // pred_fallthru
          _
        // Predicated region
        $region25: #{tpu_custom_call.1} parent=11 // pred_check
          %p387 = pneg %p140
        $region26: #{tpu_custom_call.1} parent=11 // pred_check_branch
          %389 = sbr.rel (%p387) target = $region28
        $region27: #{tpu_custom_call.1} parent=11 // pred_region
          _
        $region28: #{tpu_custom_call.1} parent=11 // pred_fallthru
          _
        // Predicated region
        $region29: #{tpu_custom_call.1} parent=11 // pred_check
          %p390 = pneg %p161
        $region30: #{tpu_custom_call.1} parent=11 // pred_check_branch
          %392 = sbr.rel (%p390) target = $region32
        $region31: #{tpu_custom_call.1} parent=11 // pred_region
          %394 = vsyncadd [#allocation9], 0
          %s395 = sshll.u32 %s5, 4
          %s396 = int_to_ptr.hbm [resolvable:$true] %s395
          %s397 = sshll.u32 [#allocation10], 4
          %s398 = int_to_ptr.vmem [resolvable:$true] %s397
          %403 = dma.hbm_to_vmem [thread:$0]  %s396, 2048, %s398, [#allocation9], 128, 128, 8
        $region32: #{tpu_custom_call.1} parent=11 // pred_fallthru
          _
        // Predicated region
        $region33: #{tpu_custom_call.1} parent=11 // pred_check
          %p404 = pneg %p182
        $region34: #{tpu_custom_call.1} parent=11 // pred_check_branch
          %406 = sbr.rel (%p404) target = $region36
        $region35: #{tpu_custom_call.1} parent=11 // pred_region
          %408 = vsyncadd [#allocation12], 0
          %s410 = sshll.u32 %s6, 4
          %s411 = int_to_ptr.hbm [resolvable:$true] %s410
          %s412 = sshll.u32 [#allocation11], 4
          %s413 = int_to_ptr.vmem [resolvable:$true] %s412
          %415 = dma.hbm_to_vmem [thread:$0]  %s411, 16, %s413, [#allocation12]
        $region36: #{tpu_custom_call.1} parent=11 // pred_fallthru
          _
        // Predicated region
        $region37: #{tpu_custom_call.1} parent=11 // pred_check
          %p416 = pneg %p203
        $region38: #{tpu_custom_call.1} parent=11 // pred_check_branch
          %418 = sbr.rel (%p416) target = $region40
        $region39: #{tpu_custom_call.1} parent=11 // pred_region
          %420 = vsyncadd [#allocation12], 0
          %s422 = sshll.u32 %s7, 4
          %s423 = int_to_ptr.hbm [resolvable:$true] %s422
          %s424 = sshll.u32 [#allocation13], 4
          %s425 = int_to_ptr.vmem [resolvable:$true] %s424
          %427 = dma.hbm_to_vmem [thread:$0]  %s423, 16, %s425, [#allocation12]
        $region40: #{tpu_custom_call.1} parent=11 // pred_fallthru
          _
        // Predicated region
        $region41: #{tpu_custom_call.1} parent=11 // pred_check
          %p428 = pneg %p224
        $region42: #{tpu_custom_call.1} parent=11 // pred_check_branch
          %430 = sbr.rel (%p428) target = $region44
        $region43: #{tpu_custom_call.1} parent=11 // pred_region
          %432 = vsyncadd [#allocation15], 0
          %s434 = sshll.u32 %s8, 4
          %s435 = int_to_ptr.hbm [resolvable:$true] %s434
          %s436 = sshll.u32 [#allocation14], 4
          %s437 = int_to_ptr.vmem [resolvable:$true] %s436
          %439 = dma.hbm_to_vmem [thread:$0]  %s435, 16, %s437, [#allocation15]
        $region44: #{tpu_custom_call.1} parent=11 // pred_fallthru
          _
        // Predicated region
        $region45: #{tpu_custom_call.1} parent=11 // pred_check
          %p440 = pneg %p245
        $region46: #{tpu_custom_call.1} parent=11 // pred_check_branch
          %442 = sbr.rel (%p440) target = $region48
        $region47: #{tpu_custom_call.1} parent=11 // pred_region
          %444 = vsyncadd [#allocation15], 0
          %s445 = sshll.u32 %s9, 4
          %s446 = int_to_ptr.hbm [resolvable:$true] %s445
          %s447 = sshll.u32 [#allocation16], 4
          %s448 = int_to_ptr.vmem [resolvable:$true] %s447
          %453 = dma.hbm_to_vmem [thread:$0]  %s446, 8192, %s448, [#allocation15], 512, 512, 32
        $region48: #{tpu_custom_call.1} parent=11 // pred_fallthru
          _
        // Predicated region
        $region49: #{tpu_custom_call.1} parent=11 // pred_check
          %p454 = pneg %p266
        $region50: #{tpu_custom_call.1} parent=11 // pred_check_branch
          %456 = sbr.rel (%p454) target = $region52
        $region51: #{tpu_custom_call.1} parent=11 // pred_region
          _
        $region52: #{tpu_custom_call.1} parent=11 // pred_fallthru
          _
        // Predicated region
        $region53: #{tpu_custom_call.1} parent=11 // pred_check
          %p457 = pneg %p287
        $region54: #{tpu_custom_call.1} parent=11 // pred_check_branch
          %459 = sbr.rel (%p457) target = $region56
        $region55: #{tpu_custom_call.1} parent=11 // pred_region
          %461 = vsyncadd [#allocation18], 0
          %s462 = sshll.u32 %s11, 4
          %s463 = int_to_ptr.hbm [resolvable:$true] %s462
          %s464 = sshll.u32 [#allocation17], 4
          %s465 = int_to_ptr.vmem [resolvable:$true] %s464
          %470 = dma.hbm_to_vmem [thread:$0]  %s463, 8192, %s465, [#allocation18], 128, 128, 8
        $region56: #{tpu_custom_call.1} parent=11 // pred_fallthru
          _
        // Predicated region
        $region57: #{tpu_custom_call.1} parent=11 // pred_check
          %p471 = pneg %p308
        $region58: #{tpu_custom_call.1} parent=11 // pred_check_branch
          %473 = sbr.rel (%p471) target = $region60
        $region59: #{tpu_custom_call.1} parent=11 // pred_region
          _
        $region60: #{tpu_custom_call.1} parent=11 // pred_fallthru
          _
      $region12: #{tpu_custom_call.1} parent=5 // pred_fallthru
        _
      %p474 = scmp.lt.s32.totalorder %s30, 2
      // Predicated region
      $region61: #{tpu_custom_call.1} parent=5 // pred_check
        %p475 = pneg %p474
      $region62: #{tpu_custom_call.1} parent=5 // pred_check_branch
        %477 = sbr.rel (%p475) target = $region64
      $region63: #{tpu_custom_call.1} parent=5 // pred_region
        // Predicated region
        $region65: #{tpu_custom_call.1} parent=63 // pred_check
          %p478 = pneg %p50
        $region66: #{tpu_custom_call.1} parent=63 // pred_check_branch
          %480 = sbr.rel (%p478) target = $region68
        $region67: #{tpu_custom_call.1} parent=63 // pred_region
          %s481 = sand.u32 %s40, 1
          %s482 = scalar_lea.sflag [#allocation3], %s481
          %s483 = sand.u32 %s40, 1
          %s484 = smul.addr %s483, 16
          %s485 = scalar_lea.vmem [#allocation2], %s484
          %487 = vsyncadd %s482, 0
          %s488 = smul.addr %s30, 2
          %s489 = smul.addr %s488, 8
          %s490 = scalar_lea.hbm %s0, %s489
          %s491 = sshll.u32 %s490, 4
          %s492 = int_to_ptr.hbm [resolvable:$true] %s491
          %s493 = sshll.u32 %s485, 4
          %s494 = int_to_ptr.vmem [resolvable:$true] %s493
          %499 = dma.hbm_to_vmem [thread:$0]  %s492, 256, %s494, %s482, 128, 128, 8
        $region68: #{tpu_custom_call.1} parent=63 // pred_fallthru
          _
      $region64: #{tpu_custom_call.1} parent=5 // pred_fallthru
        _
      %p500 = scmp.le.s32.totalorder 1, %s30
      %p501 = scmp.lt.s32.totalorder %s30, 3
      %p502 = pnand %p500, %p501
      %p503 = pneg %p502
      // Predicated region
      $region69: #{tpu_custom_call.1} parent=5 // pred_check
        _
      $region70: #{tpu_custom_call.1} parent=5 // pred_check_branch
        %505 = sbr.rel (%p502) target = $region72
      $region71: #{tpu_custom_call.1} parent=5 // pred_region
        %s506 = ssub.s32 %s30, 1
        %s507 = sand.u32 %s43, 1
        %s508 = scalar_lea.sflag [#allocation3], %s507
        %s509 = sand.u32 %s43, 1
        %s510 = smul.addr %s509, 16
        %s511 = scalar_lea.vmem [#allocation2], %s510
        // Predicated region
        $region73: #{tpu_custom_call.1} parent=71 // pred_check
          %p512 = pneg %p56
        $region74: #{tpu_custom_call.1} parent=71 // pred_check_branch
          %514 = sbr.rel (%p512) target = $region76
        $region75: #{tpu_custom_call.1} parent=71 // pred_region
          %516 = dma.done %s508, 256
        $region76: #{tpu_custom_call.1} parent=71 // pred_fallthru
          _
        // Predicated region
        $region77: #{tpu_custom_call.1} parent=71 // pred_check
          %p517 = pneg %p77
        $region78: #{tpu_custom_call.1} parent=71 // pred_check_branch
          %519 = sbr.rel (%p517) target = $region80
        $region79: #{tpu_custom_call.1} parent=71 // pred_region
          %521 = dma.done [#allocation6], 16
        $region80: #{tpu_custom_call.1} parent=71 // pred_fallthru
          _
        // Predicated region
        $region81: #{tpu_custom_call.1} parent=71 // pred_check
          %p522 = pneg %p98
        $region82: #{tpu_custom_call.1} parent=71 // pred_check_branch
          %524 = sbr.rel (%p522) target = $region84
        $region83: #{tpu_custom_call.1} parent=71 // pred_region
          %526 = dma.done [#allocation6], 16
        $region84: #{tpu_custom_call.1} parent=71 // pred_fallthru
          _
        // Predicated region
        $region85: #{tpu_custom_call.1} parent=71 // pred_check
          %p527 = pneg %p119
        $region86: #{tpu_custom_call.1} parent=71 // pred_check_branch
          %529 = sbr.rel (%p527) target = $region88
        $region87: #{tpu_custom_call.1} parent=71 // pred_region
          %531 = dma.done [#allocation9], 6144
        $region88: #{tpu_custom_call.1} parent=71 // pred_fallthru
          _
        // Predicated region
        $region89: #{tpu_custom_call.1} parent=71 // pred_check
          %p532 = pneg %p161
        $region90: #{tpu_custom_call.1} parent=71 // pred_check_branch
          %534 = sbr.rel (%p532) target = $region92
        $region91: #{tpu_custom_call.1} parent=71 // pred_region
          %536 = dma.done [#allocation9], 2048
        $region92: #{tpu_custom_call.1} parent=71 // pred_fallthru
          _
        // Predicated region
        $region93: #{tpu_custom_call.1} parent=71 // pred_check
          %p537 = pneg %p182
        $region94: #{tpu_custom_call.1} parent=71 // pred_check_branch
          %539 = sbr.rel (%p537) target = $region96
        $region95: #{tpu_custom_call.1} parent=71 // pred_region
          %541 = dma.done [#allocation12], 16
        $region96: #{tpu_custom_call.1} parent=71 // pred_fallthru
          _
        // Predicated region
        $region97: #{tpu_custom_call.1} parent=71 // pred_check
          %p542 = pneg %p203
        $region98: #{tpu_custom_call.1} parent=71 // pred_check_branch
          %544 = sbr.rel (%p542) target = $region100
        $region99: #{tpu_custom_call.1} parent=71 // pred_region
          %546 = dma.done [#allocation12], 16
        $region100: #{tpu_custom_call.1} parent=71 // pred_fallthru
          _
        // Predicated region
        $region101: #{tpu_custom_call.1} parent=71 // pred_check
          %p547 = pneg %p224
        $region102: #{tpu_custom_call.1} parent=71 // pred_check_branch
          %549 = sbr.rel (%p547) target = $region104
        $region103: #{tpu_custom_call.1} parent=71 // pred_region
          %551 = dma.done [#allocation15], 16
        $region104: #{tpu_custom_call.1} parent=71 // pred_fallthru
          _
        // Predicated region
        $region105: #{tpu_custom_call.1} parent=71 // pred_check
          %p552 = pneg %p245
        $region106: #{tpu_custom_call.1} parent=71 // pred_check_branch
          %554 = sbr.rel (%p552) target = $region108
        $region107: #{tpu_custom_call.1} parent=71 // pred_region
          %556 = dma.done [#allocation15], 8192
        $region108: #{tpu_custom_call.1} parent=71 // pred_fallthru
          _
        // Predicated region
        $region109: #{tpu_custom_call.1} parent=71 // pred_check
          %p557 = pneg %p287
        $region110: #{tpu_custom_call.1} parent=71 // pred_check_branch
          %559 = sbr.rel (%p557) target = $region112
        $region111: #{tpu_custom_call.1} parent=71 // pred_region
          %561 = dma.done [#allocation18], 8192
        $region112: #{tpu_custom_call.1} parent=71 // pred_fallthru
          _
        %s562 = sand.u32 %s43, 1
        %s563 = scalar_lea.sflag [#allocation3], %s562
        %s564 = sand.u32 %s43, 1
        %s565 = smul.addr %s564, 16
        %s566 = scalar_lea.vmem [#allocation2], %s565
        %p567 = pneg %p56
        %p568 = pneg %p53
        %p569 = pneg %p77
        %p570 = pneg %p74
        %p571 = pneg %p98
        %p572 = pneg %p95
        %p573 = pneg %p119
        %p574 = pneg %p116
        %p575 = pneg %p140
        %p576 = pneg %p137
        %p577 = pneg %p161
        %p578 = pneg %p158
        %p579 = pneg %p182
        %p580 = pneg %p179
        %p581 = pneg %p203
        %p582 = pneg %p200
        %p583 = pneg %p224
        %p584 = pneg %p221
        %p585 = pneg %p245
        %p586 = pneg %p242
        %p587 = pneg %p266
        %p588 = pneg %p263
        %p589 = pneg %p287
        %p590 = pneg %p284
        %p591 = pneg %p308
        %p592 = pneg %p305
        %p593 = pneg %p334
        %p594 = pneg %p331
        %s595 = sand.u32 %s321, 1
        %s596 = scalar_lea.sflag [#allocation4], %s595
        %s597 = sand.u32 %s321, 1
        %s598 = smul.addr %s597, 16
        %s599 = scalar_lea.vmem [#allocation19], %s598
        %v600 = vld [vmem:[%s511] sm:$0xff]
        %v601 = vld [vmem:[%s511 + $0x8] sm:$0xff]
        %v602 = vld [vmem:[#allocation5] sm:$0x1]
        %v603 = vld [vmem:[#allocation7] sm:$0x1]
        %604 = vadd.xlane.f32.xlu0 %v600
        %v605 = vpop.xlane.xlu0 %604
        %606 = vadd.xlane.f32.xlu0 %v601
        %v607 = vpop.xlane.xlu0 %606
        %v608 = vrcp.pop 128.0
        %v609 = vmul.f32 128.0, %v608
        %v610 = vsub.f32 1.0, %v609
        %v611 = vmul.f32 %v608, %v610
        %v612 = vadd.f32 %v608, %v611
        %vm613 = vweird.f32 %v608
        %v614 = vsel %vm613, %v608, %v612
        %v615 = vmul.f32 %v605, %v614
        %v616 = vmul.f32 %v607, %v614
        %v617 = vsub.f32 %v600, %v615
        %v618 = vsub.f32 %v601, %v616
        %v619 = vmul.f32 %v617, %v617
        %v620 = vmul.f32 %v618, %v618
        %621 = vadd.xlane.f32.xlu0 %v619
        %v622 = vpop.xlane.xlu0 %621
        %623 = vadd.xlane.f32.xlu0 %v620
        %v624 = vpop.xlane.xlu0 %623
        %v625 = vmul.f32 %v622, %v614
        %v626 = vmul.f32 %v624, %v614
        %v627 = vadd.f32 %v625, 1e-05
        %v628 = vadd.f32 %v626, 1e-05
        %v629 = vrsqrt.pop %v627
        %v630 = vmul.f32 %v629, %v627
        %v631 = vmul.f32 %v630, %v629
        %v632 = vmul.f32 0.5, %v631
        %v633 = vsub.f32 1.5, %v632
        %v634 = vmul.f32 %v629, %v633
        %vm635 = vweird.f32 %v627
        %vm636 = vweird.f32 %v629
        %vm637 = vmor %vm635, %vm636
        %v638 = vsel %vm637, %v629, %v634
        %v639 = vrsqrt.pop %v628
        %v640 = vmul.f32 %v639, %v628
        %v641 = vmul.f32 %v640, %v639
        %v642 = vmul.f32 0.5, %v641
        %v643 = vsub.f32 1.5, %v642
        %v644 = vmul.f32 %v639, %v643
        %vm645 = vweird.f32 %v628
        %vm646 = vweird.f32 %v639
        %vm647 = vmor %vm645, %vm646
        %v648 = vsel %vm647, %v639, %v644
        %v649 = vmul.f32 %v617, %v638
        %v650 = vmul.f32 %v618, %v648
        %v652 = vperm.slane %v602, 0
        %v654 = vmul.f32 %v649, %v652
        %v655 = vmul.f32 %v650, %v652
        %v657 = vperm.slane %v603, 0
        %v659 = vadd.f32 %v654, %v657
        %v660 = vadd.f32 %v655, %v657
        %v661 = vld [vmem:[#allocation8] sm:$0xff]
        %v662 = vld [vmem:[#allocation8 + $0x8] sm:$0xff]
        %v663 = vld [vmem:[#allocation8 + $0x10] sm:$0xff]
        %v664 = vld [vmem:[#allocation8 + $0x18] sm:$0xff]
        %v665 = vld [vmem:[#allocation8 + $0x20] sm:$0xff]
        %v666 = vld [vmem:[#allocation8 + $0x28] sm:$0xff]
        %v667 = vld [vmem:[#allocation8 + $0x30] sm:$0xff]
        %v668 = vld [vmem:[#allocation8 + $0x38] sm:$0xff]
        %v669 = vld [vmem:[#allocation8 + $0x40] sm:$0xff]
        %v670 = vld [vmem:[#allocation8 + $0x48] sm:$0xff]
        %v671 = vld [vmem:[#allocation8 + $0x50] sm:$0xff]
        %v672 = vld [vmem:[#allocation8 + $0x58] sm:$0xff]
        %v673 = vld [vmem:[#allocation8 + $0x60] sm:$0xff]
        %v674 = vld [vmem:[#allocation8 + $0x68] sm:$0xff]
        %v675 = vld [vmem:[#allocation8 + $0x70] sm:$0xff]
        %v676 = vld [vmem:[#allocation8 + $0x78] sm:$0xff]
        %v677 = vld [vmem:[#allocation8 + $0x80] sm:$0xff]
        %v678 = vld [vmem:[#allocation8 + $0x88] sm:$0xff]
        %v679 = vld [vmem:[#allocation8 + $0x90] sm:$0xff]
        %v680 = vld [vmem:[#allocation8 + $0x98] sm:$0xff]
        %v681 = vld [vmem:[#allocation8 + $0xa0] sm:$0xff]
        %v682 = vld [vmem:[#allocation8 + $0xa8] sm:$0xff]
        %v683 = vld [vmem:[#allocation8 + $0xb0] sm:$0xff]
        %v684 = vld [vmem:[#allocation8 + $0xb8] sm:$0xff]
        %v685 = vld [vmem:[#allocation8 + $0xc0] sm:$0xff]
        %v686 = vld [vmem:[#allocation8 + $0xc8] sm:$0xff]
        %v687 = vld [vmem:[#allocation8 + $0xd0] sm:$0xff]
        %v688 = vld [vmem:[#allocation8 + $0xd8] sm:$0xff]
        %v689 = vld [vmem:[#allocation8 + $0xe0] sm:$0xff]
        %v690 = vld [vmem:[#allocation8 + $0xe8] sm:$0xff]
        %v691 = vld [vmem:[#allocation8 + $0xf0] sm:$0xff]
        %v692 = vld [vmem:[#allocation8 + $0xf8] sm:$0xff]
        %v693 = vld [vmem:[#allocation8 + $0x100] sm:$0xff]
        %v694 = vld [vmem:[#allocation8 + $0x108] sm:$0xff]
        %v695 = vld [vmem:[#allocation8 + $0x110] sm:$0xff]
        %v696 = vld [vmem:[#allocation8 + $0x118] sm:$0xff]
        %v697 = vld [vmem:[#allocation8 + $0x120] sm:$0xff]
        %v698 = vld [vmem:[#allocation8 + $0x128] sm:$0xff]
        %v699 = vld [vmem:[#allocation8 + $0x130] sm:$0xff]
        %v700 = vld [vmem:[#allocation8 + $0x138] sm:$0xff]
        %v701 = vld [vmem:[#allocation8 + $0x140] sm:$0xff]
        %v702 = vld [vmem:[#allocation8 + $0x148] sm:$0xff]
        %v703 = vld [vmem:[#allocation8 + $0x150] sm:$0xff]
        %v704 = vld [vmem:[#allocation8 + $0x158] sm:$0xff]
        %v705 = vld [vmem:[#allocation8 + $0x160] sm:$0xff]
        %v706 = vld [vmem:[#allocation8 + $0x168] sm:$0xff]
        %v707 = vld [vmem:[#allocation8 + $0x170] sm:$0xff]
        %v708 = vld [vmem:[#allocation8 + $0x178] sm:$0xff]
        %v709 = vld [vmem:[%s4] sm:$0x7]
        %v711 = vperm.slane %v709, 0
        %v712 = vperm.slane %v709, 1
        %v713 = vperm.slane %v709, 2
        %717 = vmatpush.msra.mxu0 %v706
        %718 = vmatpush.msra.mxu0 %v703
        %719 = vmatpush.msra.mxu0 %v700
        %720 = vmatpush.msra.mxu0 %v697
        %721 = vmatpush.msra.mxu0 %v694
        %722 = vmatpush.msra.mxu0 %v691
        %723 = vmatpush.msra.mxu0 %v688
        %724 = vmatpush.msra.mxu0 %v685
        %725 = vmatpush.msra.mxu0 %v682
        %726 = vmatpush.msra.mxu0 %v679
        %727 = vmatpush.msra.mxu0 %v676
        %728 = vmatpush.msra.mxu0 %v673
        %729 = vmatpush.msra.mxu0 %v670
        %730 = vmatpush.msra.mxu0 %v667
        %731 = vmatpush.msra.mxu0 %v664
        %732 = vmatpush.msra.mxu0 %v661
        %733 = vmatmul.f32.gmra.mxu0 %v659
        %v734 = vpop.f32.mrf.mxu0
        %v735 = vadd.f32 %v711, %v734
        %736 = vmatmul.f32.gmra.mxu0 %v660
        %v737 = vpop.f32.mrf.mxu0
        %v738 = vadd.f32 %v711, %v737
        %739 = vdwg.mxu0
        %740 = vmatpush.msra.mxu0 %v707
        %741 = vmatpush.msra.mxu0 %v704
        %742 = vmatpush.msra.mxu0 %v701
        %743 = vmatpush.msra.mxu0 %v698
        %744 = vmatpush.msra.mxu0 %v695
        %745 = vmatpush.msra.mxu0 %v692
        %746 = vmatpush.msra.mxu0 %v689
        %747 = vmatpush.msra.mxu0 %v686
        %748 = vmatpush.msra.mxu0 %v683
        %749 = vmatpush.msra.mxu0 %v680
        %750 = vmatpush.msra.mxu0 %v677
        %751 = vmatpush.msra.mxu0 %v674
        %752 = vmatpush.msra.mxu0 %v671
        %753 = vmatpush.msra.mxu0 %v668
        %754 = vmatpush.msra.mxu0 %v665
        %755 = vmatpush.msra.mxu0 %v662
        %756 = vmatmul.f32.gmra.mxu0 %v659
        %v757 = vpop.f32.mrf.mxu0
        %v758 = vadd.f32 %v712, %v757
        %759 = vmatmul.f32.gmra.mxu0 %v660
        %v760 = vpop.f32.mrf.mxu0
        %v761 = vadd.f32 %v712, %v760
        %762 = vdwg.mxu0
        %763 = vmatpush.msra.mxu0 %v708
        %764 = vmatpush.msra.mxu0 %v705
        %765 = vmatpush.msra.mxu0 %v702
        %766 = vmatpush.msra.mxu0 %v699
        %767 = vmatpush.msra.mxu0 %v696
        %768 = vmatpush.msra.mxu0 %v693
        %769 = vmatpush.msra.mxu0 %v690
        %770 = vmatpush.msra.mxu0 %v687
        %771 = vmatpush.msra.mxu0 %v684
        %772 = vmatpush.msra.mxu0 %v681
        %773 = vmatpush.msra.mxu0 %v678
        %774 = vmatpush.msra.mxu0 %v675
        %775 = vmatpush.msra.mxu0 %v672
        %776 = vmatpush.msra.mxu0 %v669
        %777 = vmatpush.msra.mxu0 %v666
        %778 = vmatpush.msra.mxu0 %v663
        %779 = vmatmul.f32.gmra.mxu0 %v659
        %v780 = vpop.f32.mrf.mxu0
        %v781 = vadd.f32 %v713, %v780
        %782 = vmatmul.f32.gmra.mxu0 %v660
        %v783 = vpop.f32.mrf.mxu0
        %v784 = vadd.f32 %v713, %v783
        %785 = vdwg.mxu0
        %788 = vrot.lane.b32.xlu0 %v735, 96
        %v789 = vpop.permute.xlu0 %788
        %790 = vrot.lane.b32.xlu0 %v738, 96
        %v791 = vpop.permute.xlu0 %790
        %792 = vrot.lane.b32.xlu0 %v735, 64
        %v793 = vpop.permute.xlu0 %792
        %794 = vrot.lane.b32.xlu0 %v738, 64
        %v795 = vpop.permute.xlu0 %794
        %796 = vrot.lane.b32.xlu0 %v735, 32
        %v797 = vpop.permute.xlu0 %796
        %798 = vrot.lane.b32.xlu0 %v738, 32
        %v799 = vpop.permute.xlu0 %798
        %802 = vrot.lane.b32.xlu0 %v758, 96
        %v803 = vpop.permute.xlu0 %802
        %804 = vrot.lane.b32.xlu0 %v761, 96
        %v805 = vpop.permute.xlu0 %804
        %806 = vrot.lane.b32.xlu0 %v758, 64
        %v807 = vpop.permute.xlu0 %806
        %808 = vrot.lane.b32.xlu0 %v761, 64
        %v809 = vpop.permute.xlu0 %808
        %810 = vrot.lane.b32.xlu0 %v758, 32
        %v811 = vpop.permute.xlu0 %810
        %812 = vrot.lane.b32.xlu0 %v761, 32
        %v813 = vpop.permute.xlu0 %812
        %816 = vrot.lane.b32.xlu0 %v781, 96
        %v817 = vpop.permute.xlu0 %816
        %818 = vrot.lane.b32.xlu0 %v784, 96
        %v819 = vpop.permute.xlu0 %818
        %822 = vrot.lane.b32.xlu0 %v781, 64
        %v823 = vpop.permute.xlu0 %822
        %824 = vrot.lane.b32.xlu0 %v784, 64
        %v825 = vpop.permute.xlu0 %824
        %828 = vrot.lane.b32.xlu0 %v781, 32
        %v829 = vpop.permute.xlu0 %828
        %830 = vrot.lane.b32.xlu0 %v784, 32
        %v831 = vpop.permute.xlu0 %830
        %vm834 = vcmask 261120
        %v835 = vsel %vm834, %v735, 0
        %v837 = vsel %vm834, %v738, 0
        %v839 = vsel %vm834, %v758, 0
        %v841 = vsel %vm834, %v761, 0
        %843 = vmatpush.xpose.msra.mxu0 0.0
        %844 = vmatpush.xpose.msra.mxu0 0.0
        %845 = vmatpush.xpose.msra.mxu0 0.0
        %846 = vmatpush.xpose.msra.mxu0 0.0
        %847 = vmatpush.xpose.msra.mxu0 0.0
        %848 = vmatpush.xpose.msra.mxu0 0.0
        %849 = vmatpush.xpose.msra.mxu0 0.0
        %850 = vmatpush.xpose.msra.mxu0 0.0
        %851 = vmatpush.xpose.msra.mxu0 0.0
        %852 = vmatpush.xpose.msra.mxu0 0.0
        %853 = vmatpush.xpose.msra.mxu0 0.0
        %854 = vmatpush.xpose.msra.mxu0 0.0
        %855 = vmatpush.xpose.msra.mxu0 0.0
        %856 = vmatpush.xpose.msra.mxu0 0.0
        %857 = vmatpush.xpose.msra.mxu0 %v841
        %858 = vmatpush.xpose.msra.mxu0 %v839
        %859 = vmatmul.f32.gmra.mxu0 %v835
        %v860 = vpop.f32.mrf.mxu0
        %v861 = vadd.f32 0.0, %v860
        %862 = vmatmul.f32.gmra.mxu0 %v837
        %v863 = vpop.f32.mrf.mxu0
        %v864 = vadd.f32 0.0, %v863
        %865 = vdwg.mxu0
        %v866 = vsel %vm834, %v789, 0
        %v868 = vsel %vm834, %v791, 0
        %v870 = vsel %vm834, %v803, 0
        %v872 = vsel %vm834, %v805, 0
        %874 = vmatpush.xpose.msra.mxu0 0.0
        %875 = vmatpush.xpose.msra.mxu0 0.0
        %876 = vmatpush.xpose.msra.mxu0 0.0
        %877 = vmatpush.xpose.msra.mxu0 0.0
        %878 = vmatpush.xpose.msra.mxu0 0.0
        %879 = vmatpush.xpose.msra.mxu0 0.0
        %880 = vmatpush.xpose.msra.mxu0 0.0
        %881 = vmatpush.xpose.msra.mxu0 0.0
        %882 = vmatpush.xpose.msra.mxu0 0.0
        %883 = vmatpush.xpose.msra.mxu0 0.0
        %884 = vmatpush.xpose.msra.mxu0 0.0
        %885 = vmatpush.xpose.msra.mxu0 0.0
        %886 = vmatpush.xpose.msra.mxu0 0.0
        %887 = vmatpush.xpose.msra.mxu0 0.0
        %888 = vmatpush.xpose.msra.mxu0 %v872
        %889 = vmatpush.xpose.msra.mxu0 %v870
        %890 = vmatmul.f32.gmra.mxu0 %v866
        %v891 = vpop.f32.mrf.mxu0
        %v892 = vadd.f32 0.0, %v891
        %893 = vmatmul.f32.gmra.mxu0 %v868
        %v894 = vpop.f32.mrf.mxu0
        %v895 = vadd.f32 0.0, %v894
        %896 = vdwg.mxu0
        %v897 = vsel %vm834, %v793, 0
        %v899 = vsel %vm834, %v795, 0
        %v901 = vsel %vm834, %v807, 0
        %v903 = vsel %vm834, %v809, 0
        %905 = vmatpush.xpose.msra.mxu0 0.0
        %906 = vmatpush.xpose.msra.mxu0 0.0
        %907 = vmatpush.xpose.msra.mxu0 0.0
        %908 = vmatpush.xpose.msra.mxu0 0.0
        %909 = vmatpush.xpose.msra.mxu0 0.0
        %910 = vmatpush.xpose.msra.mxu0 0.0
        %911 = vmatpush.xpose.msra.mxu0 0.0
        %912 = vmatpush.xpose.msra.mxu0 0.0
        %913 = vmatpush.xpose.msra.mxu0 0.0
        %914 = vmatpush.xpose.msra.mxu0 0.0
        %915 = vmatpush.xpose.msra.mxu0 0.0
        %916 = vmatpush.xpose.msra.mxu0 0.0
        %917 = vmatpush.xpose.msra.mxu0 0.0
        %918 = vmatpush.xpose.msra.mxu0 0.0
        %919 = vmatpush.xpose.msra.mxu0 %v903
        %920 = vmatpush.xpose.msra.mxu0 %v901
        %921 = vmatmul.f32.gmra.mxu0 %v897
        %v922 = vpop.f32.mrf.mxu0
        %v923 = vadd.f32 0.0, %v922
        %924 = vmatmul.f32.gmra.mxu0 %v899
        %v925 = vpop.f32.mrf.mxu0
        %v926 = vadd.f32 0.0, %v925
        %927 = vdwg.mxu0
        %v928 = vsel %vm834, %v797, 0
        %v930 = vsel %vm834, %v799, 0
        %v932 = vsel %vm834, %v811, 0
        %v934 = vsel %vm834, %v813, 0
        %936 = vmatpush.xpose.msra.mxu0 0.0
        %937 = vmatpush.xpose.msra.mxu0 0.0
        %938 = vmatpush.xpose.msra.mxu0 0.0
        %939 = vmatpush.xpose.msra.mxu0 0.0
        %940 = vmatpush.xpose.msra.mxu0 0.0
        %941 = vmatpush.xpose.msra.mxu0 0.0
        %942 = vmatpush.xpose.msra.mxu0 0.0
        %943 = vmatpush.xpose.msra.mxu0 0.0
        %944 = vmatpush.xpose.msra.mxu0 0.0
        %945 = vmatpush.xpose.msra.mxu0 0.0
        %946 = vmatpush.xpose.msra.mxu0 0.0
        %947 = vmatpush.xpose.msra.mxu0 0.0
        %948 = vmatpush.xpose.msra.mxu0 0.0
        %949 = vmatpush.xpose.msra.mxu0 0.0
        %950 = vmatpush.xpose.msra.mxu0 %v934
        %951 = vmatpush.xpose.msra.mxu0 %v932
        %952 = vmatmul.f32.gmra.mxu0 %v928
        %v953 = vpop.f32.mrf.mxu0
        %v954 = vadd.f32 0.0, %v953
        %955 = vmatmul.f32.gmra.mxu0 %v930
        %v956 = vpop.f32.mrf.mxu0
        %v957 = vadd.f32 0.0, %v956
        %958 = vdwg.mxu0
        %v959 = vlaneseq
        %v960 = vand.u32 %v959, 127
        %vm961 = vcmp.lt.s32.totalorder %v960, 8
        %v962 = vsel %vm961, 1, 0
        %vm963 = vcmp.eq.s32.totalorder %v962, 1
        %v964 = vsel %vm963, %v861, -1e+30
        %v965 = vsel %vm963, %v864, -1e+30
        %v966 = vsel %vm963, %v892, -1e+30
        %v967 = vsel %vm963, %v895, -1e+30
        %v968 = vsel %vm963, %v923, -1e+30
        %v969 = vsel %vm963, %v926, -1e+30
        %v970 = vsel %vm963, %v954, -1e+30
        %v971 = vsel %vm963, %v957, -1e+30
        %vm972 = vcmask 130048
        %v973 = vsel %vm972, %v964, -inf
        %974 = vmax.xlane.f32.xlu0 %v973
        %v975 = vpop.xlane.xlu0 %974
        %v976 = vsel %vm972, %v965, -inf
        %977 = vmax.xlane.f32.xlu0 %v976
        %v978 = vpop.xlane.xlu0 %977
        %v979 = vsel %vm972, %v966, -inf
        %980 = vmax.xlane.f32.xlu0 %v979
        %v981 = vpop.xlane.xlu0 %980
        %v982 = vsel %vm972, %v967, -inf
        %983 = vmax.xlane.f32.xlu0 %v982
        %v984 = vpop.xlane.xlu0 %983
        %v985 = vsel %vm972, %v968, -inf
        %986 = vmax.xlane.f32.xlu0 %v985
        %v987 = vpop.xlane.xlu0 %986
        %v988 = vsel %vm972, %v969, -inf
        %989 = vmax.xlane.f32.xlu0 %v988
        %v990 = vpop.xlane.xlu0 %989
        %v991 = vsel %vm972, %v970, -inf
        %992 = vmax.xlane.f32.xlu0 %v991
        %v993 = vpop.xlane.xlu0 %992
        %v994 = vsel %vm972, %v971, -inf
        %995 = vmax.xlane.f32.xlu0 %v994
        %v996 = vpop.xlane.xlu0 %995
        %v997 = vsub.f32 %v964, %v975
        %v998 = vsub.f32 %v965, %v978
        %v999 = vsub.f32 %v966, %v981
        %v1000 = vsub.f32 %v967, %v984
        %v1001 = vsub.f32 %v968, %v987
        %v1002 = vsub.f32 %v969, %v990
        %v1003 = vsub.f32 %v970, %v993
        %v1004 = vsub.f32 %v971, %v996
        %v1005 = vmul.f32 %v997, 1.442695
        %v1006 = vpow.pop %v1005
        %v1007 = vmul.f32 %v998, 1.442695
        %v1008 = vpow.pop %v1007
        %v1009 = vmul.f32 %v999, 1.442695
        %v1010 = vpow.pop %v1009
        %v1011 = vmul.f32 %v1000, 1.442695
        %v1012 = vpow.pop %v1011
        %v1013 = vmul.f32 %v1001, 1.442695
        %v1014 = vpow.pop %v1013
        %v1015 = vmul.f32 %v1002, 1.442695
        %v1016 = vpow.pop %v1015
        %v1017 = vmul.f32 %v1003, 1.442695
        %v1018 = vpow.pop %v1017
        %v1019 = vmul.f32 %v1004, 1.442695
        %v1020 = vpow.pop %v1019
        %v1021 = vsel %vm972, %v1006, 0.0
        %1022 = vadd.xlane.f32.xlu0 %v1021
        %v1023 = vpop.xlane.xlu0 %1022
        %v1024 = vsel %vm972, %v1008, 0.0
        %1025 = vadd.xlane.f32.xlu0 %v1024
        %v1026 = vpop.xlane.xlu0 %1025
        %v1027 = vsel %vm972, %v1010, 0.0
        %1028 = vadd.xlane.f32.xlu0 %v1027
        %v1029 = vpop.xlane.xlu0 %1028
        %v1030 = vsel %vm972, %v1012, 0.0
        %1031 = vadd.xlane.f32.xlu0 %v1030
        %v1032 = vpop.xlane.xlu0 %1031
        %v1033 = vsel %vm972, %v1014, 0.0
        %1034 = vadd.xlane.f32.xlu0 %v1033
        %v1035 = vpop.xlane.xlu0 %1034
        %v1036 = vsel %vm972, %v1016, 0.0
        %1037 = vadd.xlane.f32.xlu0 %v1036
        %v1038 = vpop.xlane.xlu0 %1037
        %v1039 = vsel %vm972, %v1018, 0.0
        %1040 = vadd.xlane.f32.xlu0 %v1039
        %v1041 = vpop.xlane.xlu0 %1040
        %v1042 = vsel %vm972, %v1020, 0.0
        %1043 = vadd.xlane.f32.xlu0 %v1042
        %v1044 = vpop.xlane.xlu0 %1043
        %v1045 = vrcp.pop %v1023
        %v1046 = vrcp.pop %v1026
        %v1047 = vrcp.pop %v1029
        %v1048 = vrcp.pop %v1032
        %v1049 = vrcp.pop %v1035
        %v1050 = vrcp.pop %v1038
        %v1051 = vrcp.pop %v1041
        %v1052 = vrcp.pop %v1044
        %v1053 = vmul.f32 %v1006, %v1045
        %v1054 = vmul.f32 %v1008, %v1046
        %v1055 = vmul.f32 %v1010, %v1047
        %v1056 = vmul.f32 %v1012, %v1048
        %v1057 = vmul.f32 %v1014, %v1049
        %v1058 = vmul.f32 %v1016, %v1050
        %v1059 = vmul.f32 %v1018, %v1051
        %v1060 = vmul.f32 %v1020, %v1052
        %v1062 = vsel %vm972, %v1053, 0
        %v1065 = vsel %vm972, %v1054, 0
        %1067 = vmatpush.msra.mxu0 0.0
        %1068 = vmatpush.msra.mxu0 0.0
        %1069 = vmatpush.msra.mxu0 0.0
        %1070 = vmatpush.msra.mxu0 0.0
        %1071 = vmatpush.msra.mxu0 0.0
        %1072 = vmatpush.msra.mxu0 0.0
        %1073 = vmatpush.msra.mxu0 0.0
        %1074 = vmatpush.msra.mxu0 0.0
        %1075 = vmatpush.msra.mxu0 0.0
        %1076 = vmatpush.msra.mxu0 0.0
        %1077 = vmatpush.msra.mxu0 0.0
        %1078 = vmatpush.msra.mxu0 0.0
        %1079 = vmatpush.msra.mxu0 0.0
        %1080 = vmatpush.msra.mxu0 0.0
        %1081 = vmatpush.msra.mxu0 %v784
        %1082 = vmatpush.msra.mxu0 %v781
        %1083 = vmatmul.f32.gmra.mxu0 %v1062
        %v1084 = vpop.f32.mrf.mxu0
        %v1085 = vadd.f32 0.0, %v1084
        %1086 = vmatmul.f32.gmra.mxu0 %v1065
        %v1087 = vpop.f32.mrf.mxu0
        %v1088 = vadd.f32 0.0, %v1087
        %1089 = vdwg.mxu0
        %v1091 = vsel %vm972, %v1055, 0
        %v1094 = vsel %vm972, %v1056, 0
        %1096 = vmatpush.msra.mxu0 0.0
        %1097 = vmatpush.msra.mxu0 0.0
        %1098 = vmatpush.msra.mxu0 0.0
        %1099 = vmatpush.msra.mxu0 0.0
        %1100 = vmatpush.msra.mxu0 0.0
        %1101 = vmatpush.msra.mxu0 0.0
        %1102 = vmatpush.msra.mxu0 0.0
        %1103 = vmatpush.msra.mxu0 0.0
        %1104 = vmatpush.msra.mxu0 0.0
        %1105 = vmatpush.msra.mxu0 0.0
        %1106 = vmatpush.msra.mxu0 0.0
        %1107 = vmatpush.msra.mxu0 0.0
        %1108 = vmatpush.msra.mxu0 0.0
        %1109 = vmatpush.msra.mxu0 0.0
        %1110 = vmatpush.msra.mxu0 %v819
        %1111 = vmatpush.msra.mxu0 %v817
        %1112 = vmatmul.f32.gmra.mxu0 %v1091
        %v1113 = vpop.f32.mrf.mxu0
        %v1114 = vadd.f32 0.0, %v1113
        %1115 = vmatmul.f32.gmra.mxu0 %v1094
        %v1116 = vpop.f32.mrf.mxu0
        %v1117 = vadd.f32 0.0, %v1116
        %1118 = vdwg.mxu0
        %v1120 = vsel %vm972, %v1057, 0
        %v1123 = vsel %vm972, %v1058, 0
        %1125 = vmatpush.msra.mxu0 0.0
        %1126 = vmatpush.msra.mxu0 0.0
        %1127 = vmatpush.msra.mxu0 0.0
        %1128 = vmatpush.msra.mxu0 0.0
        %1129 = vmatpush.msra.mxu0 0.0
        %1130 = vmatpush.msra.mxu0 0.0
        %1131 = vmatpush.msra.mxu0 0.0
        %1132 = vmatpush.msra.mxu0 0.0
        %1133 = vmatpush.msra.mxu0 0.0
        %1134 = vmatpush.msra.mxu0 0.0
        %1135 = vmatpush.msra.mxu0 0.0
        %1136 = vmatpush.msra.mxu0 0.0
        %1137 = vmatpush.msra.mxu0 0.0
        %1138 = vmatpush.msra.mxu0 0.0
        %1139 = vmatpush.msra.mxu0 %v825
        %1140 = vmatpush.msra.mxu0 %v823
        %1141 = vmatmul.f32.gmra.mxu0 %v1120
        %v1142 = vpop.f32.mrf.mxu0
        %v1143 = vadd.f32 0.0, %v1142
        %1144 = vmatmul.f32.gmra.mxu0 %v1123
        %v1145 = vpop.f32.mrf.mxu0
        %v1146 = vadd.f32 0.0, %v1145
        %1147 = vdwg.mxu0
        %v1149 = vsel %vm972, %v1059, 0
        %v1152 = vsel %vm972, %v1060, 0
        %1154 = vmatpush.msra.mxu0 0.0
        %1155 = vmatpush.msra.mxu0 0.0
        %1156 = vmatpush.msra.mxu0 0.0
        %1157 = vmatpush.msra.mxu0 0.0
        %1158 = vmatpush.msra.mxu0 0.0
        %1159 = vmatpush.msra.mxu0 0.0
        %1160 = vmatpush.msra.mxu0 0.0
        %1161 = vmatpush.msra.mxu0 0.0
        %1162 = vmatpush.msra.mxu0 0.0
        %1163 = vmatpush.msra.mxu0 0.0
        %1164 = vmatpush.msra.mxu0 0.0
        %1165 = vmatpush.msra.mxu0 0.0
        %1166 = vmatpush.msra.mxu0 0.0
        %1167 = vmatpush.msra.mxu0 0.0
        %1168 = vmatpush.msra.mxu0 %v831
        %1169 = vmatpush.msra.mxu0 %v829
        %1170 = vmatmul.f32.gmra.mxu0 %v1149
        %v1171 = vpop.f32.mrf.mxu0
        %v1172 = vadd.f32 0.0, %v1171
        %1173 = vmatmul.f32.gmra.mxu0 %v1152
        %v1174 = vpop.f32.mrf.mxu0
        %v1175 = vadd.f32 0.0, %v1174
        %1176 = vdwg.mxu0
        %1179 = vrot.lane.b32.xlu0 %v1114, 32
        %v1180 = vpop.permute.xlu0 %1179
        %1181 = vrot.lane.b32.xlu0 %v1117, 32
        %v1182 = vpop.permute.xlu0 %1181
        %1187 = vrot.lane.b32.xlu0 %v1143, 64
        %v1188 = vpop.permute.xlu0 %1187
        %1189 = vrot.lane.b32.xlu0 %v1146, 64
        %v1190 = vpop.permute.xlu0 %1189
        %1195 = vrot.lane.b32.xlu0 %v1172, 96
        %v1196 = vpop.permute.xlu0 %1195
        %1197 = vrot.lane.b32.xlu0 %v1175, 96
        %v1198 = vpop.permute.xlu0 %1197
        %v1201 = vsel %vm834, %v1085, %v1180
        %v1202 = vsel %vm834, %v1088, %v1182
        %vm1203 = vcmask 523264
        %v1204 = vsel %vm1203, %v1201, %v1188
        %v1205 = vsel %vm1203, %v1202, %v1190
        %vm1206 = vcmask 785408
        %v1207 = vsel %vm1206, %v1204, %v1196
        %v1208 = vsel %vm1206, %v1205, %v1198
        %v1209 = vld [vmem:[#allocation10] sm:$0xff]
        %v1210 = vld [vmem:[#allocation10 + $0x8] sm:$0xff]
        %v1211 = vld [vmem:[#allocation10 + $0x10] sm:$0xff]
        %v1212 = vld [vmem:[#allocation10 + $0x18] sm:$0xff]
        %v1213 = vld [vmem:[#allocation10 + $0x20] sm:$0xff]
        %v1214 = vld [vmem:[#allocation10 + $0x28] sm:$0xff]
        %v1215 = vld [vmem:[#allocation10 + $0x30] sm:$0xff]
        %v1216 = vld [vmem:[#allocation10 + $0x38] sm:$0xff]
        %v1217 = vld [vmem:[#allocation10 + $0x40] sm:$0xff]
        %v1218 = vld [vmem:[#allocation10 + $0x48] sm:$0xff]
        %v1219 = vld [vmem:[#allocation10 + $0x50] sm:$0xff]
        %v1220 = vld [vmem:[#allocation10 + $0x58] sm:$0xff]
        %v1221 = vld [vmem:[#allocation10 + $0x60] sm:$0xff]
        %v1222 = vld [vmem:[#allocation10 + $0x68] sm:$0xff]
        %v1223 = vld [vmem:[#allocation10 + $0x70] sm:$0xff]
        %v1224 = vld [vmem:[#allocation10 + $0x78] sm:$0xff]
        %v1225 = vld [vmem:[#allocation11] sm:$0x1]
        %v1227 = vperm.slane %v1225, 0
        %1229 = vmatpush.msra.mxu0 %v1224
        %1230 = vmatpush.msra.mxu0 %v1223
        %1231 = vmatpush.msra.mxu0 %v1222
        %1232 = vmatpush.msra.mxu0 %v1221
        %1233 = vmatpush.msra.mxu0 %v1220
        %1234 = vmatpush.msra.mxu0 %v1219
        %1235 = vmatpush.msra.mxu0 %v1218
        %1236 = vmatpush.msra.mxu0 %v1217
        %1237 = vmatpush.msra.mxu0 %v1216
        %1238 = vmatpush.msra.mxu0 %v1215
        %1239 = vmatpush.msra.mxu0 %v1214
        %1240 = vmatpush.msra.mxu0 %v1213
        %1241 = vmatpush.msra.mxu0 %v1212
        %1242 = vmatpush.msra.mxu0 %v1211
        %1243 = vmatpush.msra.mxu0 %v1210
        %1244 = vmatpush.msra.mxu0 %v1209
        %1245 = vmatmul.f32.gmra.mxu0 %v1207
        %v1246 = vpop.f32.mrf.mxu0
        %v1247 = vadd.f32 %v1227, %v1246
        %1248 = vmatmul.f32.gmra.mxu0 %v1208
        %v1249 = vpop.f32.mrf.mxu0
        %v1250 = vadd.f32 %v1227, %v1249
        %1251 = vdwg.mxu0
        %v1252 = vadd.f32 %v600, %v1247
        %v1253 = vadd.f32 %v601, %v1250
        %v1254 = vld [vmem:[#allocation13] sm:$0x1]
        %v1255 = vld [vmem:[#allocation14] sm:$0x1]
        %1256 = vadd.xlane.f32.xlu0 %v1252
        %v1257 = vpop.xlane.xlu0 %1256
        %1258 = vadd.xlane.f32.xlu0 %v1253
        %v1259 = vpop.xlane.xlu0 %1258
        %v1260 = vmul.f32 %v1257, %v614
        %v1261 = vmul.f32 %v1259, %v614
        %v1262 = vsub.f32 %v1252, %v1260
        %v1263 = vsub.f32 %v1253, %v1261
        %v1264 = vmul.f32 %v1262, %v1262
        %v1265 = vmul.f32 %v1263, %v1263
        %1266 = vadd.xlane.f32.xlu0 %v1264
        %v1267 = vpop.xlane.xlu0 %1266
        %1268 = vadd.xlane.f32.xlu0 %v1265
        %v1269 = vpop.xlane.xlu0 %1268
        %v1270 = vmul.f32 %v1267, %v614
        %v1271 = vmul.f32 %v1269, %v614
        %v1272 = vadd.f32 %v1270, 1e-05
        %v1273 = vadd.f32 %v1271, 1e-05
        %v1274 = vrsqrt.pop %v1272
        %v1275 = vmul.f32 %v1274, %v1272
        %v1276 = vmul.f32 %v1275, %v1274
        %v1277 = vmul.f32 0.5, %v1276
        %v1278 = vsub.f32 1.5, %v1277
        %v1279 = vmul.f32 %v1274, %v1278
        %vm1280 = vweird.f32 %v1272
        %vm1281 = vweird.f32 %v1274
        %vm1282 = vmor %vm1280, %vm1281
        %v1283 = vsel %vm1282, %v1274, %v1279
        %v1284 = vrsqrt.pop %v1273
        %v1285 = vmul.f32 %v1284, %v1273
        %v1286 = vmul.f32 %v1285, %v1284
        %v1287 = vmul.f32 0.5, %v1286
        %v1288 = vsub.f32 1.5, %v1287
        %v1289 = vmul.f32 %v1284, %v1288
        %vm1290 = vweird.f32 %v1273
        %vm1291 = vweird.f32 %v1284
        %vm1292 = vmor %vm1290, %vm1291
        %v1293 = vsel %vm1292, %v1284, %v1289
        %v1294 = vmul.f32 %v1262, %v1283
        %v1295 = vmul.f32 %v1263, %v1293
        %v1297 = vperm.slane %v1254, 0
        %v1299 = vmul.f32 %v1294, %v1297
        %v1300 = vmul.f32 %v1295, %v1297
        %v1302 = vperm.slane %v1255, 0
        %v1304 = vadd.f32 %v1299, %v1302
        %v1305 = vadd.f32 %v1300, %v1302
        %v1306 = vld [vmem:[#allocation16] sm:$0xff]
        %v1307 = vld [vmem:[#allocation16 + $0x8] sm:$0xff]
        %v1308 = vld [vmem:[#allocation16 + $0x10] sm:$0xff]
        %v1309 = vld [vmem:[#allocation16 + $0x18] sm:$0xff]
        %v1310 = vld [vmem:[#allocation16 + $0x20] sm:$0xff]
        %v1311 = vld [vmem:[#allocation16 + $0x28] sm:$0xff]
        %v1312 = vld [vmem:[#allocation16 + $0x30] sm:$0xff]
        %v1313 = vld [vmem:[#allocation16 + $0x38] sm:$0xff]
        %v1314 = vld [vmem:[#allocation16 + $0x40] sm:$0xff]
        %v1315 = vld [vmem:[#allocation16 + $0x48] sm:$0xff]
        %v1316 = vld [vmem:[#allocation16 + $0x50] sm:$0xff]
        %v1317 = vld [vmem:[#allocation16 + $0x58] sm:$0xff]
        %v1318 = vld [vmem:[#allocation16 + $0x60] sm:$0xff]
        %v1319 = vld [vmem:[#allocation16 + $0x68] sm:$0xff]
        %v1320 = vld [vmem:[#allocation16 + $0x70] sm:$0xff]
        %v1321 = vld [vmem:[#allocation16 + $0x78] sm:$0xff]
        %v1322 = vld [vmem:[#allocation16 + $0x80] sm:$0xff]
        %v1323 = vld [vmem:[#allocation16 + $0x88] sm:$0xff]
        %v1324 = vld [vmem:[#allocation16 + $0x90] sm:$0xff]
        %v1325 = vld [vmem:[#allocation16 + $0x98] sm:$0xff]
        %v1326 = vld [vmem:[#allocation16 + $0xa0] sm:$0xff]
        %v1327 = vld [vmem:[#allocation16 + $0xa8] sm:$0xff]
        %v1328 = vld [vmem:[#allocation16 + $0xb0] sm:$0xff]
        %v1329 = vld [vmem:[#allocation16 + $0xb8] sm:$0xff]
        %v1330 = vld [vmem:[#allocation16 + $0xc0] sm:$0xff]
        %v1331 = vld [vmem:[#allocation16 + $0xc8] sm:$0xff]
        %v1332 = vld [vmem:[#allocation16 + $0xd0] sm:$0xff]
        %v1333 = vld [vmem:[#allocation16 + $0xd8] sm:$0xff]
        %v1334 = vld [vmem:[#allocation16 + $0xe0] sm:$0xff]
        %v1335 = vld [vmem:[#allocation16 + $0xe8] sm:$0xff]
        %v1336 = vld [vmem:[#allocation16 + $0xf0] sm:$0xff]
        %v1337 = vld [vmem:[#allocation16 + $0xf8] sm:$0xff]
        %v1338 = vld [vmem:[#allocation16 + $0x100] sm:$0xff]
        %v1339 = vld [vmem:[#allocation16 + $0x108] sm:$0xff]
        %v1340 = vld [vmem:[#allocation16 + $0x110] sm:$0xff]
        %v1341 = vld [vmem:[#allocation16 + $0x118] sm:$0xff]
        %v1342 = vld [vmem:[#allocation16 + $0x120] sm:$0xff]
        %v1343 = vld [vmem:[#allocation16 + $0x128] sm:$0xff]
        %v1344 = vld [vmem:[#allocation16 + $0x130] sm:$0xff]
        %v1345 = vld [vmem:[#allocation16 + $0x138] sm:$0xff]
        %v1346 = vld [vmem:[#allocation16 + $0x140] sm:$0xff]
        %v1347 = vld [vmem:[#allocation16 + $0x148] sm:$0xff]
        %v1348 = vld [vmem:[#allocation16 + $0x150] sm:$0xff]
        %v1349 = vld [vmem:[#allocation16 + $0x158] sm:$0xff]
        %v1350 = vld [vmem:[#allocation16 + $0x160] sm:$0xff]
        %v1351 = vld [vmem:[#allocation16 + $0x168] sm:$0xff]
        %v1352 = vld [vmem:[#allocation16 + $0x170] sm:$0xff]
        %v1353 = vld [vmem:[#allocation16 + $0x178] sm:$0xff]
        %v1354 = vld [vmem:[#allocation16 + $0x180] sm:$0xff]
        %v1355 = vld [vmem:[#allocation16 + $0x188] sm:$0xff]
        %v1356 = vld [vmem:[#allocation16 + $0x190] sm:$0xff]
        %v1357 = vld [vmem:[#allocation16 + $0x198] sm:$0xff]
        %v1358 = vld [vmem:[#allocation16 + $0x1a0] sm:$0xff]
        %v1359 = vld [vmem:[#allocation16 + $0x1a8] sm:$0xff]
        %v1360 = vld [vmem:[#allocation16 + $0x1b0] sm:$0xff]
        %v1361 = vld [vmem:[#allocation16 + $0x1b8] sm:$0xff]
        %v1362 = vld [vmem:[#allocation16 + $0x1c0] sm:$0xff]
        %v1363 = vld [vmem:[#allocation16 + $0x1c8] sm:$0xff]
        %v1364 = vld [vmem:[#allocation16 + $0x1d0] sm:$0xff]
        %v1365 = vld [vmem:[#allocation16 + $0x1d8] sm:$0xff]
        %v1366 = vld [vmem:[#allocation16 + $0x1e0] sm:$0xff]
        %v1367 = vld [vmem:[#allocation16 + $0x1e8] sm:$0xff]
        %v1368 = vld [vmem:[#allocation16 + $0x1f0] sm:$0xff]
        %v1369 = vld [vmem:[#allocation16 + $0x1f8] sm:$0xff]
        %v1370 = vld [vmem:[%s10] sm:$0xf]
        %v1372 = vperm.slane %v1370, 0
        %v1373 = vperm.slane %v1370, 1
        %v1374 = vperm.slane %v1370, 2
        %v1375 = vperm.slane %v1370, 3
        %1380 = vmatpush.msra.mxu0 %v1366
        %1381 = vmatpush.msra.mxu0 %v1362
        %1382 = vmatpush.msra.mxu0 %v1358
        %1383 = vmatpush.msra.mxu0 %v1354
        %1384 = vmatpush.msra.mxu0 %v1350
        %1385 = vmatpush.msra.mxu0 %v1346
        %1386 = vmatpush.msra.mxu0 %v1342
        %1387 = vmatpush.msra.mxu0 %v1338
        %1388 = vmatpush.msra.mxu0 %v1334
        %1389 = vmatpush.msra.mxu0 %v1330
        %1390 = vmatpush.msra.mxu0 %v1326
        %1391 = vmatpush.msra.mxu0 %v1322
        %1392 = vmatpush.msra.mxu0 %v1318
        %1393 = vmatpush.msra.mxu0 %v1314
        %1394 = vmatpush.msra.mxu0 %v1310
        %1395 = vmatpush.msra.mxu0 %v1306
        %1396 = vmatmul.f32.gmra.mxu0 %v1304
        %v1397 = vpop.f32.mrf.mxu0
        %v1398 = vadd.f32 %v1372, %v1397
        %1399 = vmatmul.f32.gmra.mxu0 %v1305
        %v1400 = vpop.f32.mrf.mxu0
        %v1401 = vadd.f32 %v1372, %v1400
        %1402 = vdwg.mxu0
        %1403 = vmatpush.msra.mxu0 %v1367
        %1404 = vmatpush.msra.mxu0 %v1363
        %1405 = vmatpush.msra.mxu0 %v1359
        %1406 = vmatpush.msra.mxu0 %v1355
        %1407 = vmatpush.msra.mxu0 %v1351
        %1408 = vmatpush.msra.mxu0 %v1347
        %1409 = vmatpush.msra.mxu0 %v1343
        %1410 = vmatpush.msra.mxu0 %v1339
        %1411 = vmatpush.msra.mxu0 %v1335
        %1412 = vmatpush.msra.mxu0 %v1331
        %1413 = vmatpush.msra.mxu0 %v1327
        %1414 = vmatpush.msra.mxu0 %v1323
        %1415 = vmatpush.msra.mxu0 %v1319
        %1416 = vmatpush.msra.mxu0 %v1315
        %1417 = vmatpush.msra.mxu0 %v1311
        %1418 = vmatpush.msra.mxu0 %v1307
        %1419 = vmatmul.f32.gmra.mxu0 %v1304
        %v1420 = vpop.f32.mrf.mxu0
        %v1421 = vadd.f32 %v1373, %v1420
        %1422 = vmatmul.f32.gmra.mxu0 %v1305
        %v1423 = vpop.f32.mrf.mxu0
        %v1424 = vadd.f32 %v1373, %v1423
        %1425 = vdwg.mxu0
        %1426 = vmatpush.msra.mxu0 %v1368
        %1427 = vmatpush.msra.mxu0 %v1364
        %1428 = vmatpush.msra.mxu0 %v1360
        %1429 = vmatpush.msra.mxu0 %v1356
        %1430 = vmatpush.msra.mxu0 %v1352
        %1431 = vmatpush.msra.mxu0 %v1348
        %1432 = vmatpush.msra.mxu0 %v1344
        %1433 = vmatpush.msra.mxu0 %v1340
        %1434 = vmatpush.msra.mxu0 %v1336
        %1435 = vmatpush.msra.mxu0 %v1332
        %1436 = vmatpush.msra.mxu0 %v1328
        %1437 = vmatpush.msra.mxu0 %v1324
        %1438 = vmatpush.msra.mxu0 %v1320
        %1439 = vmatpush.msra.mxu0 %v1316
        %1440 = vmatpush.msra.mxu0 %v1312
        %1441 = vmatpush.msra.mxu0 %v1308
        %1442 = vmatmul.f32.gmra.mxu0 %v1304
        %v1443 = vpop.f32.mrf.mxu0
        %v1444 = vadd.f32 %v1374, %v1443
        %1445 = vmatmul.f32.gmra.mxu0 %v1305
        %v1446 = vpop.f32.mrf.mxu0
        %v1447 = vadd.f32 %v1374, %v1446
        %1448 = vdwg.mxu0
        %1449 = vmatpush.msra.mxu0 %v1369
        %1450 = vmatpush.msra.mxu0 %v1365
        %1451 = vmatpush.msra.mxu0 %v1361
        %1452 = vmatpush.msra.mxu0 %v1357
        %1453 = vmatpush.msra.mxu0 %v1353
        %1454 = vmatpush.msra.mxu0 %v1349
        %1455 = vmatpush.msra.mxu0 %v1345
        %1456 = vmatpush.msra.mxu0 %v1341
        %1457 = vmatpush.msra.mxu0 %v1337
        %1458 = vmatpush.msra.mxu0 %v1333
        %1459 = vmatpush.msra.mxu0 %v1329
        %1460 = vmatpush.msra.mxu0 %v1325
        %1461 = vmatpush.msra.mxu0 %v1321
        %1462 = vmatpush.msra.mxu0 %v1317
        %1463 = vmatpush.msra.mxu0 %v1313
        %1464 = vmatpush.msra.mxu0 %v1309
        %1465 = vmatmul.f32.gmra.mxu0 %v1304
        %v1466 = vpop.f32.mrf.mxu0
        %v1467 = vadd.f32 %v1375, %v1466
        %1468 = vmatmul.f32.gmra.mxu0 %v1305
        %v1469 = vpop.f32.mrf.mxu0
        %v1470 = vadd.f32 %v1375, %v1469
        %1471 = vdwg.mxu0
        %v1472 = vmul.f32 %v1398, 1.702
        %v1473 = vmul.f32 %v1421, 1.702
        %v1474 = vmul.f32 %v1444, 1.702
        %v1475 = vmul.f32 %v1467, 1.702
        %v1476 = vmul.f32 %v1401, 1.702
        %v1477 = vmul.f32 %v1424, 1.702
        %v1478 = vmul.f32 %v1447, 1.702
        %v1479 = vmul.f32 %v1470, 1.702
        %v1480 = vxor.u32 %v1472, 2147483648
        %v1481 = vxor.u32 %v1473, 2147483648
        %v1482 = vxor.u32 %v1474, 2147483648
        %v1483 = vxor.u32 %v1475, 2147483648
        %v1484 = vxor.u32 %v1476, 2147483648
        %v1485 = vxor.u32 %v1477, 2147483648
        %v1486 = vxor.u32 %v1478, 2147483648
        %v1487 = vxor.u32 %v1479, 2147483648
        %v1488 = vmul.f32 %v1480, 1.442695
        %v1489 = vpow.pop %v1488
        %v1490 = vmul.f32 %v1481, 1.442695
        %v1491 = vpow.pop %v1490
        %v1492 = vmul.f32 %v1482, 1.442695
        %v1493 = vpow.pop %v1492
        %v1494 = vmul.f32 %v1483, 1.442695
        %v1495 = vpow.pop %v1494
        %v1496 = vmul.f32 %v1484, 1.442695
        %v1497 = vpow.pop %v1496
        %v1498 = vmul.f32 %v1485, 1.442695
        %v1499 = vpow.pop %v1498
        %v1500 = vmul.f32 %v1486, 1.442695
        %v1501 = vpow.pop %v1500
        %v1502 = vmul.f32 %v1487, 1.442695
        %v1503 = vpow.pop %v1502
        %v1504 = vadd.f32 %v1489, 1.0
        %v1505 = vadd.f32 %v1491, 1.0
        %v1506 = vadd.f32 %v1493, 1.0
        %v1507 = vadd.f32 %v1495, 1.0
        %v1508 = vadd.f32 %v1497, 1.0
        %v1509 = vadd.f32 %v1499, 1.0
        %v1510 = vadd.f32 %v1501, 1.0
        %v1511 = vadd.f32 %v1503, 1.0
        %v1512 = vrcp.pop %v1504
        %v1513 = vmul.f32 %v1504, %v1512
        %v1514 = vsub.f32 1.0, %v1513
        %v1515 = vmul.f32 %v1512, %v1514
        %v1516 = vadd.f32 %v1512, %v1515
        %vm1517 = vweird.f32 %v1504
        %vm1518 = vweird.f32 %v1512
        %vm1519 = vmor %vm1517, %vm1518
        %v1520 = vsel %vm1519, %v1512, %v1516
        %v1521 = vand.u32 2147483647, %v1504
        %vm1522 = vcmp.eq.f32.partialorder %v1521, 8.507059e+37
        %v1523 = vand.u32 %v1504, 2147483648
        %v1524 = vor.u32 1.1754944e-38, %v1523
        %v1525 = vsel %vm1522, %v1524, %v1520
        %v1526 = vmul.f32 1.0, %v1525
        %v1527 = vrcp.pop %v1505
        %v1528 = vmul.f32 %v1505, %v1527
        %v1529 = vsub.f32 1.0, %v1528
        %v1530 = vmul.f32 %v1527, %v1529
        %v1531 = vadd.f32 %v1527, %v1530
        %vm1532 = vweird.f32 %v1505
        %vm1533 = vweird.f32 %v1527
        %vm1534 = vmor %vm1532, %vm1533
        %v1535 = vsel %vm1534, %v1527, %v1531
        %v1536 = vand.u32 2147483647, %v1505
        %vm1537 = vcmp.eq.f32.partialorder %v1536, 8.507059e+37
        %v1538 = vand.u32 %v1505, 2147483648
        %v1539 = vor.u32 1.1754944e-38, %v1538
        %v1540 = vsel %vm1537, %v1539, %v1535
        %v1541 = vmul.f32 1.0, %v1540
        %v1542 = vrcp.pop %v1506
        %v1543 = vmul.f32 %v1506, %v1542
        %v1544 = vsub.f32 1.0, %v1543
        %v1545 = vmul.f32 %v1542, %v1544
        %v1546 = vadd.f32 %v1542, %v1545
        %vm1547 = vweird.f32 %v1506
        %vm1548 = vweird.f32 %v1542
        %vm1549 = vmor %vm1547, %vm1548
        %v1550 = vsel %vm1549, %v1542, %v1546
        %v1551 = vand.u32 2147483647, %v1506
        %vm1552 = vcmp.eq.f32.partialorder %v1551, 8.507059e+37
        %v1553 = vand.u32 %v1506, 2147483648
        %v1554 = vor.u32 1.1754944e-38, %v1553
        %v1555 = vsel %vm1552, %v1554, %v1550
        %v1556 = vmul.f32 1.0, %v1555
        %v1557 = vrcp.pop %v1507
        %v1558 = vmul.f32 %v1507, %v1557
        %v1559 = vsub.f32 1.0, %v1558
        %v1560 = vmul.f32 %v1557, %v1559
        %v1561 = vadd.f32 %v1557, %v1560
        %vm1562 = vweird.f32 %v1507
        %vm1563 = vweird.f32 %v1557
        %vm1564 = vmor %vm1562, %vm1563
        %v1565 = vsel %vm1564, %v1557, %v1561
        %v1566 = vand.u32 2147483647, %v1507
        %vm1567 = vcmp.eq.f32.partialorder %v1566, 8.507059e+37
        %v1568 = vand.u32 %v1507, 2147483648
        %v1569 = vor.u32 1.1754944e-38, %v1568
        %v1570 = vsel %vm1567, %v1569, %v1565
        %v1571 = vmul.f32 1.0, %v1570
        %v1572 = vrcp.pop %v1508
        %v1573 = vmul.f32 %v1508, %v1572
        %v1574 = vsub.f32 1.0, %v1573
        %v1575 = vmul.f32 %v1572, %v1574
        %v1576 = vadd.f32 %v1572, %v1575
        %vm1577 = vweird.f32 %v1508
        %vm1578 = vweird.f32 %v1572
        %vm1579 = vmor %vm1577, %vm1578
        %v1580 = vsel %vm1579, %v1572, %v1576
        %v1581 = vand.u32 2147483647, %v1508
        %vm1582 = vcmp.eq.f32.partialorder %v1581, 8.507059e+37
        %v1583 = vand.u32 %v1508, 2147483648
        %v1584 = vor.u32 1.1754944e-38, %v1583
        %v1585 = vsel %vm1582, %v1584, %v1580
        %v1586 = vmul.f32 1.0, %v1585
        %v1587 = vrcp.pop %v1509
        %v1588 = vmul.f32 %v1509, %v1587
        %v1589 = vsub.f32 1.0, %v1588
        %v1590 = vmul.f32 %v1587, %v1589
        %v1591 = vadd.f32 %v1587, %v1590
        %vm1592 = vweird.f32 %v1509
        %vm1593 = vweird.f32 %v1587
        %vm1594 = vmor %vm1592, %vm1593
        %v1595 = vsel %vm1594, %v1587, %v1591
        %v1596 = vand.u32 2147483647, %v1509
        %vm1597 = vcmp.eq.f32.partialorder %v1596, 8.507059e+37
        %v1598 = vand.u32 %v1509, 2147483648
        %v1599 = vor.u32 1.1754944e-38, %v1598
        %v1600 = vsel %vm1597, %v1599, %v1595
        %v1601 = vmul.f32 1.0, %v1600
        %v1602 = vrcp.pop %v1510
        %v1603 = vmul.f32 %v1510, %v1602
        %v1604 = vsub.f32 1.0, %v1603
        %v1605 = vmul.f32 %v1602, %v1604
        %v1606 = vadd.f32 %v1602, %v1605
        %vm1607 = vweird.f32 %v1510
        %vm1608 = vweird.f32 %v1602
        %vm1609 = vmor %vm1607, %vm1608
        %v1610 = vsel %vm1609, %v1602, %v1606
        %v1611 = vand.u32 2147483647, %v1510
        %vm1612 = vcmp.eq.f32.partialorder %v1611, 8.507059e+37
        %v1613 = vand.u32 %v1510, 2147483648
        %v1614 = vor.u32 1.1754944e-38, %v1613
        %v1615 = vsel %vm1612, %v1614, %v1610
        %v1616 = vmul.f32 1.0, %v1615
        %v1617 = vrcp.pop %v1511
        %v1618 = vmul.f32 %v1511, %v1617
        %v1619 = vsub.f32 1.0, %v1618
        %v1620 = vmul.f32 %v1617, %v1619
        %v1621 = vadd.f32 %v1617, %v1620
        %vm1622 = vweird.f32 %v1511
        %vm1623 = vweird.f32 %v1617
        %vm1624 = vmor %vm1622, %vm1623
        %v1625 = vsel %vm1624, %v1617, %v1621
        %v1626 = vand.u32 2147483647, %v1511
        %vm1627 = vcmp.eq.f32.partialorder %v1626, 8.507059e+37
        %v1628 = vand.u32 %v1511, 2147483648
        %v1629 = vor.u32 1.1754944e-38, %v1628
        %v1630 = vsel %vm1627, %v1629, %v1625
        %v1631 = vmul.f32 1.0, %v1630
        %v1632 = vmul.f32 %v1398, %v1526
        %v1633 = vmul.f32 %v1421, %v1541
        %v1634 = vmul.f32 %v1444, %v1556
        %v1635 = vmul.f32 %v1467, %v1571
        %v1636 = vmul.f32 %v1401, %v1586
        %v1637 = vmul.f32 %v1424, %v1601
        %v1638 = vmul.f32 %v1447, %v1616
        %v1639 = vmul.f32 %v1470, %v1631
        %v1640 = vld [vmem:[#allocation17] sm:$0xff]
        %v1641 = vld [vmem:[#allocation17 + $0x8] sm:$0xff]
        %v1642 = vld [vmem:[#allocation17 + $0x10] sm:$0xff]
        %v1643 = vld [vmem:[#allocation17 + $0x18] sm:$0xff]
        %v1644 = vld [vmem:[#allocation17 + $0x20] sm:$0xff]
        %v1645 = vld [vmem:[#allocation17 + $0x28] sm:$0xff]
        %v1646 = vld [vmem:[#allocation17 + $0x30] sm:$0xff]
        %v1647 = vld [vmem:[#allocation17 + $0x38] sm:$0xff]
        %v1648 = vld [vmem:[#allocation17 + $0x40] sm:$0xff]
        %v1649 = vld [vmem:[#allocation17 + $0x48] sm:$0xff]
        %v1650 = vld [vmem:[#allocation17 + $0x50] sm:$0xff]
        %v1651 = vld [vmem:[#allocation17 + $0x58] sm:$0xff]
        %v1652 = vld [vmem:[#allocation17 + $0x60] sm:$0xff]
        %v1653 = vld [vmem:[#allocation17 + $0x68] sm:$0xff]
        %v1654 = vld [vmem:[#allocation17 + $0x70] sm:$0xff]
        %v1655 = vld [vmem:[#allocation17 + $0x78] sm:$0xff]
        %v1656 = vld [vmem:[#allocation17 + $0x80] sm:$0xff]
        %v1657 = vld [vmem:[#allocation17 + $0x88] sm:$0xff]
        %v1658 = vld [vmem:[#allocation17 + $0x90] sm:$0xff]
        %v1659 = vld [vmem:[#allocation17 + $0x98] sm:$0xff]
        %v1660 = vld [vmem:[#allocation17 + $0xa0] sm:$0xff]
        %v1661 = vld [vmem:[#allocation17 + $0xa8] sm:$0xff]
        %v1662 = vld [vmem:[#allocation17 + $0xb0] sm:$0xff]
        %v1663 = vld [vmem:[#allocation17 + $0xb8] sm:$0xff]
        %v1664 = vld [vmem:[#allocation17 + $0xc0] sm:$0xff]
        %v1665 = vld [vmem:[#allocation17 + $0xc8] sm:$0xff]
        %v1666 = vld [vmem:[#allocation17 + $0xd0] sm:$0xff]
        %v1667 = vld [vmem:[#allocation17 + $0xd8] sm:$0xff]
        %v1668 = vld [vmem:[#allocation17 + $0xe0] sm:$0xff]
        %v1669 = vld [vmem:[#allocation17 + $0xe8] sm:$0xff]
        %v1670 = vld [vmem:[#allocation17 + $0xf0] sm:$0xff]
        %v1671 = vld [vmem:[#allocation17 + $0xf8] sm:$0xff]
        %v1672 = vld [vmem:[#allocation17 + $0x100] sm:$0xff]
        %v1673 = vld [vmem:[#allocation17 + $0x108] sm:$0xff]
        %v1674 = vld [vmem:[#allocation17 + $0x110] sm:$0xff]
        %v1675 = vld [vmem:[#allocation17 + $0x118] sm:$0xff]
        %v1676 = vld [vmem:[#allocation17 + $0x120] sm:$0xff]
        %v1677 = vld [vmem:[#allocation17 + $0x128] sm:$0xff]
        %v1678 = vld [vmem:[#allocation17 + $0x130] sm:$0xff]
        %v1679 = vld [vmem:[#allocation17 + $0x138] sm:$0xff]
        %v1680 = vld [vmem:[#allocation17 + $0x140] sm:$0xff]
        %v1681 = vld [vmem:[#allocation17 + $0x148] sm:$0xff]
        %v1682 = vld [vmem:[#allocation17 + $0x150] sm:$0xff]
        %v1683 = vld [vmem:[#allocation17 + $0x158] sm:$0xff]
        %v1684 = vld [vmem:[#allocation17 + $0x160] sm:$0xff]
        %v1685 = vld [vmem:[#allocation17 + $0x168] sm:$0xff]
        %v1686 = vld [vmem:[#allocation17 + $0x170] sm:$0xff]
        %v1687 = vld [vmem:[#allocation17 + $0x178] sm:$0xff]
        %v1688 = vld [vmem:[#allocation17 + $0x180] sm:$0xff]
        %v1689 = vld [vmem:[#allocation17 + $0x188] sm:$0xff]
        %v1690 = vld [vmem:[#allocation17 + $0x190] sm:$0xff]
        %v1691 = vld [vmem:[#allocation17 + $0x198] sm:$0xff]
        %v1692 = vld [vmem:[#allocation17 + $0x1a0] sm:$0xff]
        %v1693 = vld [vmem:[#allocation17 + $0x1a8] sm:$0xff]
        %v1694 = vld [vmem:[#allocation17 + $0x1b0] sm:$0xff]
        %v1695 = vld [vmem:[#allocation17 + $0x1b8] sm:$0xff]
        %v1696 = vld [vmem:[#allocation17 + $0x1c0] sm:$0xff]
        %v1697 = vld [vmem:[#allocation17 + $0x1c8] sm:$0xff]
        %v1698 = vld [vmem:[#allocation17 + $0x1d0] sm:$0xff]
        %v1699 = vld [vmem:[#allocation17 + $0x1d8] sm:$0xff]
        %v1700 = vld [vmem:[#allocation17 + $0x1e0] sm:$0xff]
        %v1701 = vld [vmem:[#allocation17 + $0x1e8] sm:$0xff]
        %v1702 = vld [vmem:[#allocation17 + $0x1f0] sm:$0xff]
        %v1703 = vld [vmem:[#allocation17 + $0x1f8] sm:$0xff]
        %v1704 = vld [vmem:[%s12] sm:$0x1]
        %v1706 = vperm.slane %v1704, 0
        %1708 = vmatpush.msra.mxu0 %v1655
        %1709 = vmatpush.msra.mxu0 %v1654
        %1710 = vmatpush.msra.mxu0 %v1653
        %1711 = vmatpush.msra.mxu0 %v1652
        %1712 = vmatpush.msra.mxu0 %v1651
        %1713 = vmatpush.msra.mxu0 %v1650
        %1714 = vmatpush.msra.mxu0 %v1649
        %1715 = vmatpush.msra.mxu0 %v1648
        %1716 = vmatpush.msra.mxu0 %v1647
        %1717 = vmatpush.msra.mxu0 %v1646
        %1718 = vmatpush.msra.mxu0 %v1645
        %1719 = vmatpush.msra.mxu0 %v1644
        %1720 = vmatpush.msra.mxu0 %v1643
        %1721 = vmatpush.msra.mxu0 %v1642
        %1722 = vmatpush.msra.mxu0 %v1641
        %1723 = vmatpush.msra.mxu0 %v1640
        %1724 = vmatmul.f32.gmra.mxu0 %v1632
        %v1725 = vpop.f32.mrf.mxu0
        %v1726 = vadd.f32 %v1706, %v1725
        %1727 = vmatmul.f32.gmra.mxu0 %v1636
        %v1728 = vpop.f32.mrf.mxu0
        %v1729 = vadd.f32 %v1706, %v1728
        %1730 = vdwg.mxu0
        %1731 = vmatpush.msra.mxu0 %v1671
        %1732 = vmatpush.msra.mxu0 %v1670
        %1733 = vmatpush.msra.mxu0 %v1669
        %1734 = vmatpush.msra.mxu0 %v1668
        %1735 = vmatpush.msra.mxu0 %v1667
        %1736 = vmatpush.msra.mxu0 %v1666
        %1737 = vmatpush.msra.mxu0 %v1665
        %1738 = vmatpush.msra.mxu0 %v1664
        %1739 = vmatpush.msra.mxu0 %v1663
        %1740 = vmatpush.msra.mxu0 %v1662
        %1741 = vmatpush.msra.mxu0 %v1661
        %1742 = vmatpush.msra.mxu0 %v1660
        %1743 = vmatpush.msra.mxu0 %v1659
        %1744 = vmatpush.msra.mxu0 %v1658
        %1745 = vmatpush.msra.mxu0 %v1657
        %1746 = vmatpush.msra.mxu0 %v1656
        %1747 = vmatmul.f32.gmra.mxu0 %v1633
        %v1748 = vpop.f32.mrf.mxu0
        %v1749 = vadd.f32 %v1726, %v1748
        %1750 = vmatmul.f32.gmra.mxu0 %v1637
        %v1751 = vpop.f32.mrf.mxu0
        %v1752 = vadd.f32 %v1729, %v1751
        %1753 = vdwg.mxu0
        %1754 = vmatpush.msra.mxu0 %v1687
        %1755 = vmatpush.msra.mxu0 %v1686
        %1756 = vmatpush.msra.mxu0 %v1685
        %1757 = vmatpush.msra.mxu0 %v1684
        %1758 = vmatpush.msra.mxu0 %v1683
        %1759 = vmatpush.msra.mxu0 %v1682
        %1760 = vmatpush.msra.mxu0 %v1681
        %1761 = vmatpush.msra.mxu0 %v1680
        %1762 = vmatpush.msra.mxu0 %v1679
        %1763 = vmatpush.msra.mxu0 %v1678
        %1764 = vmatpush.msra.mxu0 %v1677
        %1765 = vmatpush.msra.mxu0 %v1676
        %1766 = vmatpush.msra.mxu0 %v1675
        %1767 = vmatpush.msra.mxu0 %v1674
        %1768 = vmatpush.msra.mxu0 %v1673
        %1769 = vmatpush.msra.mxu0 %v1672
        %1770 = vmatmul.f32.gmra.mxu0 %v1634
        %v1771 = vpop.f32.mrf.mxu0
        %v1772 = vadd.f32 %v1749, %v1771
        %1773 = vmatmul.f32.gmra.mxu0 %v1638
        %v1774 = vpop.f32.mrf.mxu0
        %v1775 = vadd.f32 %v1752, %v1774
        %1776 = vdwg.mxu0
        %1777 = vmatpush.msra.mxu0 %v1703
        %1778 = vmatpush.msra.mxu0 %v1702
        %1779 = vmatpush.msra.mxu0 %v1701
        %1780 = vmatpush.msra.mxu0 %v1700
        %1781 = vmatpush.msra.mxu0 %v1699
        %1782 = vmatpush.msra.mxu0 %v1698
        %1783 = vmatpush.msra.mxu0 %v1697
        %1784 = vmatpush.msra.mxu0 %v1696
        %1785 = vmatpush.msra.mxu0 %v1695
        %1786 = vmatpush.msra.mxu0 %v1694
        %1787 = vmatpush.msra.mxu0 %v1693
        %1788 = vmatpush.msra.mxu0 %v1692
        %1789 = vmatpush.msra.mxu0 %v1691
        %1790 = vmatpush.msra.mxu0 %v1690
        %1791 = vmatpush.msra.mxu0 %v1689
        %1792 = vmatpush.msra.mxu0 %v1688
        %1793 = vmatmul.f32.gmra.mxu0 %v1635
        %v1794 = vpop.f32.mrf.mxu0
        %v1795 = vadd.f32 %v1772, %v1794
        %1796 = vmatmul.f32.gmra.mxu0 %v1639
        %v1797 = vpop.f32.mrf.mxu0
        %v1798 = vadd.f32 %v1775, %v1797
        %1799 = vdwg.mxu0
        %v1800 = vadd.f32 %v1252, %v1795
        %v1801 = vadd.f32 %v1253, %v1798
        %1802 = vst [vmem:[%s599] sm:$0xff] %v1800
        %1803 = vst [vmem:[%s599 + $0x8] sm:$0xff] %v1801
        %s1804 = sand.u32 %s321, 1
        %s1805 = scalar_lea.sflag [#allocation4], %s1804
        %s1806 = sand.u32 %s321, 1
        %s1807 = smul.addr %s1806, 16
        %s1808 = scalar_lea.vmem [#allocation19], %s1807
        // Predicated region
        $region113: #{tpu_custom_call.1} parent=71 // pred_check
          %p1809 = pneg %p331
        $region114: #{tpu_custom_call.1} parent=71 // pred_check_branch
          %1811 = sbr.rel (%p1809) target = $region116
        $region115: #{tpu_custom_call.1} parent=71 // pred_region
          %1813 = vsyncadd %s1805, 0
          %s1814 = smul.addr %s35, 2
          %s1815 = smul.addr %s1814, 8
          %s1816 = scalar_lea.hbm %s13, %s1815
          %s1817 = sshll.u32 %s1808, 4
          %s1818 = int_to_ptr.vmem [resolvable:$true] %s1817
          %s1819 = sshll.u32 %s1816, 4
          %s1820 = int_to_ptr.hbm [resolvable:$true] %s1819
          %1825 = dma.vmem_to_hbm [thread:$0]  %s1818, 256, %s1820, %s1805, 128, 128, 8
        $region116: #{tpu_custom_call.1} parent=71 // pred_fallthru
          _
      $region72: #{tpu_custom_call.1} parent=5 // pred_fallthru
        _
      %p1826 = scmp.le.s32.totalorder 2, %s30
      // Predicated region
      $region117: #{tpu_custom_call.1} parent=5 // pred_check
        %p1827 = pneg %p1826
      $region118: #{tpu_custom_call.1} parent=5 // pred_check_branch
        %1829 = sbr.rel (%p1827) target = $region120
      $region119: #{tpu_custom_call.1} parent=5 // pred_region
        %s1830 = ssub.s32 %s30, 2
        // Predicated region
        $region121: #{tpu_custom_call.1} parent=119 // pred_check
          %p1831 = pneg %p337
        $region122: #{tpu_custom_call.1} parent=119 // pred_check_branch
          %1833 = sbr.rel (%p1831) target = $region124
        $region123: #{tpu_custom_call.1} parent=119 // pred_region
          %s1834 = sand.u32 %s322, 1
          %s1835 = scalar_lea.sflag [#allocation4], %s1834
          %s1836 = sand.u32 %s322, 1
          %s1837 = smul.addr %s1836, 16
          %s1838 = scalar_lea.vmem [#allocation19], %s1837
          %1840 = dma.done %s1835, 256
        $region124: #{tpu_custom_call.1} parent=119 // pred_fallthru
          _
      $region120: #{tpu_custom_call.1} parent=5 // pred_fallthru
        _
    $region6: #{tpu_custom_call.1} parent=1 // loop_footer
      %s34 = sadd.s32 1, %s30
    $region7: #{tpu_custom_call.1} parent=1 // loop_footer_branch
      %29 = sbr.rel target = $region3
    $region8: #{tpu_custom_call.1} parent=1 // loop_exit
      _
    %1841 = vsyncpa [#allocation3], 1
    %s1842 = scalar_lea.sflag [#allocation3], 1
    %1843 = vsyncpa %s1842, 1
    %1844 = vsyncpa [#allocation6], 1
    %1845 = vsyncpa [#allocation9], 1
    %1846 = vsyncpa [#allocation12], 1
    %1847 = vsyncpa [#allocation15], 1
    %1848 = vsyncpa [#allocation18], 1
    %1849 = vsyncpa [#allocation4], 1
    %s1850 = scalar_lea.sflag [#allocation4], 1
    %1851 = vsyncpa %s1850, 1

</llo_original>
